<compile_context>
chip_gen: v7x
topology: tpu7x:2x2x1
jax: 0.10.0
libtpu: 0.0.40
codegen_flags: <defaults>
</compile_context>

<pallas_src>
import functools

import jax
import jax.numpy as jnp
from jax import lax
from jax.experimental import pallas as pl
from jax.experimental.pallas import tpu as pltpu

_ACT_DTYPE = jnp.bfloat16
# v5e-only knob: exact erf GELU can saturate the VALU slot on the big MLP
# epilogue; tanh-approx runs on the EUP. Exact erf kept by default for parity.
_GELU_TANH_APPROX = False


def _detect_vmem_limit():
    """Generation-aware scoped-VMEM budget (v7x: 64 MiB phys -> <=48 MiB)."""
    try:
        kind = jax.devices()[0].device_kind.lower()
    except Exception:  # backend not initialised / unknown
        return 48 * 1024 * 1024
    if "v7" in kind:
        return 48 * 1024 * 1024
    return 64 * 1024 * 1024        # v5e / v6e: 128 MiB physical


_VMEM_LIMIT = _detect_vmem_limit()


# ----------------------------------------------------------------------------
# Tiling helpers
# ----------------------------------------------------------------------------
def _round_up(x, m):
    return (x + m - 1) // m * m


def _row_tile(dim, target):
    """Largest multiple-of-8 divisor of `dim` <= target (or full dim)."""
    if dim % 8 != 0:
        return dim
    t = min(target, dim)
    t -= t % 8
    while dim % t:
        t -= 8
    return t


def _lane_tile(dim, target):
    """Largest multiple-of-128 divisor of `dim` <= target (or full dim)."""
    if dim % 128 != 0:
        return dim
    t = min(target, dim)
    t -= t % 128
    while dim % t:
        t -= 128
    return t


# ----------------------------------------------------------------------------
# Kernel 1: tiled linear (optional bias, optional fused exact GELU)
# ----------------------------------------------------------------------------
def _linear_kernel(*refs, has_bias, activation):
    if has_bias:
        x_ref, w_ref, b_ref, o_ref, acc_ref = refs
    else:
        x_ref, w_ref, o_ref, acc_ref = refs
        b_ref = None
    k = pl.program_id(2)

    @pl.when(k == 0)
    def _():
        acc_ref[...] = jnp.zeros_like(acc_ref)

    acc_ref[...] += jnp.dot(x_ref[...], w_ref[...],
                            preferred_element_type=jnp.float32)

    @pl.when(k == pl.num_programs(2) - 1)
    def _():
        y = acc_ref[...]
        if b_ref is not None:
            y = y + b_ref[...].astype(jnp.float32)
        if activation == "gelu":
            if _GELU_TANH_APPROX:
                y = 0.5 * y * (1.0 + jnp.tanh(
                    0.7978845608028654 * (y + 0.044715 * y * y * y)))
            else:
                # exact GELU (PyTorch nn.GELU default), f32 on the VPU
                y = 0.5 * y * (1.0 + lax.erf(y * 0.7071067811865476))
        o_ref[...] = y.astype(o_ref.dtype)


def linear(x, w_t, b=None, activation=None, out_dtype=None):
    """x: (M, K) bf16, w_t: (K, N) bf16, b: (N,) f32 or None."""
    M, K = x.shape
    _, N = w_t.shape
    out_dtype = out_dtype or x.dtype
    tm = _row_tile(M, 512)
    tn = _lane_tile(N, 256)
    tk = _lane_tile(K, 1024)       # longer K tile -> fewer accumulator passes
    grid = (M // tm, N // tn, K // tk)

    in_specs = [
        pl.BlockSpec((tm, tk), lambda i, j, k: (i, k)),
        pl.BlockSpec((tk, tn), lambda i, j, k: (k, j)),
    ]
    args = [x, w_t]
    if b is not None:
        in_specs.append(pl.BlockSpec((1, tn), lambda i, j, k: (0, j)))
        args.append(b.reshape(1, N).astype(jnp.float32))

    kernel = functools.partial(_linear_kernel, has_bias=b is not None,
                               activation=activation)
    return pl.pallas_call(
        kernel,
        out_shape=jax.ShapeDtypeStruct((M, N), out_dtype),
        grid=grid,
        in_specs=in_specs,
        out_specs=pl.BlockSpec((tm, tn), lambda i, j, k: (i, j)),
        scratch_shapes=[pltpu.VMEM((tm, tn), jnp.float32)],
        compiler_params=pltpu.CompilerParams(
            dimension_semantics=("parallel", "parallel", "arbitrary"),
            vmem_limit_bytes=_VMEM_LIMIT),
    )(*args)


# ----------------------------------------------------------------------------
# Kernel 2: tiled linear with fused (bias +) residual-add + LayerNorm epilogue
# (used for the attention out-projection and the second MLP linear; the output
#  feature dim is kept whole so the LayerNorm reduction stays in-tile)
# ----------------------------------------------------------------------------
def _linear_ln_kernel(*refs, has_bias, eps):
    if has_bias:
        x_ref, w_ref, b_ref, r_ref, g_ref, bt_ref, o_ref, acc_ref = refs
    else:
        x_ref, w_ref, r_ref, g_ref, bt_ref, o_ref, acc_ref = refs
        b_ref = None
    k = pl.program_id(1)

    @pl.when(k == 0)
    def _():
        acc_ref[...] = jnp.zeros_like(acc_ref)

    acc_ref[...] += jnp.dot(x_ref[...], w_ref[...],
                            preferred_element_type=jnp.float32)

    @pl.when(k == pl.num_programs(1) - 1)
    def _():
        y = acc_ref[...]
        if b_ref is not None:
            y = y + b_ref[...].astype(jnp.float32)
        y = y + r_ref[...].astype(jnp.float32)
        mean = jnp.mean(y, axis=-1, keepdims=True)
        var = jnp.mean(jnp.square(y - mean), axis=-1, keepdims=True)
        y = (y - mean) * lax.rsqrt(var + eps)
        y = y * g_ref[...].astype(jnp.float32) + bt_ref[...].astype(jnp.float32)
        o_ref[...] = y.astype(o_ref.dtype)


def linear_residual_layernorm(x, w_t, b, residual, gamma, beta,
                              eps=1e-5, out_dtype=None):
    """LayerNorm((x @ w_t (+ b)) + residual).  x: (M, K), w_t: (K, N)."""
    M, K = x.shape
    _, N = w_t.shape
    out_dtype = out_dtype or x.dtype
    tm = _row_tile(M, 512)
    tk = _lane_tile(K, 1024)
    grid = (M // tm, K // tk)

    in_specs = [
        pl.BlockSpec((tm, tk), lambda i, k: (i, k)),
        pl.BlockSpec((tk, N), lambda i, k: (k, 0)),
    ]
    args = [x, w_t]
    if b is not None:
        in_specs.append(pl.BlockSpec((1, N), lambda i, k: (0, 0)))
        args.append(b.reshape(1, N).astype(jnp.float32))
    in_specs += [
        pl.BlockSpec((tm, N), lambda i, k: (i, 0)),
        pl.BlockSpec((1, N), lambda i, k: (0, 0)),
        pl.BlockSpec((1, N), lambda i, k: (0, 0)),
    ]
    args += [residual,
             gamma.reshape(1, N).astype(jnp.float32),
             beta.reshape(1, N).astype(jnp.float32)]

    kernel = functools.partial(_linear_ln_kernel, has_bias=b is not None,
                               eps=eps)
    return pl.pallas_call(
        kernel,
        out_shape=jax.ShapeDtypeStruct((M, N), out_dtype),
        grid=grid,
        in_specs=in_specs,
        out_specs=pl.BlockSpec((tm, N), lambda i, k: (i, 0)),
        scratch_shapes=[pltpu.VMEM((tm, N), jnp.float32)],
        compiler_params=pltpu.CompilerParams(
            dimension_semantics=("parallel", "arbitrary"),
            vmem_limit_bytes=_VMEM_LIMIT),
    )(*args)


# ----------------------------------------------------------------------------
# Kernel 3: multi-head attention.
#   Input : qkv_heads (B, 3H, S, D) with rows [q_0..q_{H-1} | k_0.. | v_0..]
#   Output: (B, S, E) lane-dense (heads merged inside the kernel, one store).
#   Grid  : (B, query-row tiles) -> two parallel axes (v7x dual-TC friendly);
#           the qkv block index is constant across the inner axis so it stays
#           resident in VMEM (no re-DMA per query tile).
# ----------------------------------------------------------------------------
def _attn_kernel(qkv_ref, o_ref, *, head_num, seq_valid, scale, q_tile):
    H = head_num
    S = qkv_ref.shape[2]
    D = qkv_ref.shape[3]

    if q_tile == S:                      # single query tile (toy / short seq)
        q = qkv_ref[0, 0:H]                                   # (H, S, D)
    else:
        q0 = pl.multiple_of(pl.program_id(1) * q_tile, 8)
        q = qkv_ref[0, 0:H, pl.ds(q0, q_tile), :]             # (H, tq, D)
    k = qkv_ref[0, H:2 * H]                                   # (H, S, D)
    v = qkv_ref[0, 2 * H:3 * H]                               # (H, S, D)

    # Batched q @ k^T over heads (no in-kernel transpose, MXU).
    s = jnp.einsum('hqd,hkd->hqk', q, k,
                   preferred_element_type=jnp.float32)
    # NOTE: the reference module MULTIPLIES by sqrt(head_dim)
    # (energy = einsum(q,k) * self.dk with self.dk = (E//H)**0.5).
    s = s * scale
    # Mask padded key positions (sequence was zero-padded to a multiple of 8).
    key_mask = lax.broadcasted_iota(jnp.int32, s.shape, 2) < seq_valid
    s = jnp.where(key_mask, s, -1e30)
    s = s - jnp.max(s, axis=-1, keepdims=True)
    p = jnp.exp(s)
    p = p / jnp.sum(p, axis=-1, keepdims=True)   # exact divide (matches torch)
    o = jnp.einsum('hqk,hkd->hqd', p.astype(v.dtype), v,
                   preferred_element_type=jnp.float32)        # (H, tq, D)

    # Head merge 'h q d -> q (h d)' into the lane-dense output block; the HBM
    # writeback is a single dense (tq, E) DMA.
    for h in range(H):
        o_ref[0, :, h * D:(h + 1) * D] = o[h].astype(o_ref.dtype)


def attention(qkv_heads, head_num, seq_valid, out_dtype):
    """qkv_heads: (B, 3H, S, D) -> (B, S, H*D) lane-dense."""
    B, H3, S, D = qkv_heads.shape
    H = H3 // 3
    E = H * D
    scale = float(D) ** 0.5
    q_tile = _row_tile(S, 128)
    n_q = S // q_tile
    return pl.pallas_call(
        functools.partial(_attn_kernel, head_num=H, seq_valid=seq_valid,
                          scale=scale, q_tile=q_tile),
        out_shape=jax.ShapeDtypeStruct((B, S, E), out_dtype),
        grid=(B, n_q),
        in_specs=[pl.BlockSpec((1, H3, S, D), lambda b, qi: (b, 0, 0, 0))],
        out_specs=pl.BlockSpec((1, q_tile, E), lambda b, qi: (b, qi, 0)),
        compiler_params=pltpu.CompilerParams(
            dimension_semantics=("parallel", "parallel"),
            vmem_limit_bytes=_VMEM_LIMIT),
    )(qkv_heads)


# ----------------------------------------------------------------------------
# Model glue (all heavy compute in the Pallas kernels above)
# ----------------------------------------------------------------------------
def encoder_block(x, p, head_num, seq_valid):
    """x: (B, S_pad, E) bf16 -> (B, S_pad, E) bf16."""
    B, S, E = x.shape
    D = E // head_num
    xf = x.reshape(B * S, E)

    # qkv projection (no bias) -> (B*S, 3E) in [q heads | k heads | v heads]
    # order thanks to the (hoisted) weight permutation.
    qkv = linear(xf, p["qkv_w_t"], None)
    # Head split: cheap XLA transpose in HBM -> (B, 3H, S, D) so the kernel
    # indexes heads on a major axis (no sub-128-lane slicing / relayouts).
    qkv_heads = qkv.reshape(B, S, 3 * head_num, D).transpose(0, 2, 1, 3)
    attn = attention(qkv_heads, head_num, seq_valid, x.dtype)   # (B, S, E)

    # out-projection (no bias) + residual + LayerNorm1, one tiled K=E matmul.
    x1 = linear_residual_layernorm(attn.reshape(B * S, E), p["out_w_t"], None,
                                   xf, p["ln1_g"], p["ln1_b"])

    # MLP: Linear+GELU, then Linear with fused residual + LayerNorm2.
    h = linear(x1, p["w1_t"], p["b1"], activation="gelu")
    x2 = linear_residual_layernorm(h, p["w2_t"], p["b2"], x1,
                                   p["ln2_g"], p["ln2_b"])
    return x2.reshape(B, S, E)


def prepare_params(params, head_num, act_dtype=_ACT_DTYPE):
    """One-time (outside jit) weight prep: transposes, bf16 casts, and the qkv
    permutation so the projection output layout is [q|k|v] per head
    (the reference splits qkv as 'b t (d k h) -> k b h t d')."""
    E = params["proj_w"].shape[0]
    D = E // head_num
    prepared = {
        "proj_w_t": params["proj_w"].T.astype(act_dtype),
        "proj_b": params["proj_b"].astype(jnp.float32),
        "embedding": params["embedding"].astype(jnp.float32),
        "cls_token": params["cls_token"].astype(jnp.float32),
        "blocks": [],
    }
    for p in params["blocks"]:
        # original qkv out index f = d*3H + k*H + h  ->  new index k*E + h*D + d
        qkv_w = p["qkv_w"].reshape(D, 3, head_num, E).transpose(1, 2, 0, 3)
        qkv_w = qkv_w.reshape(3 * E, E)
        prepared["blocks"].append({
            "qkv_w_t": qkv_w.T.astype(act_dtype),
            "out_w_t": p["out_w"].T.astype(act_dtype),
            "w1_t": p["w1"].T.astype(act_dtype),
            "b1": p["b1"].astype(jnp.float32),
            "w2_t": p["w2"].T.astype(act_dtype),
            "b2": p["b2"].astype(jnp.float32),
            "ln1_g": p["ln1_g"].astype(jnp.float32),
            "ln1_b": p["ln1_b"].astype(jnp.float32),
            "ln2_g": p["ln2_g"].astype(jnp.float32),
            "ln2_b": p["ln2_b"].astype(jnp.float32),
        })
    return prepared


def vit_forward(x, prepared, *, patch_dim, head_num, act_dtype=_ACT_DTYPE):
    B, C, H, W = x.shape
    xc, yc = H // patch_dim, W // patch_dim
    E = prepared["proj_w_t"].shape[1]
    T = xc * yc

    # rearrange 'b c (px x) (py y) -> b (x y) (px py c)'
    p_ = x.reshape(B, C, patch_dim, xc, patch_dim, yc)
    p_ = p_.transpose(0, 3, 5, 2, 4, 1)
    patches = p_.reshape(B * T, patch_dim * patch_dim * C).astype(act_dtype)

    proj = linear(patches, prepared["proj_w_t"], prepared["proj_b"],
                  out_dtype=jnp.float32).reshape(B, T, E)

    tok = jnp.broadcast_to(prepared["cls_token"], (B, 1, E))
    seq = jnp.concatenate([tok, proj], axis=1)                 # (B, T+1, E)
    seq = seq + prepared["embedding"][:T + 1][None, :, :]
    # dropout(p=0.1) -> identity (eval mode)

    # Pad the sequence once so every tile obeys (8,128); padded keys are
    # masked in attention; padded rows are sliced off before returning.
    seq_valid = T + 1
    s_pad = _round_up(seq_valid, 8)
    seq = jnp.pad(seq, ((0, 0), (0, s_pad - seq_valid), (0, 0)))
    seq = seq.astype(act_dtype)

    for bp in prepared["blocks"]:
        seq = encoder_block(seq, bp, head_num, seq_valid)

    # classification=False path: drop CLS token (and padding rows)
    return seq[:, 1:seq_valid, :].astype(jnp.float32)


# ----------------------------------------------------------------------------
# Deterministic parameter init (shapes follow the PyTorch module __init__)
# ----------------------------------------------------------------------------
def init_params(key, *, img_dim, in_channels, embedding_dim, head_num,
                mlp_dim, block_num, patch_dim):
    del head_num
    num_tokens = (img_dim // patch_dim) ** 2
    token_dim = in_channels * patch_dim ** 2
    E, M = embedding_dim, mlp_dim
    keys = iter(jax.random.split(key, 4 + 6 * block_num))

    def w(shape, scale=0.05):
        return jax.random.normal(next(keys), shape, jnp.float32) * scale

    params = {
        "proj_w": w((E, token_dim)),
        "proj_b": w((E,)),
        "embedding": jax.random.uniform(next(keys), (num_tokens + 1, E),
                                        jnp.float32) * 0.05,
        "cls_token": jax.random.normal(next(keys), (1, 1, E), jnp.float32) * 0.05,
        "blocks": [],
    }
    for _ in range(block_num):
        params["blocks"].append({
            "qkv_w": w((3 * E, E)),
            "out_w": w((E, E)),
            "ln1_g": jnp.ones((E,), jnp.float32),
            "ln1_b": jnp.zeros((E,), jnp.float32),
            "ln2_g": jnp.ones((E,), jnp.float32),
            "ln2_b": jnp.zeros((E,), jnp.float32),
            "w1": w((M, E)),
            "b1": w((M,)),
            "w2": w((E, M)),
            "b2": w((E,)),
        })
    return params


# ----------------------------------------------------------------------------
if __name__ == "__main__":
    B, C, IMG, PATCH = 2, 4, 16, 4
    E, HEADS, MLP_DIM, BLOCKS = 32, 4, 64, 2

    key = jax.random.PRNGKey(0)
    kx, kp = jax.random.split(key)
    x = jax.random.normal(kx, (B, C, IMG, IMG), jnp.float32)
    params = init_params(kp, img_dim=IMG, in_channels=C, embedding_dim=E,
                         head_num=HEADS, mlp_dim=MLP_DIM, block_num=BLOCKS,
                         patch_dim=PATCH)

    # Weight prep hoisted out of the jitted forward (done once at load time).
    prepared = prepare_params(params, head_num=HEADS)

    fwd = jax.jit(functools.partial(vit_forward, patch_dim=PATCH,
                                    head_num=HEADS))
    out = jax.block_until_ready(fwd(x, prepared))

    T = (IMG // PATCH) ** 2
    assert out.shape == (B, T, E), out.shape
    assert jnp.all(jnp.isfinite(out)), "non-finite output"
    print("KERNEL_OK")
</pallas_src>

<mosaic_0001>
module attributes {stable_mosaic.version = 11 : i64} {
  func.func @_linear_kernel(%arg0: i32, %arg1: i32, %arg2: i32, %arg3: memref<32x64xbf16, #tpu.memory_space<vmem>>, %arg4: memref<64x32xbf16, #tpu.memory_space<vmem>>, %arg5: memref<1x32xf32, #tpu.memory_space<vmem>>, %arg6: memref<32x32xf32, #tpu.memory_space<vmem>>, %arg7: memref<32x32xf32, #tpu.memory_space<vmem>>) attributes {dimension_semantics = [#tpu.dimension_semantics<parallel>, #tpu.dimension_semantics<parallel>, #tpu.dimension_semantics<arbitrary>], iteration_bounds = array<i64: 1, 1, 1>, scalar_prefetch = 0 : i64, scratch_operands = 1 : i64, tpu.core_type = #tpu.core_type<tc>, window_params = [{transform_indices = @transform_0, window_bounds = array<i64: 32, 64>}, {transform_indices = @transform_1, window_bounds = array<i64: 64, 32>}, {transform_indices = @transform_2, window_bounds = array<i64: 1, 32>}, {transform_indices = @transform_3, window_bounds = array<i64: 32, 32>}]} {
    %c0_i32 = arith.constant 0 : i32
    %0 = arith.cmpi eq, %arg2, %c0_i32 : i32
    %1 = arith.extui %0 : i1 to i32
    %c0_i32_0 = arith.constant 0 : i32
    %2 = arith.cmpi ne, %1, %c0_i32_0 : i32
    scf.if %2 {
      %cst_10 = arith.constant 0.000000e+00 : f32
      %12 = vector.broadcast %cst_10 : f32 to vector<32x32xf32>
      %c0_11 = arith.constant 0 : index
      %c0_12 = arith.constant 0 : index
      %13 = vector.load %arg7[%c0_11, %c0_12] : memref<32x32xf32, #tpu.memory_space<vmem>>, vector<32x32xf32>
      tpu.vector_store %arg7[%c0_11, %c0_12], %12 {strides = array<i32>} : memref<32x32xf32, #tpu.memory_space<vmem>>, vector<32x32xf32>,
    } else {
    }
    %c0 = arith.constant 0 : index
    %c0_1 = arith.constant 0 : index
    %3 = vector.load %arg7[%c0, %c0_1] : memref<32x32xf32, #tpu.memory_space<vmem>>, vector<32x32xf32>
    %c0_2 = arith.constant 0 : index
    %c0_3 = arith.constant 0 : index
    %4 = vector.load %arg3[%c0_2, %c0_3] : memref<32x64xbf16, #tpu.memory_space<vmem>>, vector<32x64xbf16>
    %c0_4 = arith.constant 0 : index
    %c0_5 = arith.constant 0 : index
    %5 = vector.load %arg4[%c0_4, %c0_5] : memref<64x32xbf16, #tpu.memory_space<vmem>>, vector<64x32xbf16>
    %cst = arith.constant dense<0.000000e+00> : vector<32x32xf32>
    %6 = tpu.matmul %4, %5, %cst {dimension_numbers = #tpu.dot_dimension_numbers<[1], [0], [0], [1], [0, 0, 1, 1], [], []>} : vector<32x64xbf16>, vector<64x32xbf16>, vector<32x32xf32> -> vector<32x32xf32>
    %7 = arith.addf %3, %6 : vector<32x32xf32>
    %c0_6 = arith.constant 0 : index
    %c0_7 = arith.constant 0 : index
    %8 = vector.load %arg7[%c0_6, %c0_7] : memref<32x32xf32, #tpu.memory_space<vmem>>, vector<32x32xf32>
    tpu.vector_store %arg7[%c0_6, %c0_7], %7 {strides = array<i32>} : memref<32x32xf32, #tpu.memory_space<vmem>>, vector<32x32xf32>,
    %c0_i32_8 = arith.constant 0 : i32
    %9 = arith.cmpi eq, %arg2, %c0_i32_8 : i32
    %10 = arith.extui %9 : i1 to i32
    %c0_i32_9 = arith.constant 0 : i32
    %11 = arith.cmpi ne, %10, %c0_i32_9 : i32
    scf.if %11 {
      %c0_10 = arith.constant 0 : index
      %c0_11 = arith.constant 0 : index
      %12 = vector.load %arg7[%c0_10, %c0_11] : memref<32x32xf32, #tpu.memory_space<vmem>>, vector<32x32xf32>
      %c0_12 = arith.constant 0 : index
      %c0_13 = arith.constant 0 : index
      %13 = vector.load %arg5[%c0_12, %c0_13] : memref<1x32xf32, #tpu.memory_space<vmem>>, vector<1x32xf32>
      %14 = vector.broadcast %13 : vector<1x32xf32> to vector<32x32xf32>
      %15 = arith.addf %12, %14 : vector<32x32xf32>
      %c0_14 = arith.constant 0 : index
      %c0_15 = arith.constant 0 : index
      %16 = vector.load %arg6[%c0_14, %c0_15] : memref<32x32xf32, #tpu.memory_space<vmem>>, vector<32x32xf32>
      tpu.vector_store %arg6[%c0_14, %c0_15], %15 {strides = array<i32>} : memref<32x32xf32, #tpu.memory_space<vmem>>, vector<32x32xf32>,
    } else {
    }
    return
  }
  func.func @transform_0(%arg0: i32, %arg1: i32, %arg2: i32) -> (i32, i32) {
    %c0_i32 = arith.constant 0 : i32
    return %arg0, %arg2 : i32, i32
  }
  func.func @transform_1(%arg0: i32, %arg1: i32, %arg2: i32) -> (i32, i32) {
    %c0_i32 = arith.constant 0 : i32
    return %arg2, %arg1 : i32, i32
  }
  func.func @transform_2(%arg0: i32, %arg1: i32, %arg2: i32) -> (i32, i32) {
    %c0_i32 = arith.constant 0 : i32
    %c0_i32_0 = arith.constant 0 : i32
    return %c0_i32, %arg1 : i32, i32
  }
  func.func @transform_3(%arg0: i32, %arg1: i32, %arg2: i32) -> (i32, i32) {
    %c0_i32 = arith.constant 0 : i32
    return %arg0, %arg1 : i32, i32
  }
}

module attributes {stable_mosaic.version = 11 : i64} {
  func.func @_linear_kernel(%arg0: i32, %arg1: i32, %arg2: i32, %arg3: memref<48x32xbf16, #tpu.memory_space<vmem>>, %arg4: memref<32x96xbf16, #tpu.memory_space<vmem>>, %arg5: memref<48x96xbf16, #tpu.memory_space<vmem>>, %arg6: memref<48x96xf32, #tpu.memory_space<vmem>>) attributes {dimension_semantics = [#tpu.dimension_semantics<parallel>, #tpu.dimension_semantics<parallel>, #tpu.dimension_semantics<arbitrary>], iteration_bounds = array<i64: 1, 1, 1>, scalar_prefetch = 0 : i64, scratch_operands = 1 : i64, tpu.core_type = #tpu.core_type<tc>, window_params = [{transform_indices = @transform_0, window_bounds = array<i64: 48, 32>}, {transform_indices = @transform_1, window_bounds = array<i64: 32, 96>}, {transform_indices = @transform_2, window_bounds = array<i64: 48, 96>}]} {
    %c0_i32 = arith.constant 0 : i32
    %0 = arith.cmpi eq, %arg2, %c0_i32 : i32
    %1 = arith.extui %0 : i1 to i32
    %c0_i32_0 = arith.constant 0 : i32
    %2 = arith.cmpi ne, %1, %c0_i32_0 : i32
    scf.if %2 {
      %cst_10 = arith.constant 0.000000e+00 : f32
      %12 = vector.broadcast %cst_10 : f32 to vector<48x96xf32>
      %c0_11 = arith.constant 0 : index
      %c0_12 = arith.constant 0 : index
      %13 = vector.load %arg6[%c0_11, %c0_12] : memref<48x96xf32, #tpu.memory_space<vmem>>, vector<48x96xf32>
      tpu.vector_store %arg6[%c0_11, %c0_12], %12 {strides = array<i32>} : memref<48x96xf32, #tpu.memory_space<vmem>>, vector<48x96xf32>,
    } else {
    }
    %c0 = arith.constant 0 : index
    %c0_1 = arith.constant 0 : index
    %3 = vector.load %arg6[%c0, %c0_1] : memref<48x96xf32, #tpu.memory_space<vmem>>, vector<48x96xf32>
    %c0_2 = arith.constant 0 : index
    %c0_3 = arith.constant 0 : index
    %4 = vector.load %arg3[%c0_2, %c0_3] : memref<48x32xbf16, #tpu.memory_space<vmem>>, vector<48x32xbf16>
    %c0_4 = arith.constant 0 : index
    %c0_5 = arith.constant 0 : index
    %5 = vector.load %arg4[%c0_4, %c0_5] : memref<32x96xbf16, #tpu.memory_space<vmem>>, vector<32x96xbf16>
    %cst = arith.constant dense<0.000000e+00> : vector<48x96xf32>
    %6 = tpu.matmul %4, %5, %cst {dimension_numbers = #tpu.dot_dimension_numbers<[1], [0], [0], [1], [0, 0, 1, 1], [], []>} : vector<48x32xbf16>, vector<32x96xbf16>, vector<48x96xf32> -> vector<48x96xf32>
    %7 = arith.addf %3, %6 : vector<48x96xf32>
    %c0_6 = arith.constant 0 : index
    %c0_7 = arith.constant 0 : index
    %8 = vector.load %arg6[%c0_6, %c0_7] : memref<48x96xf32, #tpu.memory_space<vmem>>, vector<48x96xf32>
    tpu.vector_store %arg6[%c0_6, %c0_7], %7 {strides = array<i32>} : memref<48x96xf32, #tpu.memory_space<vmem>>, vector<48x96xf32>,
    %c0_i32_8 = arith.constant 0 : i32
    %9 = arith.cmpi eq, %arg2, %c0_i32_8 : i32
    %10 = arith.extui %9 : i1 to i32
    %c0_i32_9 = arith.constant 0 : i32
    %11 = arith.cmpi ne, %10, %c0_i32_9 : i32
    scf.if %11 {
      %c0_10 = arith.constant 0 : index
      %c0_11 = arith.constant 0 : index
      %12 = vector.load %arg6[%c0_10, %c0_11] : memref<48x96xf32, #tpu.memory_space<vmem>>, vector<48x96xf32>
      %13 = arith.truncf %12 : vector<48x96xf32> to vector<48x96xbf16>
      %c0_12 = arith.constant 0 : index
      %c0_13 = arith.constant 0 : index
      %14 = vector.load %arg5[%c0_12, %c0_13] : memref<48x96xbf16, #tpu.memory_space<vmem>>, vector<48x96xbf16>
      tpu.vector_store %arg5[%c0_12, %c0_13], %13 {strides = array<i32>} : memref<48x96xbf16, #tpu.memory_space<vmem>>, vector<48x96xbf16>,
    } else {
    }
    return
  }
  func.func @transform_0(%arg0: i32, %arg1: i32, %arg2: i32) -> (i32, i32) {
    %c0_i32 = arith.constant 0 : i32
    return %arg0, %arg2 : i32, i32
  }
  func.func @transform_1(%arg0: i32, %arg1: i32, %arg2: i32) -> (i32, i32) {
    %c0_i32 = arith.constant 0 : i32
    return %arg2, %arg1 : i32, i32
  }
  func.func @transform_2(%arg0: i32, %arg1: i32, %arg2: i32) -> (i32, i32) {
    %c0_i32 = arith.constant 0 : i32
    return %arg0, %arg1 : i32, i32
  }
}

module attributes {stable_mosaic.version = 11 : i64} {
  func.func @_attn_kernel(%arg0: i32, %arg1: i32, %arg2: memref<1x12x24x8xbf16, #tpu.memory_space<vmem>>, %arg3: memref<1x24x32xbf16, #tpu.memory_space<vmem>>) attributes {dimension_semantics = [#tpu.dimension_semantics<parallel>, #tpu.dimension_semantics<parallel>], iteration_bounds = array<i64: 2, 1>, scalar_prefetch = 0 : i64, scratch_operands = 0 : i64, tpu.core_type = #tpu.core_type<tc>, window_params = [{transform_indices = @transform_0, window_bounds = array<i64: 1, 12, 24, 8>}, {transform_indices = @transform_1, window_bounds = array<i64: 1, 24, 32>}]} {
    %c0 = arith.constant 0 : index
    %c0_0 = arith.constant 0 : index
    %c0_1 = arith.constant 0 : index
    %c0_2 = arith.constant 0 : index
    %0 = vector.load %arg2[%c0, %c0_0, %c0_1, %c0_2] : memref<1x12x24x8xbf16, #tpu.memory_space<vmem>>, vector<1x4x24x8xbf16>
    %1 = vector.shape_cast %0 : vector<1x4x24x8xbf16> to vector<4x24x8xbf16>
    %c0_3 = arith.constant 0 : index
    %c4 = arith.constant 4 : index
    %c0_4 = arith.constant 0 : index
    %c0_5 = arith.constant 0 : index
    %2 = vector.load %arg2[%c0_3, %c4, %c0_4, %c0_5] : memref<1x12x24x8xbf16, #tpu.memory_space<vmem>>, vector<1x4x24x8xbf16>
    %3 = vector.shape_cast %2 : vector<1x4x24x8xbf16> to vector<4x24x8xbf16>
    %c0_6 = arith.constant 0 : index
    %c8 = arith.constant 8 : index
    %c0_7 = arith.constant 0 : index
    %c0_8 = arith.constant 0 : index
    %4 = vector.load %arg2[%c0_6, %c8, %c0_7, %c0_8] : memref<1x12x24x8xbf16, #tpu.memory_space<vmem>>, vector<1x4x24x8xbf16>
    %5 = vector.shape_cast %4 : vector<1x4x24x8xbf16> to vector<4x24x8xbf16>
    "tpu.trace_start"() <{level = 10 : i32, message = "hqd,hkd->hqk"}> : () -> ()
    %cst = arith.constant dense<0.000000e+00> : vector<4x24x24xf32>
    %6 = tpu.matmul %1, %3, %cst {dimension_numbers = #tpu.dot_dimension_numbers<[2], [2], [1], [1], [0, 0, 0, 1, 1, 1], [0], [0]>} : vector<4x24x8xbf16>, vector<4x24x8xbf16>, vector<4x24x24xf32> -> vector<4x24x24xf32>
    "tpu.trace_stop"() : () -> ()
    %cst_9 = arith.constant 2.82842708 : f32
    %7 = vector.broadcast %cst_9 : f32 to vector<4x24x24xf32>
    %8 = arith.mulf %6, %7 : vector<4x24x24xf32>
    %9 = tpu.iota {dimensions = array<i32: 2>} : vector<4x24x24xi32>
    %c17_i32 = arith.constant 17 : i32
    %10 = vector.broadcast %c17_i32 : i32 to vector<4x24x24xi32>
    %11 = arith.cmpi slt, %9, %10 : vector<4x24x24xi32>
    %cst_10 = arith.constant -1.000000e+30 : f32
    %12 = vector.broadcast %cst_10 : f32 to vector<4x24x24xf32>
    %13 = arith.select %11, %8, %12 : vector<4x24x24xi1>, vector<4x24x24xf32>
    %cst_11 = arith.constant dense<0xFF800000> : vector<4x24xf32>
    %14 = vector.multi_reduction <maximumf>, %13, %cst_11 [2] : vector<4x24x24xf32> to vector<4x24xf32>
    %15 = vector.shape_cast %14 : vector<4x24xf32> to vector<4x24x1xf32>
    %16 = vector.broadcast %15 : vector<4x24x1xf32> to vector<4x24x24xf32>
    %17 = arith.subf %13, %16 : vector<4x24x24xf32>
    %18 = math.exp %17 : vector<4x24x24xf32>
    %cst_12 = arith.constant dense<0.000000e+00> : vector<4x24xf32>
    %19 = vector.multi_reduction <add>, %18, %cst_12 [2] : vector<4x24x24xf32> to vector<4x24xf32>
    %20 = vector.shape_cast %19 : vector<4x24xf32> to vector<4x24x1xf32>
    %21 = vector.broadcast %20 : vector<4x24x1xf32> to vector<4x24x24xf32>
    %22 = arith.divf %18, %21 : vector<4x24x24xf32>
    %23 = arith.truncf %22 : vector<4x24x24xf32> to vector<4x24x24xbf16>
    "tpu.trace_start"() <{level = 10 : i32, message = "hqk,hkd->hqd"}> : () -> ()
    %cst_13 = arith.constant dense<0.000000e+00> : vector<4x24x8xf32>
    %24 = tpu.matmul %23, %5, %cst_13 {dimension_numbers = #tpu.dot_dimension_numbers<[2], [1], [1], [2], [0, 0, 0, 1, 1, 2], [0], [0]>} : vector<4x24x24xbf16>, vector<4x24x8xbf16>, vector<4x24x8xf32> -> vector<4x24x8xf32>
    "tpu.trace_stop"() : () -> ()
    %25 = vector.extract_strided_slice %24 {offsets = [0, 0, 0], sizes = [1, 24, 8], strides = [1, 1, 1]} : vector<4x24x8xf32> to vector<1x24x8xf32>
    %26 = vector.shape_cast %25 : vector<1x24x8xf32> to vector<24x8xf32>
    %27 = arith.truncf %26 : vector<24x8xf32> to vector<24x8xbf16>
    %c0_14 = arith.constant 0 : index
    %c0_15 = arith.constant 0 : index
    %c0_16 = arith.constant 0 : index
    %28 = vector.load %arg3[%c0_14, %c0_15, %c0_16] : memref<1x24x32xbf16, #tpu.memory_space<vmem>>, vector<1x24x8xbf16>
    %29 = vector.shape_cast %28 : vector<1x24x8xbf16> to vector<24x8xbf16>
    %30 = vector.shape_cast %27 : vector<24x8xbf16> to vector<1x24x8xbf16>
    tpu.vector_store %arg3[%c0_14, %c0_15, %c0_16], %30 {strides = array<i32>} : memref<1x24x32xbf16, #tpu.memory_space<vmem>>, vector<1x24x8xbf16>,
    %31 = vector.extract_strided_slice %24 {offsets = [1, 0, 0], sizes = [1, 24, 8], strides = [1, 1, 1]} : vector<4x24x8xf32> to vector<1x24x8xf32>
    %32 = vector.shape_cast %31 : vector<1x24x8xf32> to vector<24x8xf32>
    %33 = arith.truncf %32 : vector<24x8xf32> to vector<24x8xbf16>
    %c0_17 = arith.constant 0 : index
    %c0_18 = arith.constant 0 : index
    %c8_19 = arith.constant 8 : index
    %34 = vector.load %arg3[%c0_17, %c0_18, %c8_19] : memref<1x24x32xbf16, #tpu.memory_space<vmem>>, vector<1x24x8xbf16>
    %35 = vector.shape_cast %34 : vector<1x24x8xbf16> to vector<24x8xbf16>
    %36 = vector.shape_cast %33 : vector<24x8xbf16> to vector<1x24x8xbf16>
    tpu.vector_store %arg3[%c0_17, %c0_18, %c8_19], %36 {strides = array<i32>} : memref<1x24x32xbf16, #tpu.memory_space<vmem>>, vector<1x24x8xbf16>,
    %37 = vector.extract_strided_slice %24 {offsets = [2, 0, 0], sizes = [1, 24, 8], strides = [1, 1, 1]} : vector<4x24x8xf32> to vector<1x24x8xf32>
    %38 = vector.shape_cast %37 : vector<1x24x8xf32> to vector<24x8xf32>
    %39 = arith.truncf %38 : vector<24x8xf32> to vector<24x8xbf16>
    %c0_20 = arith.constant 0 : index
    %c0_21 = arith.constant 0 : index
    %c16 = arith.constant 16 : index
    %40 = vector.load %arg3[%c0_20, %c0_21, %c16] : memref<1x24x32xbf16, #tpu.memory_space<vmem>>, vector<1x24x8xbf16>
    %41 = vector.shape_cast %40 : vector<1x24x8xbf16> to vector<24x8xbf16>
    %42 = vector.shape_cast %39 : vector<24x8xbf16> to vector<1x24x8xbf16>
    tpu.vector_store %arg3[%c0_20, %c0_21, %c16], %42 {strides = array<i32>} : memref<1x24x32xbf16, #tpu.memory_space<vmem>>, vector<1x24x8xbf16>,
    %43 = vector.extract_strided_slice %24 {offsets = [3, 0, 0], sizes = [1, 24, 8], strides = [1, 1, 1]} : vector<4x24x8xf32> to vector<1x24x8xf32>
    %44 = vector.shape_cast %43 : vector<1x24x8xf32> to vector<24x8xf32>
    %45 = arith.truncf %44 : vector<24x8xf32> to vector<24x8xbf16>
    %c0_22 = arith.constant 0 : index
    %c0_23 = arith.constant 0 : index
    %c24 = arith.constant 24 : index
    %46 = vector.load %arg3[%c0_22, %c0_23, %c24] : memref<1x24x32xbf16, #tpu.memory_space<vmem>>, vector<1x24x8xbf16>
    %47 = vector.shape_cast %46 : vector<1x24x8xbf16> to vector<24x8xbf16>
    %48 = vector.shape_cast %45 : vector<24x8xbf16> to vector<1x24x8xbf16>
    tpu.vector_store %arg3[%c0_22, %c0_23, %c24], %48 {strides = array<i32>} : memref<1x24x32xbf16, #tpu.memory_space<vmem>>, vector<1x24x8xbf16>,
    return
  }
  func.func @transform_0(%arg0: i32, %arg1: i32) -> (i32, i32, i32, i32) {
    %c0_i32 = arith.constant 0 : i32
    %c0_i32_0 = arith.constant 0 : i32
    %c0_i32_1 = arith.constant 0 : i32
    %c0_i32_2 = arith.constant 0 : i32
    return %arg0, %c0_i32, %c0_i32_0, %c0_i32_1 : i32, i32, i32, i32
  }
  func.func @transform_1(%arg0: i32, %arg1: i32) -> (i32, i32, i32) {
    %c0_i32 = arith.constant 0 : i32
    %c0_i32_0 = arith.constant 0 : i32
    return %arg0, %arg1, %c0_i32 : i32, i32, i32
  }
}

module attributes {stable_mosaic.version = 11 : i64} {
  func.func @_linear_ln_kernel(%arg0: i32, %arg1: i32, %arg2: memref<48x32xbf16, #tpu.memory_space<vmem>>, %arg3: memref<32x32xbf16, #tpu.memory_space<vmem>>, %arg4: memref<48x32xbf16, #tpu.memory_space<vmem>>, %arg5: memref<1x32xf32, #tpu.memory_space<vmem>>, %arg6: memref<1x32xf32, #tpu.memory_space<vmem>>, %arg7: memref<48x32xbf16, #tpu.memory_space<vmem>>, %arg8: memref<48x32xf32, #tpu.memory_space<vmem>>) attributes {dimension_semantics = [#tpu.dimension_semantics<parallel>, #tpu.dimension_semantics<arbitrary>], iteration_bounds = array<i64: 1, 1>, scalar_prefetch = 0 : i64, scratch_operands = 1 : i64, tpu.core_type = #tpu.core_type<tc>, window_params = [{transform_indices = @transform_0, window_bounds = array<i64: 48, 32>}, {transform_indices = @transform_1, window_bounds = array<i64: 32, 32>}, {transform_indices = @transform_2, window_bounds = array<i64: 48, 32>}, {pipeline_mode = #tpu.pipeline_mode<synchronous>, transform_indices = @transform_3, window_bounds = array<i64: 1, 32>}, {pipeline_mode = #tpu.pipeline_mode<synchronous>, transform_indices = @transform_4, window_bounds = array<i64: 1, 32>}, {transform_indices = @transform_5, window_bounds = array<i64: 48, 32>}]} {
    %c0_i32 = arith.constant 0 : i32
    %0 = arith.cmpi eq, %arg1, %c0_i32 : i32
    %1 = arith.extui %0 : i1 to i32
    %c0_i32_0 = arith.constant 0 : i32
    %2 = arith.cmpi ne, %1, %c0_i32_0 : i32
    scf.if %2 {
      %cst_10 = arith.constant 0.000000e+00 : f32
      %12 = vector.broadcast %cst_10 : f32 to vector<48x32xf32>
      %c0_11 = arith.constant 0 : index
      %c0_12 = arith.constant 0 : index
      %13 = vector.load %arg8[%c0_11, %c0_12] : memref<48x32xf32, #tpu.memory_space<vmem>>, vector<48x32xf32>
      tpu.vector_store %arg8[%c0_11, %c0_12], %12 {strides = array<i32>} : memref<48x32xf32, #tpu.memory_space<vmem>>, vector<48x32xf32>,
    } else {
    }
    %c0 = arith.constant 0 : index
    %c0_1 = arith.constant 0 : index
    %3 = vector.load %arg8[%c0, %c0_1] : memref<48x32xf32, #tpu.memory_space<vmem>>, vector<48x32xf32>
    %c0_2 = arith.constant 0 : index
    %c0_3 = arith.constant 0 : index
    %4 = vector.load %arg2[%c0_2, %c0_3] : memref<48x32xbf16, #tpu.memory_space<vmem>>, vector<48x32xbf16>
    %c0_4 = arith.constant 0 : index
    %c0_5 = arith.constant 0 : index
    %5 = vector.load %arg3[%c0_4, %c0_5] : memref<32x32xbf16, #tpu.memory_space<vmem>>, vector<32x32xbf16>
    %cst = arith.constant dense<0.000000e+00> : vector<48x32xf32>
    %6 = tpu.matmul %4, %5, %cst {dimension_numbers = #tpu.dot_dimension_numbers<[1], [0], [0], [1], [0, 0, 1, 1], [], []>} : vector<48x32xbf16>, vector<32x32xbf16>, vector<48x32xf32> -> vector<48x32xf32>
    %7 = arith.addf %3, %6 : vector<48x32xf32>
    %c0_6 = arith.constant 0 : index
    %c0_7 = arith.constant 0 : index
    %8 = vector.load %arg8[%c0_6, %c0_7] : memref<48x32xf32, #tpu.memory_space<vmem>>, vector<48x32xf32>
    tpu.vector_store %arg8[%c0_6, %c0_7], %7 {strides = array<i32>} : memref<48x32xf32, #tpu.memory_space<vmem>>, vector<48x32xf32>,
    %c0_i32_8 = arith.constant 0 : i32
    %9 = arith.cmpi eq, %arg1, %c0_i32_8 : i32
    %10 = arith.extui %9 : i1 to i32
    %c0_i32_9 = arith.constant 0 : i32
    %11 = arith.cmpi ne, %10, %c0_i32_9 : i32
    scf.if %11 {
      %c0_10 = arith.constant 0 : index
      %c0_11 = arith.constant 0 : index
      %12 = vector.load %arg8[%c0_10, %c0_11] : memref<48x32xf32, #tpu.memory_space<vmem>>, vector<48x32xf32>
      %c0_12 = arith.constant 0 : index
      %c0_13 = arith.constant 0 : index
      %13 = vector.load %arg4[%c0_12, %c0_13] : memref<48x32xbf16, #tpu.memory_space<vmem>>, vector<48x32xbf16>
      %14 = arith.extf %13 : vector<48x32xbf16> to vector<48x32xf32>
      %15 = arith.addf %12, %14 : vector<48x32xf32>
      %cst_14 = arith.constant dense<0.000000e+00> : vector<48xf32>
      %16 = vector.multi_reduction <add>, %15, %cst_14 [1] : vector<48x32xf32> to vector<48xf32>
      %17 = vector.shape_cast %16 : vector<48xf32> to vector<48x1xf32>
      %cst_15 = arith.constant 3.200000e+01 : f32
      %18 = vector.broadcast %cst_15 : f32 to vector<48x1xf32>
      %19 = arith.divf %17, %18 : vector<48x1xf32>
      %20 = vector.broadcast %19 : vector<48x1xf32> to vector<48x32xf32>
      %21 = arith.subf %15, %20 : vector<48x32xf32>
      %22 = arith.mulf %21, %21 : vector<48x32xf32>
      %cst_16 = arith.constant dense<0.000000e+00> : vector<48xf32>
      %23 = vector.multi_reduction <add>, %22, %cst_16 [1] : vector<48x32xf32> to vector<48xf32>
      %24 = vector.shape_cast %23 : vector<48xf32> to vector<48x1xf32>
      %cst_17 = arith.constant 3.200000e+01 : f32
      %25 = vector.broadcast %cst_17 : f32 to vector<48x1xf32>
      %26 = arith.divf %24, %25 : vector<48x1xf32>
      %27 = vector.broadcast %19 : vector<48x1xf32> to vector<48x32xf32>
      %28 = arith.subf %15, %27 : vector<48x32xf32>
      %cst_18 = arith.constant 9.99999974E-6 : f32
      %29 = vector.broadcast %cst_18 : f32 to vector<48x1xf32>
      %30 = arith.addf %26, %29 : vector<48x1xf32>
      %31 = math.rsqrt %30 : vector<48x1xf32>
      %32 = vector.broadcast %31 : vector<48x1xf32> to vector<48x32xf32>
      %33 = arith.mulf %28, %32 : vector<48x32xf32>
      %c0_19 = arith.constant 0 : index
      %c0_20 = arith.constant 0 : index
      %34 = vector.load %arg5[%c0_19, %c0_20] : memref<1x32xf32, #tpu.memory_space<vmem>>, vector<1x32xf32>
      %35 = vector.broadcast %34 : vector<1x32xf32> to vector<48x32xf32>
      %36 = arith.mulf %33, %35 : vector<48x32xf32>
      %c0_21 = arith.constant 0 : index
      %c0_22 = arith.constant 0 : index
      %37 = vector.load %arg6[%c0_21, %c0_22] : memref<1x32xf32, #tpu.memory_space<vmem>>, vector<1x32xf32>
      %38 = vector.broadcast %37 : vector<1x32xf32> to vector<48x32xf32>
      %39 = arith.addf %36, %38 : vector<48x32xf32>
      %40 = arith.truncf %39 : vector<48x32xf32> to vector<48x32xbf16>
      %c0_23 = arith.constant 0 : index
      %c0_24 = arith.constant 0 : index
      %41 = vector.load %arg7[%c0_23, %c0_24] : memref<48x32xbf16, #tpu.memory_space<vmem>>, vector<48x32xbf16>
      tpu.vector_store %arg7[%c0_23, %c0_24], %40 {strides = array<i32>} : memref<48x32xbf16, #tpu.memory_space<vmem>>, vector<48x32xbf16>,
    } else {
    }
    return
  }
  func.func @transform_0(%arg0: i32, %arg1: i32) -> (i32, i32) {
    %c0_i32 = arith.constant 0 : i32
    return %arg0, %arg1 : i32, i32
  }
  func.func @transform_1(%arg0: i32, %arg1: i32) -> (i32, i32) {
    %c0_i32 = arith.constant 0 : i32
    %c0_i32_0 = arith.constant 0 : i32
    return %arg1, %c0_i32 : i32, i32
  }
  func.func @transform_2(%arg0: i32, %arg1: i32) -> (i32, i32) {
    %c0_i32 = arith.constant 0 : i32
    %c0_i32_0 = arith.constant 0 : i32
    return %arg0, %c0_i32 : i32, i32
  }
  func.func @transform_3(%arg0: i32, %arg1: i32) -> (i32, i32) {
    %c0_i32 = arith.constant 0 : i32
    %c0_i32_0 = arith.constant 0 : i32
    %c0_i32_1 = arith.constant 0 : i32
    return %c0_i32, %c0_i32_0 : i32, i32
  }
  func.func @transform_4(%arg0: i32, %arg1: i32) -> (i32, i32) {
    %c0_i32 = arith.constant 0 : i32
    %c0_i32_0 = arith.constant 0 : i32
    %c0_i32_1 = arith.constant 0 : i32
    return %c0_i32, %c0_i32_0 : i32, i32
  }
  func.func @transform_5(%arg0: i32, %arg1: i32) -> (i32, i32) {
    %c0_i32 = arith.constant 0 : i32
    %c0_i32_0 = arith.constant 0 : i32
    return %arg0, %c0_i32 : i32, i32
  }
}

module attributes {stable_mosaic.version = 11 : i64} {
  func.func @_linear_kernel(%arg0: i32, %arg1: i32, %arg2: i32, %arg3: memref<48x32xbf16, #tpu.memory_space<vmem>>, %arg4: memref<32x64xbf16, #tpu.memory_space<vmem>>, %arg5: memref<1x64xf32, #tpu.memory_space<vmem>>, %arg6: memref<48x64xbf16, #tpu.memory_space<vmem>>, %arg7: memref<48x64xf32, #tpu.memory_space<vmem>>) attributes {dimension_semantics = [#tpu.dimension_semantics<parallel>, #tpu.dimension_semantics<parallel>, #tpu.dimension_semantics<arbitrary>], iteration_bounds = array<i64: 1, 1, 1>, scalar_prefetch = 0 : i64, scratch_operands = 1 : i64, tpu.core_type = #tpu.core_type<tc>, window_params = [{transform_indices = @transform_0, window_bounds = array<i64: 48, 32>}, {transform_indices = @transform_1, window_bounds = array<i64: 32, 64>}, {transform_indices = @transform_2, window_bounds = array<i64: 1, 64>}, {transform_indices = @transform_3, window_bounds = array<i64: 48, 64>}]} {
    %c0_i32 = arith.constant 0 : i32
    %0 = arith.cmpi eq, %arg2, %c0_i32 : i32
    %1 = arith.extui %0 : i1 to i32
    %c0_i32_0 = arith.constant 0 : i32
    %2 = arith.cmpi ne, %1, %c0_i32_0 : i32
    scf.if %2 {
      %cst_10 = arith.constant 0.000000e+00 : f32
      %12 = vector.broadcast %cst_10 : f32 to vector<48x64xf32>
      %c0_11 = arith.constant 0 : index
      %c0_12 = arith.constant 0 : index
      %13 = vector.load %arg7[%c0_11, %c0_12] : memref<48x64xf32, #tpu.memory_space<vmem>>, vector<48x64xf32>
      tpu.vector_store %arg7[%c0_11, %c0_12], %12 {strides = array<i32>} : memref<48x64xf32, #tpu.memory_space<vmem>>, vector<48x64xf32>,
    } else {
    }
    %c0 = arith.constant 0 : index
    %c0_1 = arith.constant 0 : index
    %3 = vector.load %arg7[%c0, %c0_1] : memref<48x64xf32, #tpu.memory_space<vmem>>, vector<48x64xf32>
    %c0_2 = arith.constant 0 : index
    %c0_3 = arith.constant 0 : index
    %4 = vector.load %arg3[%c0_2, %c0_3] : memref<48x32xbf16, #tpu.memory_space<vmem>>, vector<48x32xbf16>
    %c0_4 = arith.constant 0 : index
    %c0_5 = arith.constant 0 : index
    %5 = vector.load %arg4[%c0_4, %c0_5] : memref<32x64xbf16, #tpu.memory_space<vmem>>, vector<32x64xbf16>
    %cst = arith.constant dense<0.000000e+00> : vector<48x64xf32>
    %6 = tpu.matmul %4, %5, %cst {dimension_numbers = #tpu.dot_dimension_numbers<[1], [0], [0], [1], [0, 0, 1, 1], [], []>} : vector<48x32xbf16>, vector<32x64xbf16>, vector<48x64xf32> -> vector<48x64xf32>
    %7 = arith.addf %3, %6 : vector<48x64xf32>
    %c0_6 = arith.constant 0 : index
    %c0_7 = arith.constant 0 : index
    %8 = vector.load %arg7[%c0_6, %c0_7] : memref<48x64xf32, #tpu.memory_space<vmem>>, vector<48x64xf32>
    tpu.vector_store %arg7[%c0_6, %c0_7], %7 {strides = array<i32>} : memref<48x64xf32, #tpu.memory_space<vmem>>, vector<48x64xf32>,
    %c0_i32_8 = arith.constant 0 : i32
    %9 = arith.cmpi eq, %arg2, %c0_i32_8 : i32
    %10 = arith.extui %9 : i1 to i32
    %c0_i32_9 = arith.constant 0 : i32
    %11 = arith.cmpi ne, %10, %c0_i32_9 : i32
    scf.if %11 {
      %c0_10 = arith.constant 0 : index
      %c0_11 = arith.constant 0 : index
      %12 = vector.load %arg7[%c0_10, %c0_11] : memref<48x64xf32, #tpu.memory_space<vmem>>, vector<48x64xf32>
      %c0_12 = arith.constant 0 : index
      %c0_13 = arith.constant 0 : index
      %13 = vector.load %arg5[%c0_12, %c0_13] : memref<1x64xf32, #tpu.memory_space<vmem>>, vector<1x64xf32>
      %14 = vector.broadcast %13 : vector<1x64xf32> to vector<48x64xf32>
      %15 = arith.addf %12, %14 : vector<48x64xf32>
      %cst_14 = arith.constant 5.000000e-01 : f32
      %16 = vector.broadcast %cst_14 : f32 to vector<48x64xf32>
      %17 = arith.mulf %16, %15 : vector<48x64xf32>
      %cst_15 = arith.constant 0.707106769 : f32
      %18 = vector.broadcast %cst_15 : f32 to vector<48x64xf32>
      %19 = arith.mulf %15, %18 : vector<48x64xf32>
      %20 = math.erf %19 : vector<48x64xf32>
      %cst_16 = arith.constant 1.000000e+00 : f32
      %21 = vector.broadcast %cst_16 : f32 to vector<48x64xf32>
      %22 = arith.addf %21, %20 : vector<48x64xf32>
      %23 = arith.mulf %17, %22 : vector<48x64xf32>
      %24 = arith.truncf %23 : vector<48x64xf32> to vector<48x64xbf16>
      %c0_17 = arith.constant 0 : index
      %c0_18 = arith.constant 0 : index
      %25 = vector.load %arg6[%c0_17, %c0_18] : memref<48x64xbf16, #tpu.memory_space<vmem>>, vector<48x64xbf16>
      tpu.vector_store %arg6[%c0_17, %c0_18], %24 {strides = array<i32>} : memref<48x64xbf16, #tpu.memory_space<vmem>>, vector<48x64xbf16>,
    } else {
    }
    return
  }
  func.func @transform_0(%arg0: i32, %arg1: i32, %arg2: i32) -> (i32, i32) {
    %c0_i32 = arith.constant 0 : i32
    return %arg0, %arg2 : i32, i32
  }
  func.func @transform_1(%arg0: i32, %arg1: i32, %arg2: i32) -> (i32, i32) {
    %c0_i32 = arith.constant 0 : i32
    return %arg2, %arg1 : i32, i32
  }
  func.func @transform_2(%arg0: i32, %arg1: i32, %arg2: i32) -> (i32, i32) {
    %c0_i32 = arith.constant 0 : i32
    %c0_i32_0 = arith.constant 0 : i32
    return %c0_i32, %arg1 : i32, i32
  }
  func.func @transform_3(%arg0: i32, %arg1: i32, %arg2: i32) -> (i32, i32) {
    %c0_i32 = arith.constant 0 : i32
    return %arg0, %arg1 : i32, i32
  }
}

module attributes {stable_mosaic.version = 11 : i64} {
  func.func @_linear_ln_kernel(%arg0: i32, %arg1: i32, %arg2: memref<48x64xbf16, #tpu.memory_space<vmem>>, %arg3: memref<64x32xbf16, #tpu.memory_space<vmem>>, %arg4: memref<1x32xf32, #tpu.memory_space<vmem>>, %arg5: memref<48x32xbf16, #tpu.memory_space<vmem>>, %arg6: memref<1x32xf32, #tpu.memory_space<vmem>>, %arg7: memref<1x32xf32, #tpu.memory_space<vmem>>, %arg8: memref<48x32xbf16, #tpu.memory_space<vmem>>, %arg9: memref<48x32xf32, #tpu.memory_space<vmem>>) attributes {dimension_semantics = [#tpu.dimension_semantics<parallel>, #tpu.dimension_semantics<arbitrary>], iteration_bounds = array<i64: 1, 1>, scalar_prefetch = 0 : i64, scratch_operands = 1 : i64, tpu.core_type = #tpu.core_type<tc>, window_params = [{transform_indices = @transform_0, window_bounds = array<i64: 48, 64>}, {transform_indices = @transform_1, window_bounds = array<i64: 64, 32>}, {pipeline_mode = #tpu.pipeline_mode<synchronous>, transform_indices = @transform_2, window_bounds = array<i64: 1, 32>}, {transform_indices = @transform_3, window_bounds = array<i64: 48, 32>}, {pipeline_mode = #tpu.pipeline_mode<synchronous>, transform_indices = @transform_4, window_bounds = array<i64: 1, 32>}, {pipeline_mode = #tpu.pipeline_mode<synchronous>, transform_indices = @transform_5, window_bounds = array<i64: 1, 32>}, {transform_indices = @transform_6, window_bounds = array<i64: 48, 32>}]} {
    %c0_i32 = arith.constant 0 : i32
    %0 = arith.cmpi eq, %arg1, %c0_i32 : i32
    %1 = arith.extui %0 : i1 to i32
    %c0_i32_0 = arith.constant 0 : i32
    %2 = arith.cmpi ne, %1, %c0_i32_0 : i32
    scf.if %2 {
      %cst_10 = arith.constant 0.000000e+00 : f32
      %12 = vector.broadcast %cst_10 : f32 to vector<48x32xf32>
      %c0_11 = arith.constant 0 : index
      %c0_12 = arith.constant 0 : index
      %13 = vector.load %arg9[%c0_11, %c0_12] : memref<48x32xf32, #tpu.memory_space<vmem>>, vector<48x32xf32>
      tpu.vector_store %arg9[%c0_11, %c0_12], %12 {strides = array<i32>} : memref<48x32xf32, #tpu.memory_space<vmem>>, vector<48x32xf32>,
    } else {
    }
    %c0 = arith.constant 0 : index
    %c0_1 = arith.constant 0 : index
    %3 = vector.load %arg9[%c0, %c0_1] : memref<48x32xf32, #tpu.memory_space<vmem>>, vector<48x32xf32>
    %c0_2 = arith.constant 0 : index
    %c0_3 = arith.constant 0 : index
    %4 = vector.load %arg2[%c0_2, %c0_3] : memref<48x64xbf16, #tpu.memory_space<vmem>>, vector<48x64xbf16>
    %c0_4 = arith.constant 0 : index
    %c0_5 = arith.constant 0 : index
    %5 = vector.load %arg3[%c0_4, %c0_5] : memref<64x32xbf16, #tpu.memory_space<vmem>>, vector<64x32xbf16>
    %cst = arith.constant dense<0.000000e+00> : vector<48x32xf32>
    %6 = tpu.matmul %4, %5, %cst {dimension_numbers = #tpu.dot_dimension_numbers<[1], [0], [0], [1], [0, 0, 1, 1], [], []>} : vector<48x64xbf16>, vector<64x32xbf16>, vector<48x32xf32> -> vector<48x32xf32>
    %7 = arith.addf %3, %6 : vector<48x32xf32>
    %c0_6 = arith.constant 0 : index
    %c0_7 = arith.constant 0 : index
    %8 = vector.load %arg9[%c0_6, %c0_7] : memref<48x32xf32, #tpu.memory_space<vmem>>, vector<48x32xf32>
    tpu.vector_store %arg9[%c0_6, %c0_7], %7 {strides = array<i32>} : memref<48x32xf32, #tpu.memory_space<vmem>>, vector<48x32xf32>,
    %c0_i32_8 = arith.constant 0 : i32
    %9 = arith.cmpi eq, %arg1, %c0_i32_8 : i32
    %10 = arith.extui %9 : i1 to i32
    %c0_i32_9 = arith.constant 0 : i32
    %11 = arith.cmpi ne, %10, %c0_i32_9 : i32
    scf.if %11 {
      %c0_10 = arith.constant 0 : index
      %c0_11 = arith.constant 0 : index
      %12 = vector.load %arg9[%c0_10, %c0_11] : memref<48x32xf32, #tpu.memory_space<vmem>>, vector<48x32xf32>
      %c0_12 = arith.constant 0 : index
      %c0_13 = arith.constant 0 : index
      %13 = vector.load %arg4[%c0_12, %c0_13] : memref<1x32xf32, #tpu.memory_space<vmem>>, vector<1x32xf32>
      %14 = vector.broadcast %13 : vector<1x32xf32> to vector<48x32xf32>
      %15 = arith.addf %12, %14 : vector<48x32xf32>
      %c0_14 = arith.constant 0 : index
      %c0_15 = arith.constant 0 : index
      %16 = vector.load %arg5[%c0_14, %c0_15] : memref<48x32xbf16, #tpu.memory_space<vmem>>, vector<48x32xbf16>
      %17 = arith.extf %16 : vector<48x32xbf16> to vector<48x32xf32>
      %18 = arith.addf %15, %17 : vector<48x32xf32>
      %cst_16 = arith.constant dense<0.000000e+00> : vector<48xf32>
      %19 = vector.multi_reduction <add>, %18, %cst_16 [1] : vector<48x32xf32> to vector<48xf32>
      %20 = vector.shape_cast %19 : vector<48xf32> to vector<48x1xf32>
      %cst_17 = arith.constant 3.200000e+01 : f32
      %21 = vector.broadcast %cst_17 : f32 to vector<48x1xf32>
      %22 = arith.divf %20, %21 : vector<48x1xf32>
      %23 = vector.broadcast %22 : vector<48x1xf32> to vector<48x32xf32>
      %24 = arith.subf %18, %23 : vector<48x32xf32>
      %25 = arith.mulf %24, %24 : vector<48x32xf32>
      %cst_18 = arith.constant dense<0.000000e+00> : vector<48xf32>
      %26 = vector.multi_reduction <add>, %25, %cst_18 [1] : vector<48x32xf32> to vector<48xf32>
      %27 = vector.shape_cast %26 : vector<48xf32> to vector<48x1xf32>
      %cst_19 = arith.constant 3.200000e+01 : f32
      %28 = vector.broadcast %cst_19 : f32 to vector<48x1xf32>
      %29 = arith.divf %27, %28 : vector<48x1xf32>
      %30 = vector.broadcast %22 : vector<48x1xf32> to vector<48x32xf32>
      %31 = arith.subf %18, %30 : vector<48x32xf32>
      %cst_20 = arith.constant 9.99999974E-6 : f32
      %32 = vector.broadcast %cst_20 : f32 to vector<48x1xf32>
      %33 = arith.addf %29, %32 : vector<48x1xf32>
      %34 = math.rsqrt %33 : vector<48x1xf32>
      %35 = vector.broadcast %34 : vector<48x1xf32> to vector<48x32xf32>
      %36 = arith.mulf %31, %35 : vector<48x32xf32>
      %c0_21 = arith.constant 0 : index
      %c0_22 = arith.constant 0 : index
      %37 = vector.load %arg6[%c0_21, %c0_22] : memref<1x32xf32, #tpu.memory_space<vmem>>, vector<1x32xf32>
      %38 = vector.broadcast %37 : vector<1x32xf32> to vector<48x32xf32>
      %39 = arith.mulf %36, %38 : vector<48x32xf32>
      %c0_23 = arith.constant 0 : index
      %c0_24 = arith.constant 0 : index
      %40 = vector.load %arg7[%c0_23, %c0_24] : memref<1x32xf32, #tpu.memory_space<vmem>>, vector<1x32xf32>
      %41 = vector.broadcast %40 : vector<1x32xf32> to vector<48x32xf32>
      %42 = arith.addf %39, %41 : vector<48x32xf32>
      %43 = arith.truncf %42 : vector<48x32xf32> to vector<48x32xbf16>
      %c0_25 = arith.constant 0 : index
      %c0_26 = arith.constant 0 : index
      %44 = vector.load %arg8[%c0_25, %c0_26] : memref<48x32xbf16, #tpu.memory_space<vmem>>, vector<48x32xbf16>
      tpu.vector_store %arg8[%c0_25, %c0_26], %43 {strides = array<i32>} : memref<48x32xbf16, #tpu.memory_space<vmem>>, vector<48x32xbf16>,
    } else {
    }
    return
  }
  func.func @transform_0(%arg0: i32, %arg1: i32) -> (i32, i32) {
    %c0_i32 = arith.constant 0 : i32
    return %arg0, %arg1 : i32, i32
  }
  func.func @transform_1(%arg0: i32, %arg1: i32) -> (i32, i32) {
    %c0_i32 = arith.constant 0 : i32
    %c0_i32_0 = arith.constant 0 : i32
    return %arg1, %c0_i32 : i32, i32
  }
  func.func @transform_2(%arg0: i32, %arg1: i32) -> (i32, i32) {
    %c0_i32 = arith.constant 0 : i32
    %c0_i32_0 = arith.constant 0 : i32
    %c0_i32_1 = arith.constant 0 : i32
    return %c0_i32, %c0_i32_0 : i32, i32
  }
  func.func @transform_3(%arg0: i32, %arg1: i32) -> (i32, i32) {
    %c0_i32 = arith.constant 0 : i32
    %c0_i32_0 = arith.constant 0 : i32
    return %arg0, %c0_i32 : i32, i32
  }
  func.func @transform_4(%arg0: i32, %arg1: i32) -> (i32, i32) {
    %c0_i32 = arith.constant 0 : i32
    %c0_i32_0 = arith.constant 0 : i32
    %c0_i32_1 = arith.constant 0 : i32
    return %c0_i32, %c0_i32_0 : i32, i32
  }
  func.func @transform_5(%arg0: i32, %arg1: i32) -> (i32, i32) {
    %c0_i32 = arith.constant 0 : i32
    %c0_i32_0 = arith.constant 0 : i32
    %c0_i32_1 = arith.constant 0 : i32
    return %c0_i32, %c0_i32_0 : i32, i32
  }
  func.func @transform_6(%arg0: i32, %arg1: i32) -> (i32, i32) {
    %c0_i32 = arith.constant 0 : i32
    %c0_i32_0 = arith.constant 0 : i32
    return %arg0, %c0_i32 : i32, i32
  }
}

</mosaic_0001>

<llo_original>
// kernel: vit_forward.12
$region0: #{vit_forward.12}
  #allocation0 [shape = 'u32[]', space=smem, size = 0x4, offset = 0x4, fixed_abs, tag = 'smem constant byte address 0x4 - core index']
  #allocation1 [shape = 'u32[144,128]{1,0:T(1,128)}', space=vmem, size = 0x12000, scoped, tag = 'internal scratch']
  #allocation2 [shape = 'f32[48,96]{1,0:T(8,128)}', space=vmem, size = 0x6000, scoped, tag = 'scratch operand']
  %s0 = inlined_call_operand.hbm [shape: bf16[48,32], index: 0, kind: input, shape index: {}]
  %s1 = inlined_call_operand.hbm [shape: bf16[32,96], index: 1, kind: input, shape index: {}]
  %s2 = inlined_call_operand.hbm [shape: bf16[48,96], index: 2, kind: output, shape index: {}]
  %s3 = sld [smem:[#allocation0]]
  $region34: #{vit_forward.12} parent=0
    _
  %s5 = ssub.s32 1, %s3
  %s6 = scalar_select 0, %s5, %s3
  $region1: #{vit_forward.12} parent=0
    #allocation3 [shape = 'u8[12288]{0}', space=vmem, size = 0x3000, scoped, tag = 'input window, operand 0, single buffered']
    #allocation4 [shape = 's32[1]{0}', space=sflag, size = 0x4, scoped, tag = 'scoped memory for vit_forward.12']
    #allocation5 [shape = 's32[1]{0}', space=sflag, size = 0x4, scoped, tag = 'scoped memory for vit_forward.12']
    #allocation6 [shape = 'u8[8192]{0}', space=vmem, size = 0x2000, scoped, tag = 'input window, operand 1, single buffered']
    #allocation7 [shape = 's32[1]{0}', space=sflag, size = 0x4, scoped, tag = 'scoped memory for vit_forward.12']
    #allocation8 [shape = 'u8[12288]{0}', space=vmem, size = 0x3000, scoped, tag = 'output window, operand 0, single buffered']
    %7 = vsyncpa [#allocation4], 0
    %8 = vsyncpa [#allocation7], 0
    %9 = vsyncpa [#allocation5], 0
    // Predicated region
    $region2: #{vit_forward.12} parent=1 // pred_check
      _
    $region3: #{vit_forward.12} parent=1 // pred_check_branch
      %11 = sbr.rel (0) target = $region5
    $region4: #{vit_forward.12} parent=1 // pred_region
      %s13 = ssub.s32 384, 384
      %14 = vsyncadd [#allocation4], %s13
      %s15 = sshll.u32 [#allocation3], 4
      %s16 = int_to_ptr.vmem [resolvable:$true] %s15
      %21 = dma.hbm_to_vmem [thread:$0]  %s0, 384, %s16, [#allocation4], 64, 64, 4
    $region5: #{vit_forward.12} parent=1 // pred_fallthru
      _
    // Predicated region
    $region6: #{vit_forward.12} parent=1 // pred_check
      _
    $region7: #{vit_forward.12} parent=1 // pred_check_branch
      %23 = sbr.rel (0) target = $region9
    $region8: #{vit_forward.12} parent=1 // pred_region
      %s25 = ssub.s32 256, 256
      %26 = vsyncadd [#allocation7], %s25
      %s27 = sshll.u32 [#allocation6], 4
      %s28 = int_to_ptr.vmem [resolvable:$true] %s27
      %33 = dma.hbm_to_vmem [thread:$0]  %s1, 256, %s28, [#allocation7], 64, 64, 4
    $region9: #{vit_forward.12} parent=1 // pred_fallthru
      _
    // Predicated region
    $region10: #{vit_forward.12} parent=1 // pred_check
      _
    $region11: #{vit_forward.12} parent=1 // pred_check_branch
      %35 = sbr.rel (0) target = $region13
    $region12: #{vit_forward.12} parent=1 // pred_region
      %36 = dma.done [#allocation4], 384
    $region13: #{vit_forward.12} parent=1 // pred_fallthru
      _
    // Predicated region
    $region14: #{vit_forward.12} parent=1 // pred_check
      _
    $region15: #{vit_forward.12} parent=1 // pred_check_branch
      %38 = sbr.rel (0) target = $region17
    $region16: #{vit_forward.12} parent=1 // pred_region
      %39 = dma.done [#allocation7], 256
    $region17: #{vit_forward.12} parent=1 // pred_fallthru
      _
    %p41 = scmp.eq.s32.totalorder 0, 0
    // Predicated region
    $region18: #{vit_forward.12} parent=1 // pred_check
      %p42 = pneg %p41
    $region19: #{vit_forward.12} parent=1 // pred_check_branch
      %44 = sbr.rel (%p42) target = $region21
    $region20: #{vit_forward.12} parent=1 // pred_region
      %vm45 = vcmask 785408
      %46 = vst.msk [vmem:[#allocation2] sm:$0xff] %vm45, 0.0
      %47 = vst.msk [vmem:[#allocation2 + $0x8] sm:$0xff] %vm45, 0.0
      %48 = vst.msk [vmem:[#allocation2 + $0x10] sm:$0xff] %vm45, 0.0
      %49 = vst.msk [vmem:[#allocation2 + $0x18] sm:$0xff] %vm45, 0.0
      %50 = vst.msk [vmem:[#allocation2 + $0x20] sm:$0xff] %vm45, 0.0
      %51 = vst.msk [vmem:[#allocation2 + $0x28] sm:$0xff] %vm45, 0.0
    $region21: #{vit_forward.12} parent=1 // pred_fallthru
      _
    %v52 = vld [vmem:[#allocation2] sm:$0xff]
    %v53 = vld [vmem:[#allocation2 + $0x8] sm:$0xff]
    %v54 = vld [vmem:[#allocation2 + $0x10] sm:$0xff]
    %v55 = vld [vmem:[#allocation2 + $0x18] sm:$0xff]
    %v56 = vld [vmem:[#allocation2 + $0x20] sm:$0xff]
    %v57 = vld [vmem:[#allocation2 + $0x28] sm:$0xff]
    %v58 = vld [vmem:[#allocation3] sm:$0xf]
    %v59 = vld [vmem:[#allocation3 + $0x4] sm:$0xf]
    %v60 = vld [vmem:[#allocation3 + $0x8] sm:$0xf]
    %v61 = vld [vmem:[#allocation3 + $0xc] sm:$0xf]
    %v62 = vld [vmem:[#allocation3 + $0x10] sm:$0xf]
    %v63 = vld [vmem:[#allocation3 + $0x14] sm:$0xf]
    %v64 = vld [vmem:[#allocation6] sm:$0xf]
    %v65 = vld [vmem:[#allocation6 + $0x4] sm:$0xf]
    %v66 = vld [vmem:[#allocation6 + $0x8] sm:$0xf]
    %v67 = vld [vmem:[#allocation6 + $0xc] sm:$0xf]
    %v74 = vunpack.c.l.b16 %v58
    %v75 = vunpack.c.l.b16 %v59
    %v76 = vunpack.c.l.b16 %v60
    %v77 = vunpack.c.l.b16 %v61
    %v78 = vunpack.c.l.b16 %v62
    %v79 = vunpack.c.l.b16 %v63
    %v80 = vpack.c.b16 %v75, %v74
    %v81 = vpack.c.b16 %v77, %v76
    %v82 = vpack.c.b16 %v79, %v78
    %v87 = vunpack.c.l.b16 %v64
    %v88 = vunpack.c.l.b16 %v65
    %v89 = vunpack.c.l.b16 %v66
    %v90 = vunpack.c.l.b16 %v67
    %v91 = vpack.c.b16 %v88, %v87
    %v92 = vpack.c.b16 %v90, %v89
    %vm95 = vcmask 261120
    %v97 = vsel %vm95, %v80, 0
    %v100 = vsel %vm95, %v81, 0
    %v103 = vsel %vm95, %v82, 0
    %105 = vmatprep.subr.bf16.mxu0 0
    %106 = vmatpush1.bf16.msra.mxu0 %v91
    %107 = vmatprep.subr.bf16.mxu0 0
    %108 = vmatpush1.bf16.msra.mxu0 %v92
    %109 = vmatprep.subr.bf16.mxu0 0
    %110 = vmatpush1.bf16.msra.mxu0 0
    %111 = vmatprep.subr.bf16.mxu0 0
    %112 = vmatpush1.bf16.msra.mxu0 0
    %113 = vmatprep.subr.bf16.mxu0 0
    %114 = vmatpush1.bf16.msra.mxu0 0
    %115 = vmatprep.subr.bf16.mxu0 0
    %116 = vmatpush1.bf16.msra.mxu0 0
    %117 = vmatprep.subr.bf16.mxu0 0
    %118 = vmatpush1.bf16.msra.mxu0 0
    %119 = vmatprep.subr.bf16.mxu0 0
    %120 = vmatpush1.bf16.msra.mxu0 0
    %121 = vmatprep.subr.bf16.mxu0 0
    %122 = vmatpush1.bf16.msra.mxu0 0
    %123 = vmatprep.subr.bf16.mxu0 0
    %124 = vmatpush1.bf16.msra.mxu0 0
    %125 = vmatprep.subr.bf16.mxu0 0
    %126 = vmatpush1.bf16.msra.mxu0 0
    %127 = vmatprep.subr.bf16.mxu0 0
    %128 = vmatpush1.bf16.msra.mxu0 0
    %129 = vmatprep.subr.bf16.mxu0 0
    %130 = vmatpush1.bf16.msra.mxu0 0
    %131 = vmatprep.subr.bf16.mxu0 0
    %132 = vmatpush1.bf16.msra.mxu0 0
    %133 = vmatprep.subr.bf16.mxu0 0
    %134 = vmatpush1.bf16.msra.mxu0 0
    %135 = vmatprep.subr.bf16.mxu0 0
    %136 = vmatpush1.bf16.msra.mxu0 0
    %137 = vmatprep.mubr.bf16.mxu0 0
    %138 = vmatmul.mubr.bf16.gmra.mrb[0].mxu0 %v97
    %v139 = vpop.f32.mrb[0].mxu0
    %v140 = vadd.f32 0.0, %v139
    %v141 = vpop.f32.mrb[0].mxu0
    %v142 = vpop.f32.mrb[0].mxu0
    %v143 = vadd.f32 0.0, %v142
    %v144 = vpop.f32.mrb[0].mxu0
    %145 = vmatprep.mubr.bf16.mxu0 0
    %146 = vmatmul.mubr.bf16.gmra.mrb[0].mxu0 %v100
    %v147 = vpop.f32.mrb[0].mxu0
    %v148 = vadd.f32 0.0, %v147
    %v149 = vpop.f32.mrb[0].mxu0
    %v150 = vpop.f32.mrb[0].mxu0
    %v151 = vadd.f32 0.0, %v150
    %v152 = vpop.f32.mrb[0].mxu0
    %153 = vmatprep.mubr.bf16.mxu0 0
    %154 = vmatmul.mubr.bf16.gmra.mrb[0].mxu0 %v103
    %v155 = vpop.f32.mrb[0].mxu0
    %v156 = vadd.f32 0.0, %v155
    %v157 = vpop.f32.mrb[0].mxu0
    %v158 = vpop.f32.mrb[0].mxu0
    %v159 = vadd.f32 0.0, %v158
    %v160 = vpop.f32.mrb[0].mxu0
    %161 = vdwg.mxu0
    %v162 = vadd.f32 %v52, %v140
    %v163 = vadd.f32 %v53, %v143
    %v164 = vadd.f32 %v54, %v148
    %v165 = vadd.f32 %v55, %v151
    %v166 = vadd.f32 %v56, %v156
    %v167 = vadd.f32 %v57, %v159
    %vm168 = vcmask 785408
    %169 = vst.msk [vmem:[#allocation2] sm:$0xff] %vm168, %v162
    %170 = vst.msk [vmem:[#allocation2 + $0x8] sm:$0xff] %vm168, %v163
    %171 = vst.msk [vmem:[#allocation2 + $0x10] sm:$0xff] %vm168, %v164
    %172 = vst.msk [vmem:[#allocation2 + $0x18] sm:$0xff] %vm168, %v165
    %173 = vst.msk [vmem:[#allocation2 + $0x20] sm:$0xff] %vm168, %v166
    %174 = vst.msk [vmem:[#allocation2 + $0x28] sm:$0xff] %vm168, %v167
    // Predicated region
    $region22: #{vit_forward.12} parent=1 // pred_check
      %p175 = pneg %p41
    $region23: #{vit_forward.12} parent=1 // pred_check_branch
      %177 = sbr.rel (%p175) target = $region25
    $region24: #{vit_forward.12} parent=1 // pred_region
      %v178 = vld [vmem:[#allocation2] sm:$0xff]
      %v179 = vld [vmem:[#allocation2 + $0x8] sm:$0xff]
      %v180 = vld [vmem:[#allocation2 + $0x10] sm:$0xff]
      %v181 = vld [vmem:[#allocation2 + $0x18] sm:$0xff]
      %v182 = vld [vmem:[#allocation2 + $0x20] sm:$0xff]
      %v183 = vld [vmem:[#allocation2 + $0x28] sm:$0xff]
      %v184 = vpack.c.bf16 %v179, %v178
      %v185 = vpack.c.bf16 %v181, %v180
      %v186 = vpack.c.bf16 %v183, %v182
      %v190 = vunpack.c.l.b16 %v184
      %v191 = vunpack.c.h.b16 %v184
      %v192 = vunpack.c.l.b16 %v185
      %v193 = vunpack.c.h.b16 %v185
      %v194 = vunpack.c.l.b16 %v186
      %v195 = vunpack.c.h.b16 %v186
      %v196 = vpack.c.b16 %v190, %v190
      %v197 = vpack.c.b16 %v191, %v191
      %v198 = vpack.c.b16 %v192, %v192
      %v199 = vpack.c.b16 %v193, %v193
      %v200 = vpack.c.b16 %v194, %v194
      %v201 = vpack.c.b16 %v195, %v195
      %vm208 = vcmask 781312
      %209 = vst.msk [vmem:[#allocation8] sm:$0xf] %vm208, %v196
      %210 = vst.msk [vmem:[#allocation8 + $0x4] sm:$0xf] %vm208, %v197
      %211 = vst.msk [vmem:[#allocation8 + $0x8] sm:$0xf] %vm208, %v198
      %212 = vst.msk [vmem:[#allocation8 + $0xc] sm:$0xf] %vm208, %v199
      %213 = vst.msk [vmem:[#allocation8 + $0x10] sm:$0xf] %vm208, %v200
      %214 = vst.msk [vmem:[#allocation8 + $0x14] sm:$0xf] %vm208, %v201
    $region25: #{vit_forward.12} parent=1 // pred_fallthru
      _
    // Predicated region
    $region26: #{vit_forward.12} parent=1 // pred_check
      _
    $region27: #{vit_forward.12} parent=1 // pred_check_branch
      %216 = sbr.rel (0) target = $region29
    $region28: #{vit_forward.12} parent=1 // pred_region
      %s218 = ssub.s32 384, 384
      %219 = vsyncadd [#allocation5], %s218
      %s220 = sshll.u32 [#allocation8], 4
      %s221 = int_to_ptr.vmem [resolvable:$true] %s220
      %226 = dma.vmem_to_hbm [thread:$0]  %s221, 384, %s2, [#allocation5], 64, 64, 4
    $region29: #{vit_forward.12} parent=1 // pred_fallthru
      _
    // Predicated region
    $region30: #{vit_forward.12} parent=1 // pred_check
      _
    $region31: #{vit_forward.12} parent=1 // pred_check_branch
      %228 = sbr.rel (0) target = $region33
    $region32: #{vit_forward.12} parent=1 // pred_region
      %229 = dma.done [#allocation5], 384
    $region33: #{vit_forward.12} parent=1 // pred_fallthru
      _
    %230 = vsyncpa [#allocation4], 1
    %231 = vsyncpa [#allocation7], 1
    %232 = vsyncpa [#allocation5], 1

// kernel: vit_forward.11
$region0: #{vit_forward.11}
  #allocation0 [shape = 'u32[]', space=smem, size = 0x4, offset = 0x4, fixed_abs, tag = 'smem constant byte address 0x4 - core index']
  #allocation1 [shape = 'u32[144,128]{1,0:T(1,128)}', space=vmem, size = 0x12000, scoped, tag = 'internal scratch']
  #allocation2 [shape = 'f32[32,32]{1,0:T(8,128)}', space=vmem, size = 0x4000, scoped, tag = 'scratch operand']
  %s0 = inlined_call_operand.hbm [shape: bf16[32,64], index: 0, kind: input, shape index: {}]
  %s1 = inlined_call_operand.hbm [shape: bf16[64,32], index: 1, kind: input, shape index: {}]
  %s2 = inlined_call_operand.hbm [shape: f32[1,32], index: 2, kind: input, shape index: {}]
  %s3 = inlined_call_operand.hbm [shape: f32[32,32], index: 3, kind: output, shape index: {}]
  %s4 = sld [smem:[#allocation0]]
  $region42: #{vit_forward.11} parent=0
    _
  %s6 = ssub.s32 1, %s4
  %s7 = scalar_select 0, %s6, %s4
  $region1: #{vit_forward.11} parent=0
    #allocation3 [shape = 'u8[8192]{0}', space=vmem, size = 0x2000, scoped, tag = 'input window, operand 0, single buffered']
    #allocation4 [shape = 's32[1]{0}', space=sflag, size = 0x4, scoped, tag = 'scoped memory for vit_forward.11']
    #allocation5 [shape = 's32[1]{0}', space=sflag, size = 0x4, scoped, tag = 'scoped memory for vit_forward.11']
    #allocation6 [shape = 'u8[16384]{0}', space=vmem, size = 0x4000, scoped, tag = 'input window, operand 1, single buffered']
    #allocation7 [shape = 's32[1]{0}', space=sflag, size = 0x4, scoped, tag = 'scoped memory for vit_forward.11']
    #allocation8 [shape = 'u8[512]{0}', space=vmem, size = 0x400, scoped, tag = 'input window, operand 2, single buffered']
    #allocation9 [shape = 'u8[16384]{0}', space=vmem, size = 0x4000, scoped, tag = 'output window, operand 0, single buffered']
    %8 = vsyncpa [#allocation4], 0
    %9 = vsyncpa [#allocation7], 0
    %10 = vsyncpa [#allocation5], 0
    // Predicated region
    $region2: #{vit_forward.11} parent=1 // pred_check
      _
    $region3: #{vit_forward.11} parent=1 // pred_check_branch
      %12 = sbr.rel (0) target = $region5
    $region4: #{vit_forward.11} parent=1 // pred_region
      %s14 = ssub.s32 256, 256
      %15 = vsyncadd [#allocation4], %s14
      %s16 = sshll.u32 [#allocation3], 4
      %s17 = int_to_ptr.vmem [resolvable:$true] %s16
      %22 = dma.hbm_to_vmem [thread:$0]  %s0, 256, %s17, [#allocation4], 64, 64, 4
    $region5: #{vit_forward.11} parent=1 // pred_fallthru
      _
    // Predicated region
    $region6: #{vit_forward.11} parent=1 // pred_check
      _
    $region7: #{vit_forward.11} parent=1 // pred_check_branch
      %24 = sbr.rel (0) target = $region9
    $region8: #{vit_forward.11} parent=1 // pred_region
      %s26 = ssub.s32 512, 512
      %27 = vsyncadd [#allocation7], %s26
      %s28 = sshll.u32 [#allocation6], 4
      %s29 = int_to_ptr.vmem [resolvable:$true] %s28
      %34 = dma.hbm_to_vmem [thread:$0]  %s1, 512, %s29, [#allocation7], 64, 64, 4
    $region9: #{vit_forward.11} parent=1 // pred_fallthru
      _
    // Predicated region
    $region10: #{vit_forward.11} parent=1 // pred_check
      _
    $region11: #{vit_forward.11} parent=1 // pred_check_branch
      %36 = sbr.rel (0) target = $region13
    $region12: #{vit_forward.11} parent=1 // pred_region
      %s38 = ssub.s32 16, 16
      %39 = vsyncadd [#allocation7], %s38
      %s41 = sshll.u32 [#allocation8], 4
      %s42 = int_to_ptr.vmem [resolvable:$true] %s41
      %44 = dma.hbm_to_vmem [thread:$0]  %s2, 16, %s42, [#allocation7]
    $region13: #{vit_forward.11} parent=1 // pred_fallthru
      _
    // Predicated region
    $region14: #{vit_forward.11} parent=1 // pred_check
      _
    $region15: #{vit_forward.11} parent=1 // pred_check_branch
      %46 = sbr.rel (0) target = $region17
    $region16: #{vit_forward.11} parent=1 // pred_region
      %47 = dma.done [#allocation4], 256
    $region17: #{vit_forward.11} parent=1 // pred_fallthru
      _
    // Predicated region
    $region18: #{vit_forward.11} parent=1 // pred_check
      _
    $region19: #{vit_forward.11} parent=1 // pred_check_branch
      %49 = sbr.rel (0) target = $region21
    $region20: #{vit_forward.11} parent=1 // pred_region
      %50 = dma.done [#allocation7], 512
    $region21: #{vit_forward.11} parent=1 // pred_fallthru
      _
    // Predicated region
    $region22: #{vit_forward.11} parent=1 // pred_check
      _
    $region23: #{vit_forward.11} parent=1 // pred_check_branch
      %52 = sbr.rel (0) target = $region25
    $region24: #{vit_forward.11} parent=1 // pred_region
      %53 = dma.done [#allocation7], 16
    $region25: #{vit_forward.11} parent=1 // pred_fallthru
      _
    %p55 = scmp.eq.s32.totalorder 0, 0
    // Predicated region
    $region26: #{vit_forward.11} parent=1 // pred_check
      %p56 = pneg %p55
    $region27: #{vit_forward.11} parent=1 // pred_check_branch
      %58 = sbr.rel (%p56) target = $region29
    $region28: #{vit_forward.11} parent=1 // pred_region
      %vm59 = vcmask 261120
      %60 = vst.msk [vmem:[#allocation2] sm:$0xff] %vm59, 0.0
      %61 = vst.msk [vmem:[#allocation2 + $0x8] sm:$0xff] %vm59, 0.0
      %62 = vst.msk [vmem:[#allocation2 + $0x10] sm:$0xff] %vm59, 0.0
      %63 = vst.msk [vmem:[#allocation2 + $0x18] sm:$0xff] %vm59, 0.0
    $region29: #{vit_forward.11} parent=1 // pred_fallthru
      _
    %v64 = vld [vmem:[#allocation2] sm:$0xff]
    %v65 = vld [vmem:[#allocation2 + $0x8] sm:$0xff]
    %v66 = vld [vmem:[#allocation2 + $0x10] sm:$0xff]
    %v67 = vld [vmem:[#allocation2 + $0x18] sm:$0xff]
    %v68 = vld [vmem:[#allocation3] sm:$0xf]
    %v69 = vld [vmem:[#allocation3 + $0x4] sm:$0xf]
    %v70 = vld [vmem:[#allocation3 + $0x8] sm:$0xf]
    %v71 = vld [vmem:[#allocation3 + $0xc] sm:$0xf]
    %v72 = vld [vmem:[#allocation6] sm:$0xf]
    %v73 = vld [vmem:[#allocation6 + $0x4] sm:$0xf]
    %v74 = vld [vmem:[#allocation6 + $0x8] sm:$0xf]
    %v75 = vld [vmem:[#allocation6 + $0xc] sm:$0xf]
    %v76 = vld [vmem:[#allocation6 + $0x10] sm:$0xf]
    %v77 = vld [vmem:[#allocation6 + $0x14] sm:$0xf]
    %v78 = vld [vmem:[#allocation6 + $0x18] sm:$0xf]
    %v79 = vld [vmem:[#allocation6 + $0x1c] sm:$0xf]
    %v84 = vunpack.c.l.b16 %v68
    %v85 = vunpack.c.l.b16 %v69
    %v86 = vunpack.c.l.b16 %v70
    %v87 = vunpack.c.l.b16 %v71
    %v88 = vpack.c.b16 %v85, %v84
    %v89 = vpack.c.b16 %v87, %v86
    %v98 = vunpack.c.l.b16 %v72
    %v99 = vunpack.c.l.b16 %v73
    %v100 = vunpack.c.l.b16 %v74
    %v101 = vunpack.c.l.b16 %v75
    %v102 = vunpack.c.l.b16 %v76
    %v103 = vunpack.c.l.b16 %v77
    %v104 = vunpack.c.l.b16 %v78
    %v105 = vunpack.c.l.b16 %v79
    %v106 = vpack.c.b16 %v99, %v98
    %v107 = vpack.c.b16 %v101, %v100
    %v108 = vpack.c.b16 %v103, %v102
    %v109 = vpack.c.b16 %v105, %v104
    %vm114 = vcmask 523264
    %v116 = vsel %vm114, %v88, 0
    %v119 = vsel %vm114, %v89, 0
    %121 = vmatprep.subr.bf16.mxu0 0
    %122 = vmatpush1.bf16.msra.mxu0 %v106
    %123 = vmatprep.subr.bf16.mxu0 0
    %124 = vmatpush1.bf16.msra.mxu0 %v107
    %125 = vmatprep.subr.bf16.mxu0 0
    %126 = vmatpush1.bf16.msra.mxu0 %v108
    %127 = vmatprep.subr.bf16.mxu0 0
    %128 = vmatpush1.bf16.msra.mxu0 %v109
    %129 = vmatprep.subr.bf16.mxu0 0
    %130 = vmatpush1.bf16.msra.mxu0 0
    %131 = vmatprep.subr.bf16.mxu0 0
    %132 = vmatpush1.bf16.msra.mxu0 0
    %133 = vmatprep.subr.bf16.mxu0 0
    %134 = vmatpush1.bf16.msra.mxu0 0
    %135 = vmatprep.subr.bf16.mxu0 0
    %136 = vmatpush1.bf16.msra.mxu0 0
    %137 = vmatprep.subr.bf16.mxu0 0
    %138 = vmatpush1.bf16.msra.mxu0 0
    %139 = vmatprep.subr.bf16.mxu0 0
    %140 = vmatpush1.bf16.msra.mxu0 0
    %141 = vmatprep.subr.bf16.mxu0 0
    %142 = vmatpush1.bf16.msra.mxu0 0
    %143 = vmatprep.subr.bf16.mxu0 0
    %144 = vmatpush1.bf16.msra.mxu0 0
    %145 = vmatprep.subr.bf16.mxu0 0
    %146 = vmatpush1.bf16.msra.mxu0 0
    %147 = vmatprep.subr.bf16.mxu0 0
    %148 = vmatpush1.bf16.msra.mxu0 0
    %149 = vmatprep.subr.bf16.mxu0 0
    %150 = vmatpush1.bf16.msra.mxu0 0
    %151 = vmatprep.subr.bf16.mxu0 0
    %152 = vmatpush1.bf16.msra.mxu0 0
    %153 = vmatprep.mubr.bf16.mxu0 0
    %154 = vmatmul.mubr.bf16.gmra.mrb[0].mxu0 %v116
    %v155 = vpop.f32.mrb[0].mxu0
    %v156 = vadd.f32 0.0, %v155
    %v157 = vpop.f32.mrb[0].mxu0
    %v158 = vpop.f32.mrb[0].mxu0
    %v159 = vadd.f32 0.0, %v158
    %v160 = vpop.f32.mrb[0].mxu0
    %161 = vmatprep.mubr.bf16.mxu0 0
    %162 = vmatmul.mubr.bf16.gmra.mrb[0].mxu0 %v119
    %v163 = vpop.f32.mrb[0].mxu0
    %v164 = vadd.f32 0.0, %v163
    %v165 = vpop.f32.mrb[0].mxu0
    %v166 = vpop.f32.mrb[0].mxu0
    %v167 = vadd.f32 0.0, %v166
    %v168 = vpop.f32.mrb[0].mxu0
    %169 = vdwg.mxu0
    %v170 = vadd.f32 %v64, %v156
    %v171 = vadd.f32 %v65, %v159
    %v172 = vadd.f32 %v66, %v164
    %v173 = vadd.f32 %v67, %v167
    %vm174 = vcmask 261120
    %175 = vst.msk [vmem:[#allocation2] sm:$0xff] %vm174, %v170
    %176 = vst.msk [vmem:[#allocation2 + $0x8] sm:$0xff] %vm174, %v171
    %177 = vst.msk [vmem:[#allocation2 + $0x10] sm:$0xff] %vm174, %v172
    %178 = vst.msk [vmem:[#allocation2 + $0x18] sm:$0xff] %vm174, %v173
    // Predicated region
    $region30: #{vit_forward.11} parent=1 // pred_check
      %p179 = pneg %p55
    $region31: #{vit_forward.11} parent=1 // pred_check_branch
      %181 = sbr.rel (%p179) target = $region33
    $region32: #{vit_forward.11} parent=1 // pred_region
      %v182 = vld [vmem:[#allocation2] sm:$0xff]
      %v183 = vld [vmem:[#allocation2 + $0x8] sm:$0xff]
      %v184 = vld [vmem:[#allocation2 + $0x10] sm:$0xff]
      %v185 = vld [vmem:[#allocation2 + $0x18] sm:$0xff]
      %v186 = vld [vmem:[#allocation8] sm:$0x1]
      %v188 = vlaneseq
      %v189 = vshrl.u32 %v188, 7
      %v190 = vsub.s32 0, %v189
      %v191 = vrot.slane %v186, %v190
      %v193 = vadd.f32 %v182, %v191
      %v194 = vadd.f32 %v183, %v191
      %v195 = vadd.f32 %v184, %v191
      %v196 = vadd.f32 %v185, %v191
      %197 = vst.msk [vmem:[#allocation9] sm:$0xff] %vm174, %v193
      %198 = vst.msk [vmem:[#allocation9 + $0x8] sm:$0xff] %vm174, %v194
      %199 = vst.msk [vmem:[#allocation9 + $0x10] sm:$0xff] %vm174, %v195
      %200 = vst.msk [vmem:[#allocation9 + $0x18] sm:$0xff] %vm174, %v196
    $region33: #{vit_forward.11} parent=1 // pred_fallthru
      _
    // Predicated region
    $region34: #{vit_forward.11} parent=1 // pred_check
      _
    $region35: #{vit_forward.11} parent=1 // pred_check_branch
      %202 = sbr.rel (0) target = $region37
    $region36: #{vit_forward.11} parent=1 // pred_region
      %s204 = ssub.s32 512, 512
      %205 = vsyncadd [#allocation5], %s204
      %s206 = sshll.u32 [#allocation9], 4
      %s207 = int_to_ptr.vmem [resolvable:$true] %s206
      %212 = dma.vmem_to_hbm [thread:$0]  %s207, 512, %s3, [#allocation5], 128, 128, 8
    $region37: #{vit_forward.11} parent=1 // pred_fallthru
      _
    // Predicated region
    $region38: #{vit_forward.11} parent=1 // pred_check
      _
    $region39: #{vit_forward.11} parent=1 // pred_check_branch
      %214 = sbr.rel (0) target = $region41
    $region40: #{vit_forward.11} parent=1 // pred_region
      %215 = dma.done [#allocation5], 512
    $region41: #{vit_forward.11} parent=1 // pred_fallthru
      _
    %216 = vsyncpa [#allocation4], 1
    %217 = vsyncpa [#allocation7], 1
    %218 = vsyncpa [#allocation5], 1

// kernel: vit_forward.14
$region0: #{vit_forward.14}
  #allocation0 [shape = 'u32[]', space=smem, size = 0x4, offset = 0x4, fixed_abs, tag = 'smem constant byte address 0x4 - core index']
  #allocation1 [shape = 'u32[144,128]{1,0:T(1,128)}', space=vmem, size = 0x12000, scoped, tag = 'internal scratch']
  #allocation2 [shape = 'f32[48,32]{1,0:T(8,128)}', space=vmem, size = 0x6000, scoped, tag = 'scratch operand']
  %s0 = inlined_call_operand.hbm [shape: bf16[48,32], index: 0, kind: input, shape index: {}]
  %s1 = inlined_call_operand.hbm [shape: bf16[32,32], index: 1, kind: input, shape index: {}]
  %s2 = inlined_call_operand.hbm [shape: bf16[48,32], index: 2, kind: input, shape index: {}]
  %s3 = inlined_call_operand.hbm [shape: f32[1,32], index: 3, kind: input, shape index: {}]
  %s4 = inlined_call_operand.hbm [shape: f32[1,32], index: 4, kind: input, shape index: {}]
  %s5 = inlined_call_operand.hbm [shape: bf16[48,32], index: 5, kind: output, shape index: {}]
  %s6 = sld [smem:[#allocation0]]
  $region58: #{vit_forward.14} parent=0
    _
  %s8 = ssub.s32 1, %s6
  %s9 = scalar_select 0, %s8, %s6
  $region1: #{vit_forward.14} parent=0
    #allocation3 [shape = 'u8[12288]{0}', space=vmem, size = 0x3000, scoped, tag = 'input window, operand 0, single buffered']
    #allocation4 [shape = 's32[1]{0}', space=sflag, size = 0x4, scoped, tag = 'scoped memory for vit_forward.14']
    #allocation5 [shape = 's32[1]{0}', space=sflag, size = 0x4, scoped, tag = 'scoped memory for vit_forward.14']
    #allocation6 [shape = 'u8[8192]{0}', space=vmem, size = 0x2000, scoped, tag = 'input window, operand 1, single buffered']
    #allocation7 [shape = 's32[1]{0}', space=sflag, size = 0x4, scoped, tag = 'scoped memory for vit_forward.14']
    #allocation8 [shape = 'u8[12288]{0}', space=vmem, size = 0x3000, scoped, tag = 'input window, operand 2, single buffered']
    #allocation9 [shape = 'u8[512]{0}', space=vmem, size = 0x400, scoped, tag = 'input window, operand 3, single buffered']
    #allocation10 [shape = 's32[1]{0}', space=sflag, size = 0x4, scoped, tag = 'scoped memory for vit_forward.14']
    #allocation11 [shape = 'u8[512]{0}', space=vmem, size = 0x400, scoped, tag = 'input window, operand 4, single buffered']
    #allocation12 [shape = 'u8[12288]{0}', space=vmem, size = 0x3000, scoped, tag = 'output window, operand 0, single buffered']
    %10 = vsyncpa [#allocation4], 0
    %11 = vsyncpa [#allocation7], 0
    %12 = vsyncpa [#allocation10], 0
    %13 = vsyncpa [#allocation5], 0
    // Predicated region
    $region2: #{vit_forward.14} parent=1 // pred_check
      _
    $region3: #{vit_forward.14} parent=1 // pred_check_branch
      %15 = sbr.rel (0) target = $region5
    $region4: #{vit_forward.14} parent=1 // pred_region
      %s17 = ssub.s32 384, 384
      %18 = vsyncadd [#allocation4], %s17
      %s19 = sshll.u32 [#allocation3], 4
      %s20 = int_to_ptr.vmem [resolvable:$true] %s19
      %25 = dma.hbm_to_vmem [thread:$0]  %s0, 384, %s20, [#allocation4], 64, 64, 4
    $region5: #{vit_forward.14} parent=1 // pred_fallthru
      _
    // Predicated region
    $region6: #{vit_forward.14} parent=1 // pred_check
      _
    $region7: #{vit_forward.14} parent=1 // pred_check_branch
      %27 = sbr.rel (0) target = $region9
    $region8: #{vit_forward.14} parent=1 // pred_region
      %s29 = ssub.s32 256, 256
      %30 = vsyncadd [#allocation7], %s29
      %s31 = sshll.u32 [#allocation6], 4
      %s32 = int_to_ptr.vmem [resolvable:$true] %s31
      %37 = dma.hbm_to_vmem [thread:$0]  %s1, 256, %s32, [#allocation7], 64, 64, 4
    $region9: #{vit_forward.14} parent=1 // pred_fallthru
      _
    // Predicated region
    $region10: #{vit_forward.14} parent=1 // pred_check
      _
    $region11: #{vit_forward.14} parent=1 // pred_check_branch
      %39 = sbr.rel (0) target = $region13
    $region12: #{vit_forward.14} parent=1 // pred_region
      %s41 = ssub.s32 384, 384
      %42 = vsyncadd [#allocation7], %s41
      %s43 = sshll.u32 [#allocation8], 4
      %s44 = int_to_ptr.vmem [resolvable:$true] %s43
      %49 = dma.hbm_to_vmem [thread:$0]  %s2, 384, %s44, [#allocation7], 64, 64, 4
    $region13: #{vit_forward.14} parent=1 // pred_fallthru
      _
    // Predicated region
    $region14: #{vit_forward.14} parent=1 // pred_check
      _
    $region15: #{vit_forward.14} parent=1 // pred_check_branch
      %51 = sbr.rel (0) target = $region17
    $region16: #{vit_forward.14} parent=1 // pred_region
      %s53 = ssub.s32 16, 16
      %54 = vsyncadd [#allocation10], %s53
      %s56 = sshll.u32 [#allocation9], 4
      %s57 = int_to_ptr.vmem [resolvable:$true] %s56
      %59 = dma.hbm_to_vmem [thread:$0]  %s3, 16, %s57, [#allocation10]
    $region17: #{vit_forward.14} parent=1 // pred_fallthru
      _
    // Predicated region
    $region18: #{vit_forward.14} parent=1 // pred_check
      _
    $region19: #{vit_forward.14} parent=1 // pred_check_branch
      %61 = sbr.rel (0) target = $region21
    $region20: #{vit_forward.14} parent=1 // pred_region
      %s63 = ssub.s32 16, 16
      %64 = vsyncadd [#allocation10], %s63
      %s66 = sshll.u32 [#allocation11], 4
      %s67 = int_to_ptr.vmem [resolvable:$true] %s66
      %69 = dma.hbm_to_vmem [thread:$0]  %s4, 16, %s67, [#allocation10]
    $region21: #{vit_forward.14} parent=1 // pred_fallthru
      _
    // Predicated region
    $region22: #{vit_forward.14} parent=1 // pred_check
      _
    $region23: #{vit_forward.14} parent=1 // pred_check_branch
      %71 = sbr.rel (0) target = $region25
    $region24: #{vit_forward.14} parent=1 // pred_region
      %72 = dma.done [#allocation4], 384
    $region25: #{vit_forward.14} parent=1 // pred_fallthru
      _
    // Predicated region
    $region26: #{vit_forward.14} parent=1 // pred_check
      _
    $region27: #{vit_forward.14} parent=1 // pred_check_branch
      %74 = sbr.rel (0) target = $region29
    $region28: #{vit_forward.14} parent=1 // pred_region
      %75 = dma.done [#allocation7], 256
    $region29: #{vit_forward.14} parent=1 // pred_fallthru
      _
    // Predicated region
    $region30: #{vit_forward.14} parent=1 // pred_check
      _
    $region31: #{vit_forward.14} parent=1 // pred_check_branch
      %77 = sbr.rel (0) target = $region33
    $region32: #{vit_forward.14} parent=1 // pred_region
      %78 = dma.done [#allocation7], 384
    $region33: #{vit_forward.14} parent=1 // pred_fallthru
      _
    // Predicated region
    $region34: #{vit_forward.14} parent=1 // pred_check
      _
    $region35: #{vit_forward.14} parent=1 // pred_check_branch
      %80 = sbr.rel (0) target = $region37
    $region36: #{vit_forward.14} parent=1 // pred_region
      %81 = dma.done [#allocation10], 16
    $region37: #{vit_forward.14} parent=1 // pred_fallthru
      _
    // Predicated region
    $region38: #{vit_forward.14} parent=1 // pred_check
      _
    $region39: #{vit_forward.14} parent=1 // pred_check_branch
      %83 = sbr.rel (0) target = $region41
    $region40: #{vit_forward.14} parent=1 // pred_region
      %84 = dma.done [#allocation10], 16
    $region41: #{vit_forward.14} parent=1 // pred_fallthru
      _
    %p86 = scmp.eq.s32.totalorder 0, 0
    // Predicated region
    $region42: #{vit_forward.14} parent=1 // pred_check
      %p87 = pneg %p86
    $region43: #{vit_forward.14} parent=1 // pred_check_branch
      %89 = sbr.rel (%p87) target = $region45
    $region44: #{vit_forward.14} parent=1 // pred_region
      %vm90 = vcmask 261120
      %91 = vst.msk [vmem:[#allocation2] sm:$0xff] %vm90, 0.0
      %92 = vst.msk [vmem:[#allocation2 + $0x8] sm:$0xff] %vm90, 0.0
      %93 = vst.msk [vmem:[#allocation2 + $0x10] sm:$0xff] %vm90, 0.0
      %94 = vst.msk [vmem:[#allocation2 + $0x18] sm:$0xff] %vm90, 0.0
      %95 = vst.msk [vmem:[#allocation2 + $0x20] sm:$0xff] %vm90, 0.0
      %96 = vst.msk [vmem:[#allocation2 + $0x28] sm:$0xff] %vm90, 0.0
    $region45: #{vit_forward.14} parent=1 // pred_fallthru
      _
    %v97 = vld [vmem:[#allocation2] sm:$0xff]
    %v98 = vld [vmem:[#allocation2 + $0x8] sm:$0xff]
    %v99 = vld [vmem:[#allocation2 + $0x10] sm:$0xff]
    %v100 = vld [vmem:[#allocation2 + $0x18] sm:$0xff]
    %v101 = vld [vmem:[#allocation2 + $0x20] sm:$0xff]
    %v102 = vld [vmem:[#allocation2 + $0x28] sm:$0xff]
    %v103 = vld [vmem:[#allocation3] sm:$0xf]
    %v104 = vld [vmem:[#allocation3 + $0x4] sm:$0xf]
    %v105 = vld [vmem:[#allocation3 + $0x8] sm:$0xf]
    %v106 = vld [vmem:[#allocation3 + $0xc] sm:$0xf]
    %v107 = vld [vmem:[#allocation3 + $0x10] sm:$0xf]
    %v108 = vld [vmem:[#allocation3 + $0x14] sm:$0xf]
    %v109 = vld [vmem:[#allocation6] sm:$0xf]
    %v110 = vld [vmem:[#allocation6 + $0x4] sm:$0xf]
    %v111 = vld [vmem:[#allocation6 + $0x8] sm:$0xf]
    %v112 = vld [vmem:[#allocation6 + $0xc] sm:$0xf]
    %v119 = vunpack.c.l.b16 %v103
    %v120 = vunpack.c.l.b16 %v104
    %v121 = vunpack.c.l.b16 %v105
    %v122 = vunpack.c.l.b16 %v106
    %v123 = vunpack.c.l.b16 %v107
    %v124 = vunpack.c.l.b16 %v108
    %v125 = vpack.c.b16 %v120, %v119
    %v126 = vpack.c.b16 %v122, %v121
    %v127 = vpack.c.b16 %v124, %v123
    %v132 = vunpack.c.l.b16 %v109
    %v133 = vunpack.c.l.b16 %v110
    %v134 = vunpack.c.l.b16 %v111
    %v135 = vunpack.c.l.b16 %v112
    %v136 = vpack.c.b16 %v133, %v132
    %v137 = vpack.c.b16 %v135, %v134
    %vm140 = vcmask 261120
    %v142 = vsel %vm140, %v125, 0
    %v145 = vsel %vm140, %v126, 0
    %v148 = vsel %vm140, %v127, 0
    %150 = vmatprep.subr.bf16.mxu0 0
    %151 = vmatpush1.bf16.msra.mxu0 %v136
    %152 = vmatprep.subr.bf16.mxu0 0
    %153 = vmatpush1.bf16.msra.mxu0 %v137
    %154 = vmatprep.subr.bf16.mxu0 0
    %155 = vmatpush1.bf16.msra.mxu0 0
    %156 = vmatprep.subr.bf16.mxu0 0
    %157 = vmatpush1.bf16.msra.mxu0 0
    %158 = vmatprep.subr.bf16.mxu0 0
    %159 = vmatpush1.bf16.msra.mxu0 0
    %160 = vmatprep.subr.bf16.mxu0 0
    %161 = vmatpush1.bf16.msra.mxu0 0
    %162 = vmatprep.subr.bf16.mxu0 0
    %163 = vmatpush1.bf16.msra.mxu0 0
    %164 = vmatprep.subr.bf16.mxu0 0
    %165 = vmatpush1.bf16.msra.mxu0 0
    %166 = vmatprep.subr.bf16.mxu0 0
    %167 = vmatpush1.bf16.msra.mxu0 0
    %168 = vmatprep.subr.bf16.mxu0 0
    %169 = vmatpush1.bf16.msra.mxu0 0
    %170 = vmatprep.subr.bf16.mxu0 0
    %171 = vmatpush1.bf16.msra.mxu0 0
    %172 = vmatprep.subr.bf16.mxu0 0
    %173 = vmatpush1.bf16.msra.mxu0 0
    %174 = vmatprep.subr.bf16.mxu0 0
    %175 = vmatpush1.bf16.msra.mxu0 0
    %176 = vmatprep.subr.bf16.mxu0 0
    %177 = vmatpush1.bf16.msra.mxu0 0
    %178 = vmatprep.subr.bf16.mxu0 0
    %179 = vmatpush1.bf16.msra.mxu0 0
    %180 = vmatprep.subr.bf16.mxu0 0
    %181 = vmatpush1.bf16.msra.mxu0 0
    %182 = vmatprep.mubr.bf16.mxu0 0
    %183 = vmatmul.mubr.bf16.gmra.mrb[0].mxu0 %v142
    %v184 = vpop.f32.mrb[0].mxu0
    %v185 = vadd.f32 0.0, %v184
    %v186 = vpop.f32.mrb[0].mxu0
    %v187 = vpop.f32.mrb[0].mxu0
    %v188 = vadd.f32 0.0, %v187
    %v189 = vpop.f32.mrb[0].mxu0
    %190 = vmatprep.mubr.bf16.mxu0 0
    %191 = vmatmul.mubr.bf16.gmra.mrb[0].mxu0 %v145
    %v192 = vpop.f32.mrb[0].mxu0
    %v193 = vadd.f32 0.0, %v192
    %v194 = vpop.f32.mrb[0].mxu0
    %v195 = vpop.f32.mrb[0].mxu0
    %v196 = vadd.f32 0.0, %v195
    %v197 = vpop.f32.mrb[0].mxu0
    %198 = vmatprep.mubr.bf16.mxu0 0
    %199 = vmatmul.mubr.bf16.gmra.mrb[0].mxu0 %v148
    %v200 = vpop.f32.mrb[0].mxu0
    %v201 = vadd.f32 0.0, %v200
    %v202 = vpop.f32.mrb[0].mxu0
    %v203 = vpop.f32.mrb[0].mxu0
    %v204 = vadd.f32 0.0, %v203
    %v205 = vpop.f32.mrb[0].mxu0
    %206 = vdwg.mxu0
    %v207 = vadd.f32 %v97, %v185
    %v208 = vadd.f32 %v98, %v188
    %v209 = vadd.f32 %v99, %v193
    %v210 = vadd.f32 %v100, %v196
    %v211 = vadd.f32 %v101, %v201
    %v212 = vadd.f32 %v102, %v204
    %213 = vst.msk [vmem:[#allocation2] sm:$0xff] %vm140, %v207
    %214 = vst.msk [vmem:[#allocation2 + $0x8] sm:$0xff] %vm140, %v208
    %215 = vst.msk [vmem:[#allocation2 + $0x10] sm:$0xff] %vm140, %v209
    %216 = vst.msk [vmem:[#allocation2 + $0x18] sm:$0xff] %vm140, %v210
    %217 = vst.msk [vmem:[#allocation2 + $0x20] sm:$0xff] %vm140, %v211
    %218 = vst.msk [vmem:[#allocation2 + $0x28] sm:$0xff] %vm140, %v212
    // Predicated region
    $region46: #{vit_forward.14} parent=1 // pred_check
      %p219 = pneg %p86
    $region47: #{vit_forward.14} parent=1 // pred_check_branch
      %221 = sbr.rel (%p219) target = $region49
    $region48: #{vit_forward.14} parent=1 // pred_region
      %v222 = vld [vmem:[#allocation2] sm:$0xff]
      %v223 = vld [vmem:[#allocation2 + $0x8] sm:$0xff]
      %v224 = vld [vmem:[#allocation2 + $0x10] sm:$0xff]
      %v225 = vld [vmem:[#allocation2 + $0x18] sm:$0xff]
      %v226 = vld [vmem:[#allocation2 + $0x20] sm:$0xff]
      %v227 = vld [vmem:[#allocation2 + $0x28] sm:$0xff]
      %v228 = vld [vmem:[#allocation8] sm:$0xf]
      %v229 = vld [vmem:[#allocation8 + $0x4] sm:$0xf]
      %v230 = vld [vmem:[#allocation8 + $0x8] sm:$0xf]
      %v231 = vld [vmem:[#allocation8 + $0xc] sm:$0xf]
      %v232 = vld [vmem:[#allocation8 + $0x10] sm:$0xf]
      %v233 = vld [vmem:[#allocation8 + $0x14] sm:$0xf]
      %v234 = vunpack.c.l.bf16 %v228
      %v235 = vunpack.c.l.bf16 %v229
      %v236 = vunpack.c.l.bf16 %v230
      %v237 = vunpack.c.l.bf16 %v231
      %v238 = vunpack.c.l.bf16 %v232
      %v239 = vunpack.c.l.bf16 %v233
      %v240 = vadd.f32 %v222, %v234
      %v241 = vadd.f32 %v223, %v235
      %v242 = vadd.f32 %v224, %v236
      %v243 = vadd.f32 %v225, %v237
      %v244 = vadd.f32 %v226, %v238
      %v245 = vadd.f32 %v227, %v239
      %v246 = vsel %vm140, %v240, 0.0
      %247 = vadd.xlane.f32.xlu0 %v246
      %v248 = vpop.xlane.xlu0 %247
      %v249 = vsel %vm140, %v241, 0.0
      %250 = vadd.xlane.f32.xlu0 %v249
      %v251 = vpop.xlane.xlu0 %250
      %v252 = vsel %vm140, %v242, 0.0
      %253 = vadd.xlane.f32.xlu0 %v252
      %v254 = vpop.xlane.xlu0 %253
      %v255 = vsel %vm140, %v243, 0.0
      %256 = vadd.xlane.f32.xlu0 %v255
      %v257 = vpop.xlane.xlu0 %256
      %v258 = vsel %vm140, %v244, 0.0
      %259 = vadd.xlane.f32.xlu0 %v258
      %v260 = vpop.xlane.xlu0 %259
      %v261 = vsel %vm140, %v245, 0.0
      %262 = vadd.xlane.f32.xlu0 %v261
      %v263 = vpop.xlane.xlu0 %262
      %v264 = vrcp.pop 32.0
      %v265 = vmul.f32 %v248, %v264
      %v266 = vmul.f32 %v251, %v264
      %v267 = vmul.f32 %v254, %v264
      %v268 = vmul.f32 %v257, %v264
      %v269 = vmul.f32 %v260, %v264
      %v270 = vmul.f32 %v263, %v264
      %v271 = vsub.f32 %v240, %v265
      %v272 = vsub.f32 %v241, %v266
      %v273 = vsub.f32 %v242, %v267
      %v274 = vsub.f32 %v243, %v268
      %v275 = vsub.f32 %v244, %v269
      %v276 = vsub.f32 %v245, %v270
      %v277 = vmul.f32 %v271, %v271
      %v278 = vmul.f32 %v272, %v272
      %v279 = vmul.f32 %v273, %v273
      %v280 = vmul.f32 %v274, %v274
      %v281 = vmul.f32 %v275, %v275
      %v282 = vmul.f32 %v276, %v276
      %v283 = vsel %vm140, %v277, 0.0
      %284 = vadd.xlane.f32.xlu0 %v283
      %v285 = vpop.xlane.xlu0 %284
      %v286 = vsel %vm140, %v278, 0.0
      %287 = vadd.xlane.f32.xlu0 %v286
      %v288 = vpop.xlane.xlu0 %287
      %v289 = vsel %vm140, %v279, 0.0
      %290 = vadd.xlane.f32.xlu0 %v289
      %v291 = vpop.xlane.xlu0 %290
      %v292 = vsel %vm140, %v280, 0.0
      %293 = vadd.xlane.f32.xlu0 %v292
      %v294 = vpop.xlane.xlu0 %293
      %v295 = vsel %vm140, %v281, 0.0
      %296 = vadd.xlane.f32.xlu0 %v295
      %v297 = vpop.xlane.xlu0 %296
      %v298 = vsel %vm140, %v282, 0.0
      %299 = vadd.xlane.f32.xlu0 %v298
      %v300 = vpop.xlane.xlu0 %299
      %v301 = vmul.f32 %v285, %v264
      %v302 = vmul.f32 %v288, %v264
      %v303 = vmul.f32 %v291, %v264
      %v304 = vmul.f32 %v294, %v264
      %v305 = vmul.f32 %v297, %v264
      %v306 = vmul.f32 %v300, %v264
      %v307 = vadd.f32 %v301, 1e-05
      %v308 = vadd.f32 %v302, 1e-05
      %v309 = vadd.f32 %v303, 1e-05
      %v310 = vadd.f32 %v304, 1e-05
      %v311 = vadd.f32 %v305, 1e-05
      %v312 = vadd.f32 %v306, 1e-05
      %v313 = vrsqrt.pop %v307
      %v314 = vrsqrt.pop %v308
      %v315 = vrsqrt.pop %v309
      %v316 = vrsqrt.pop %v310
      %v317 = vrsqrt.pop %v311
      %v318 = vrsqrt.pop %v312
      %v319 = vmul.f32 %v271, %v313
      %v320 = vmul.f32 %v272, %v314
      %v321 = vmul.f32 %v273, %v315
      %v322 = vmul.f32 %v274, %v316
      %v323 = vmul.f32 %v275, %v317
      %v324 = vmul.f32 %v276, %v318
      %v325 = vld [vmem:[#allocation9] sm:$0x1]
      %v327 = vlaneseq
      %v328 = vshrl.u32 %v327, 7
      %v329 = vsub.s32 0, %v328
      %v330 = vrot.slane %v325, %v329
      %v332 = vmul.f32 %v319, %v330
      %v333 = vmul.f32 %v320, %v330
      %v334 = vmul.f32 %v321, %v330
      %v335 = vmul.f32 %v322, %v330
      %v336 = vmul.f32 %v323, %v330
      %v337 = vmul.f32 %v324, %v330
      %v338 = vld [vmem:[#allocation11] sm:$0x1]
      %v340 = vlaneseq
      %v341 = vshrl.u32 %v340, 7
      %v342 = vsub.s32 0, %v341
      %v343 = vrot.slane %v338, %v342
      %v345 = vadd.f32 %v332, %v343
      %v346 = vadd.f32 %v333, %v343
      %v347 = vadd.f32 %v334, %v343
      %v348 = vadd.f32 %v335, %v343
      %v349 = vadd.f32 %v336, %v343
      %v350 = vadd.f32 %v337, %v343
      %v351 = vpack.c.bf16 %v346, %v345
      %v352 = vpack.c.bf16 %v348, %v347
      %v353 = vpack.c.bf16 %v350, %v349
      %v357 = vunpack.c.l.b16 %v351
      %v358 = vunpack.c.h.b16 %v351
      %v359 = vunpack.c.l.b16 %v352
      %v360 = vunpack.c.h.b16 %v352
      %v361 = vunpack.c.l.b16 %v353
      %v362 = vunpack.c.h.b16 %v353
      %v363 = vpack.c.b16 %v357, %v357
      %v364 = vpack.c.b16 %v358, %v358
      %v365 = vpack.c.b16 %v359, %v359
      %v366 = vpack.c.b16 %v360, %v360
      %v367 = vpack.c.b16 %v361, %v361
      %v368 = vpack.c.b16 %v362, %v362
      %vm375 = vcmask 257024
      %376 = vst.msk [vmem:[#allocation12] sm:$0xf] %vm375, %v363
      %377 = vst.msk [vmem:[#allocation12 + $0x4] sm:$0xf] %vm375, %v364
      %378 = vst.msk [vmem:[#allocation12 + $0x8] sm:$0xf] %vm375, %v365
      %379 = vst.msk [vmem:[#allocation12 + $0xc] sm:$0xf] %vm375, %v366
      %380 = vst.msk [vmem:[#allocation12 + $0x10] sm:$0xf] %vm375, %v367
      %381 = vst.msk [vmem:[#allocation12 + $0x14] sm:$0xf] %vm375, %v368
    $region49: #{vit_forward.14} parent=1 // pred_fallthru
      _
    // Predicated region
    $region50: #{vit_forward.14} parent=1 // pred_check
      _
    $region51: #{vit_forward.14} parent=1 // pred_check_branch
      %383 = sbr.rel (0) target = $region53
    $region52: #{vit_forward.14} parent=1 // pred_region
      %s385 = ssub.s32 384, 384
      %386 = vsyncadd [#allocation5], %s385
      %s387 = sshll.u32 [#allocation12], 4
      %s388 = int_to_ptr.vmem [resolvable:$true] %s387
      %393 = dma.vmem_to_hbm [thread:$0]  %s388, 384, %s5, [#allocation5], 64, 64, 4
    $region53: #{vit_forward.14} parent=1 // pred_fallthru
      _
    // Predicated region
    $region54: #{vit_forward.14} parent=1 // pred_check
      _
    $region55: #{vit_forward.14} parent=1 // pred_check_branch
      %395 = sbr.rel (0) target = $region57
    $region56: #{vit_forward.14} parent=1 // pred_region
      %396 = dma.done [#allocation5], 384
    $region57: #{vit_forward.14} parent=1 // pred_fallthru
      _
    %397 = vsyncpa [#allocation4], 1
    %398 = vsyncpa [#allocation7], 1
    %399 = vsyncpa [#allocation10], 1
    %400 = vsyncpa [#allocation5], 1

// kernel: vit_forward.15
$region0: #{vit_forward.15}
  #allocation0 [shape = 'u32[]', space=smem, size = 0x4, offset = 0x4, fixed_abs, tag = 'smem constant byte address 0x4 - core index']
  #allocation1 [shape = 'u32[144,128]{1,0:T(1,128)}', space=vmem, size = 0x12000, scoped, tag = 'internal scratch']
  #allocation2 [shape = 'f32[48,64]{1,0:T(8,128)}', space=vmem, size = 0x6000, scoped, tag = 'scratch operand']
  %s0 = inlined_call_operand.hbm [shape: bf16[48,32], index: 0, kind: input, shape index: {}]
  %s1 = inlined_call_operand.hbm [shape: bf16[32,64], index: 1, kind: input, shape index: {}]
  %s2 = inlined_call_operand.hbm [shape: f32[1,64], index: 2, kind: input, shape index: {}]
  %s3 = inlined_call_operand.hbm [shape: bf16[48,64], index: 3, kind: output, shape index: {}]
  %s4 = sld [smem:[#allocation0]]
  $region42: #{vit_forward.15} parent=0
    _
  %s6 = ssub.s32 1, %s4
  %s7 = scalar_select 0, %s6, %s4
  $region1: #{vit_forward.15} parent=0
    #allocation3 [shape = 'u8[12288]{0}', space=vmem, size = 0x3000, scoped, tag = 'input window, operand 0, single buffered']
    #allocation4 [shape = 's32[1]{0}', space=sflag, size = 0x4, scoped, tag = 'scoped memory for vit_forward.15']
    #allocation5 [shape = 's32[1]{0}', space=sflag, size = 0x4, scoped, tag = 'scoped memory for vit_forward.15']
    #allocation6 [shape = 'u8[8192]{0}', space=vmem, size = 0x2000, scoped, tag = 'input window, operand 1, single buffered']
    #allocation7 [shape = 's32[1]{0}', space=sflag, size = 0x4, scoped, tag = 'scoped memory for vit_forward.15']
    #allocation8 [shape = 'u8[512]{0}', space=vmem, size = 0x400, scoped, tag = 'input window, operand 2, single buffered']
    #allocation9 [shape = 'u8[12288]{0}', space=vmem, size = 0x3000, scoped, tag = 'output window, operand 0, single buffered']
    %8 = vsyncpa [#allocation4], 0
    %9 = vsyncpa [#allocation7], 0
    %10 = vsyncpa [#allocation5], 0
    // Predicated region
    $region2: #{vit_forward.15} parent=1 // pred_check
      _
    $region3: #{vit_forward.15} parent=1 // pred_check_branch
      %12 = sbr.rel (0) target = $region5
    $region4: #{vit_forward.15} parent=1 // pred_region
      %s14 = ssub.s32 384, 384
      %15 = vsyncadd [#allocation4], %s14
      %s16 = sshll.u32 [#allocation3], 4
      %s17 = int_to_ptr.vmem [resolvable:$true] %s16
      %22 = dma.hbm_to_vmem [thread:$0]  %s0, 384, %s17, [#allocation4], 64, 64, 4
    $region5: #{vit_forward.15} parent=1 // pred_fallthru
      _
    // Predicated region
    $region6: #{vit_forward.15} parent=1 // pred_check
      _
    $region7: #{vit_forward.15} parent=1 // pred_check_branch
      %24 = sbr.rel (0) target = $region9
    $region8: #{vit_forward.15} parent=1 // pred_region
      %s26 = ssub.s32 256, 256
      %27 = vsyncadd [#allocation7], %s26
      %s28 = sshll.u32 [#allocation6], 4
      %s29 = int_to_ptr.vmem [resolvable:$true] %s28
      %34 = dma.hbm_to_vmem [thread:$0]  %s1, 256, %s29, [#allocation7], 64, 64, 4
    $region9: #{vit_forward.15} parent=1 // pred_fallthru
      _
    // Predicated region
    $region10: #{vit_forward.15} parent=1 // pred_check
      _
    $region11: #{vit_forward.15} parent=1 // pred_check_branch
      %36 = sbr.rel (0) target = $region13
    $region12: #{vit_forward.15} parent=1 // pred_region
      %s38 = ssub.s32 16, 16
      %39 = vsyncadd [#allocation7], %s38
      %s41 = sshll.u32 [#allocation8], 4
      %s42 = int_to_ptr.vmem [resolvable:$true] %s41
      %44 = dma.hbm_to_vmem [thread:$0]  %s2, 16, %s42, [#allocation7]
    $region13: #{vit_forward.15} parent=1 // pred_fallthru
      _
    // Predicated region
    $region14: #{vit_forward.15} parent=1 // pred_check
      _
    $region15: #{vit_forward.15} parent=1 // pred_check_branch
      %46 = sbr.rel (0) target = $region17
    $region16: #{vit_forward.15} parent=1 // pred_region
      %47 = dma.done [#allocation4], 384
    $region17: #{vit_forward.15} parent=1 // pred_fallthru
      _
    // Predicated region
    $region18: #{vit_forward.15} parent=1 // pred_check
      _
    $region19: #{vit_forward.15} parent=1 // pred_check_branch
      %49 = sbr.rel (0) target = $region21
    $region20: #{vit_forward.15} parent=1 // pred_region
      %50 = dma.done [#allocation7], 256
    $region21: #{vit_forward.15} parent=1 // pred_fallthru
      _
    // Predicated region
    $region22: #{vit_forward.15} parent=1 // pred_check
      _
    $region23: #{vit_forward.15} parent=1 // pred_check_branch
      %52 = sbr.rel (0) target = $region25
    $region24: #{vit_forward.15} parent=1 // pred_region
      %53 = dma.done [#allocation7], 16
    $region25: #{vit_forward.15} parent=1 // pred_fallthru
      _
    %p55 = scmp.eq.s32.totalorder 0, 0
    // Predicated region
    $region26: #{vit_forward.15} parent=1 // pred_check
      %p56 = pneg %p55
    $region27: #{vit_forward.15} parent=1 // pred_check_branch
      %58 = sbr.rel (%p56) target = $region29
    $region28: #{vit_forward.15} parent=1 // pred_region
      %vm59 = vcmask 523264
      %60 = vst.msk [vmem:[#allocation2] sm:$0xff] %vm59, 0.0
      %61 = vst.msk [vmem:[#allocation2 + $0x8] sm:$0xff] %vm59, 0.0
      %62 = vst.msk [vmem:[#allocation2 + $0x10] sm:$0xff] %vm59, 0.0
      %63 = vst.msk [vmem:[#allocation2 + $0x18] sm:$0xff] %vm59, 0.0
      %64 = vst.msk [vmem:[#allocation2 + $0x20] sm:$0xff] %vm59, 0.0
      %65 = vst.msk [vmem:[#allocation2 + $0x28] sm:$0xff] %vm59, 0.0
    $region29: #{vit_forward.15} parent=1 // pred_fallthru
      _
    %v66 = vld [vmem:[#allocation2] sm:$0xff]
    %v67 = vld [vmem:[#allocation2 + $0x8] sm:$0xff]
    %v68 = vld [vmem:[#allocation2 + $0x10] sm:$0xff]
    %v69 = vld [vmem:[#allocation2 + $0x18] sm:$0xff]
    %v70 = vld [vmem:[#allocation2 + $0x20] sm:$0xff]
    %v71 = vld [vmem:[#allocation2 + $0x28] sm:$0xff]
    %v72 = vld [vmem:[#allocation3] sm:$0xf]
    %v73 = vld [vmem:[#allocation3 + $0x4] sm:$0xf]
    %v74 = vld [vmem:[#allocation3 + $0x8] sm:$0xf]
    %v75 = vld [vmem:[#allocation3 + $0xc] sm:$0xf]
    %v76 = vld [vmem:[#allocation3 + $0x10] sm:$0xf]
    %v77 = vld [vmem:[#allocation3 + $0x14] sm:$0xf]
    %v78 = vld [vmem:[#allocation6] sm:$0xf]
    %v79 = vld [vmem:[#allocation6 + $0x4] sm:$0xf]
    %v80 = vld [vmem:[#allocation6 + $0x8] sm:$0xf]
    %v81 = vld [vmem:[#allocation6 + $0xc] sm:$0xf]
    %v88 = vunpack.c.l.b16 %v72
    %v89 = vunpack.c.l.b16 %v73
    %v90 = vunpack.c.l.b16 %v74
    %v91 = vunpack.c.l.b16 %v75
    %v92 = vunpack.c.l.b16 %v76
    %v93 = vunpack.c.l.b16 %v77
    %v94 = vpack.c.b16 %v89, %v88
    %v95 = vpack.c.b16 %v91, %v90
    %v96 = vpack.c.b16 %v93, %v92
    %v101 = vunpack.c.l.b16 %v78
    %v102 = vunpack.c.l.b16 %v79
    %v103 = vunpack.c.l.b16 %v80
    %v104 = vunpack.c.l.b16 %v81
    %v105 = vpack.c.b16 %v102, %v101
    %v106 = vpack.c.b16 %v104, %v103
    %vm109 = vcmask 261120
    %v111 = vsel %vm109, %v94, 0
    %v114 = vsel %vm109, %v95, 0
    %v117 = vsel %vm109, %v96, 0
    %119 = vmatprep.subr.bf16.mxu0 0
    %120 = vmatpush1.bf16.msra.mxu0 %v105
    %121 = vmatprep.subr.bf16.mxu0 0
    %122 = vmatpush1.bf16.msra.mxu0 %v106
    %123 = vmatprep.subr.bf16.mxu0 0
    %124 = vmatpush1.bf16.msra.mxu0 0
    %125 = vmatprep.subr.bf16.mxu0 0
    %126 = vmatpush1.bf16.msra.mxu0 0
    %127 = vmatprep.subr.bf16.mxu0 0
    %128 = vmatpush1.bf16.msra.mxu0 0
    %129 = vmatprep.subr.bf16.mxu0 0
    %130 = vmatpush1.bf16.msra.mxu0 0
    %131 = vmatprep.subr.bf16.mxu0 0
    %132 = vmatpush1.bf16.msra.mxu0 0
    %133 = vmatprep.subr.bf16.mxu0 0
    %134 = vmatpush1.bf16.msra.mxu0 0
    %135 = vmatprep.subr.bf16.mxu0 0
    %136 = vmatpush1.bf16.msra.mxu0 0
    %137 = vmatprep.subr.bf16.mxu0 0
    %138 = vmatpush1.bf16.msra.mxu0 0
    %139 = vmatprep.subr.bf16.mxu0 0
    %140 = vmatpush1.bf16.msra.mxu0 0
    %141 = vmatprep.subr.bf16.mxu0 0
    %142 = vmatpush1.bf16.msra.mxu0 0
    %143 = vmatprep.subr.bf16.mxu0 0
    %144 = vmatpush1.bf16.msra.mxu0 0
    %145 = vmatprep.subr.bf16.mxu0 0
    %146 = vmatpush1.bf16.msra.mxu0 0
    %147 = vmatprep.subr.bf16.mxu0 0
    %148 = vmatpush1.bf16.msra.mxu0 0
    %149 = vmatprep.subr.bf16.mxu0 0
    %150 = vmatpush1.bf16.msra.mxu0 0
    %151 = vmatprep.mubr.bf16.mxu0 0
    %152 = vmatmul.mubr.bf16.gmra.mrb[0].mxu0 %v111
    %v153 = vpop.f32.mrb[0].mxu0
    %v154 = vadd.f32 0.0, %v153
    %v155 = vpop.f32.mrb[0].mxu0
    %v156 = vpop.f32.mrb[0].mxu0
    %v157 = vadd.f32 0.0, %v156
    %v158 = vpop.f32.mrb[0].mxu0
    %159 = vmatprep.mubr.bf16.mxu0 0
    %160 = vmatmul.mubr.bf16.gmra.mrb[0].mxu0 %v114
    %v161 = vpop.f32.mrb[0].mxu0
    %v162 = vadd.f32 0.0, %v161
    %v163 = vpop.f32.mrb[0].mxu0
    %v164 = vpop.f32.mrb[0].mxu0
    %v165 = vadd.f32 0.0, %v164
    %v166 = vpop.f32.mrb[0].mxu0
    %167 = vmatprep.mubr.bf16.mxu0 0
    %168 = vmatmul.mubr.bf16.gmra.mrb[0].mxu0 %v117
    %v169 = vpop.f32.mrb[0].mxu0
    %v170 = vadd.f32 0.0, %v169
    %v171 = vpop.f32.mrb[0].mxu0
    %v172 = vpop.f32.mrb[0].mxu0
    %v173 = vadd.f32 0.0, %v172
    %v174 = vpop.f32.mrb[0].mxu0
    %175 = vdwg.mxu0
    %v176 = vadd.f32 %v66, %v154
    %v177 = vadd.f32 %v67, %v157
    %v178 = vadd.f32 %v68, %v162
    %v179 = vadd.f32 %v69, %v165
    %v180 = vadd.f32 %v70, %v170
    %v181 = vadd.f32 %v71, %v173
    %vm182 = vcmask 523264
    %183 = vst.msk [vmem:[#allocation2] sm:$0xff] %vm182, %v176
    %184 = vst.msk [vmem:[#allocation2 + $0x8] sm:$0xff] %vm182, %v177
    %185 = vst.msk [vmem:[#allocation2 + $0x10] sm:$0xff] %vm182, %v178
    %186 = vst.msk [vmem:[#allocation2 + $0x18] sm:$0xff] %vm182, %v179
    %187 = vst.msk [vmem:[#allocation2 + $0x20] sm:$0xff] %vm182, %v180
    %188 = vst.msk [vmem:[#allocation2 + $0x28] sm:$0xff] %vm182, %v181
    // Predicated region
    $region30: #{vit_forward.15} parent=1 // pred_check
      %p189 = pneg %p55
    $region31: #{vit_forward.15} parent=1 // pred_check_branch
      %191 = sbr.rel (%p189) target = $region33
    $region32: #{vit_forward.15} parent=1 // pred_region
      %v192 = vld [vmem:[#allocation2] sm:$0xff]
      %v193 = vld [vmem:[#allocation2 + $0x8] sm:$0xff]
      %v194 = vld [vmem:[#allocation2 + $0x10] sm:$0xff]
      %v195 = vld [vmem:[#allocation2 + $0x18] sm:$0xff]
      %v196 = vld [vmem:[#allocation2 + $0x20] sm:$0xff]
      %v197 = vld [vmem:[#allocation2 + $0x28] sm:$0xff]
      %v198 = vld [vmem:[#allocation8] sm:$0x1]
      %v200 = vlaneseq
      %v201 = vshrl.u32 %v200, 7
      %v202 = vsub.s32 0, %v201
      %v203 = vrot.slane %v198, %v202
      %v205 = vadd.f32 %v192, %v203
      %v206 = vadd.f32 %v193, %v203
      %v207 = vadd.f32 %v194, %v203
      %v208 = vadd.f32 %v195, %v203
      %v209 = vadd.f32 %v196, %v203
      %v210 = vadd.f32 %v197, %v203
      %v211 = vmul.f32 %v205, 0.5
      %v212 = vmul.f32 %v206, 0.5
      %v213 = vmul.f32 %v207, 0.5
      %v214 = vmul.f32 %v208, 0.5
      %v215 = vmul.f32 %v209, 0.5
      %v216 = vmul.f32 %v210, 0.5
      %v217 = vmul.f32 %v205, 0.70710677
      %v218 = vmul.f32 %v206, 0.70710677
      %v219 = vmul.f32 %v207, 0.70710677
      %v220 = vmul.f32 %v208, 0.70710677
      %v221 = vmul.f32 %v209, 0.70710677
      %v222 = vmul.f32 %v210, 0.70710677
      %v223 = verf.f32.pop %v217
      %v224 = verf.f32.pop %v218
      %v225 = verf.f32.pop %v219
      %v226 = verf.f32.pop %v220
      %v227 = verf.f32.pop %v221
      %v228 = verf.f32.pop %v222
      %v229 = vadd.f32 %v223, 1.0
      %v230 = vadd.f32 %v224, 1.0
      %v231 = vadd.f32 %v225, 1.0
      %v232 = vadd.f32 %v226, 1.0
      %v233 = vadd.f32 %v227, 1.0
      %v234 = vadd.f32 %v228, 1.0
      %v235 = vmul.f32 %v211, %v229
      %v236 = vmul.f32 %v212, %v230
      %v237 = vmul.f32 %v213, %v231
      %v238 = vmul.f32 %v214, %v232
      %v239 = vmul.f32 %v215, %v233
      %v240 = vmul.f32 %v216, %v234
      %v241 = vpack.c.bf16 %v236, %v235
      %v242 = vpack.c.bf16 %v238, %v237
      %v243 = vpack.c.bf16 %v240, %v239
      %v247 = vunpack.c.l.b16 %v241
      %v248 = vunpack.c.h.b16 %v241
      %v249 = vunpack.c.l.b16 %v242
      %v250 = vunpack.c.h.b16 %v242
      %v251 = vunpack.c.l.b16 %v243
      %v252 = vunpack.c.h.b16 %v243
      %v253 = vpack.c.b16 %v247, %v247
      %v254 = vpack.c.b16 %v248, %v248
      %v255 = vpack.c.b16 %v249, %v249
      %v256 = vpack.c.b16 %v250, %v250
      %v257 = vpack.c.b16 %v251, %v251
      %v258 = vpack.c.b16 %v252, %v252
      %vm265 = vcmask 519168
      %266 = vst.msk [vmem:[#allocation9] sm:$0xf] %vm265, %v253
      %267 = vst.msk [vmem:[#allocation9 + $0x4] sm:$0xf] %vm265, %v254
      %268 = vst.msk [vmem:[#allocation9 + $0x8] sm:$0xf] %vm265, %v255
      %269 = vst.msk [vmem:[#allocation9 + $0xc] sm:$0xf] %vm265, %v256
      %270 = vst.msk [vmem:[#allocation9 + $0x10] sm:$0xf] %vm265, %v257
      %271 = vst.msk [vmem:[#allocation9 + $0x14] sm:$0xf] %vm265, %v258
    $region33: #{vit_forward.15} parent=1 // pred_fallthru
      _
    // Predicated region
    $region34: #{vit_forward.15} parent=1 // pred_check
      _
    $region35: #{vit_forward.15} parent=1 // pred_check_branch
      %273 = sbr.rel (0) target = $region37
    $region36: #{vit_forward.15} parent=1 // pred_region
      %s275 = ssub.s32 384, 384
      %276 = vsyncadd [#allocation5], %s275
      %s277 = sshll.u32 [#allocation9], 4
      %s278 = int_to_ptr.vmem [resolvable:$true] %s277
      %283 = dma.vmem_to_hbm [thread:$0]  %s278, 384, %s3, [#allocation5], 64, 64, 4
    $region37: #{vit_forward.15} parent=1 // pred_fallthru
      _
    // Predicated region
    $region38: #{vit_forward.15} parent=1 // pred_check
      _
    $region39: #{vit_forward.15} parent=1 // pred_check_branch
      %285 = sbr.rel (0) target = $region41
    $region40: #{vit_forward.15} parent=1 // pred_region
      %286 = dma.done [#allocation5], 384
    $region41: #{vit_forward.15} parent=1 // pred_fallthru
      _
    %287 = vsyncpa [#allocation4], 1
    %288 = vsyncpa [#allocation7], 1
    %289 = vsyncpa [#allocation5], 1

// kernel: vit_forward.13
$region0: #{vit_forward.13}
  #allocation0 [shape = 'u32[]', space=smem, size = 0x4, offset = 0x4, fixed_abs, tag = 'smem constant byte address 0x4 - core index']
  #allocation1 [shape = 'u32[144,128]{1,0:T(1,128)}', space=vmem, size = 0x12000, scoped, tag = 'internal scratch']
  %s0 = inlined_call_operand.hbm [shape: bf16[2,12,24,8], index: 0, kind: input, shape index: {}]
  %s1 = inlined_call_operand.hbm [shape: bf16[2,24,32], index: 1, kind: output, shape index: {}]
  %s2 = sld [smem:[#allocation0]]
  $region41: #{vit_forward.13} parent=0
    _
  %s4 = ssub.s32 1, %s2
  %s5 = scalar_select 0, %s4, %s2
  $region1: #{vit_forward.13} parent=0
    #allocation2 [shape = 'u8[147456]{0}', space=vmem, size = 0x24000, scoped, tag = 'input window, operand 0']
    #allocation3 [shape = 's32[2]{0}', space=sflag, size = 0x8, scoped, tag = 'scoped memory for vit_forward.13']
    #allocation4 [shape = 's32[2]{0}', space=sflag, size = 0x8, scoped, tag = 'scoped memory for vit_forward.13']
    #allocation5 [shape = 'u8[12288]{0}', space=vmem, size = 0x3000, scoped, tag = 'output window, operand 0']
    %6 = vsyncpa [#allocation3], 0
    %s7 = scalar_lea.sflag [#allocation3], 1
    %8 = vsyncpa %s7, 0
    %9 = vsyncpa [#allocation4], 0
    %s10 = scalar_lea.sflag [#allocation4], 1
    %11 = vsyncpa %s10, 0
    loop: start=0, step=1, limit=4
    $region2: #{vit_forward.13} parent=1 // loop_pre_header
      _
    $region3: #{vit_forward.13} parent=1 // loop_header
      %s13 = sphi 0, %s17
      %p14 = scmp.ge.s32.totalorder %s13, 4
      %s20 = sphi 0, %s32
      %s21 = sphi 0, %s28
      %s22 = sphi 0, %s20
      %s23 = sphi 0, %s21
      %s24 = sphi 0, %s22
      %s25 = sphi 0, %s23
      %s35 = sphi 0, %s37
      %s38 = sphi 0, %s35
      %s39 = sphi 0, %s38
      %s55 = sphi 0, %s39
      %s63 = sphi 0, %s65
      %s66 = sphi 0, %s63
      %s67 = sphi 0, %s66
      %s83 = sphi 0, %s67
    $region4: #{vit_forward.13} parent=1 // loop_header_branch
      %16 = sbr.rel (%p14) target = $region8
    $region5: #{vit_forward.13} parent=1 // loop_body
      %s18 = ssub.s32 %s13, 1
      %s19 = ssub.s32 %s13, 2
      %s26 = sadd.s32 1, %s21
      %p27 = scmp.ge.s32.totalorder %s26, 1
      %s28 = scalar_select %p27, 0, %s26
      %s29 = sadd.s32 1, %s20
      %s30 = scalar_select %p27, %s29, %s20
      %p31 = scmp.ge.s32.totalorder %s30, 2
      %s32 = scalar_select %p31, 0, %s30
      %s33 = ssub.s32 %s20, %s32
      %p34 = scmp.eq.s32.totalorder %s33, 0
      %s36 = sadd.s32 %s35, 1
      %s37 = scalar_select %p34, %s35, %s36
      %p40 = pneg %p34
      %p41 = scmp.eq.s32.totalorder %s13, 1
      %p42 = por %p40, %p41
      %p43 = scmp.ne.s32.totalorder %s35, %s38
      %p44 = scmp.eq.s32.totalorder %s13, 0
      %p45 = por %p43, %p44
      %p46 = scmp.ne.s32.totalorder %s35, %s38
      %p47 = scmp.eq.s32.totalorder %s18, 1
      %p48 = por %p46, %p47
      %p49 = scmp.ne.s32.totalorder %s38, %s39
      %p50 = scmp.eq.s32.totalorder %s18, 0
      %p51 = por %p49, %p50
      %p52 = scmp.ne.s32.totalorder %s38, %s39
      %p53 = scmp.eq.s32.totalorder %s19, 1
      %p54 = por %p52, %p53
      %p56 = scmp.ne.s32.totalorder %s39, %s55
      %p57 = scmp.eq.s32.totalorder %s19, 0
      %p58 = por %p56, %p57
      %s59 = ssub.s32 %s20, %s32
      %s60 = ssub.s32 %s21, %s28
      %s61 = sor.u32 %s59, %s60
      %p62 = scmp.eq.s32.totalorder %s61, 0
      %s64 = sadd.s32 %s63, 1
      %s65 = scalar_select %p62, %s63, %s64
      %p68 = pneg %p62
      %p69 = scmp.eq.s32.totalorder %s13, 1
      %p70 = por %p68, %p69
      %p71 = scmp.ne.s32.totalorder %s63, %s66
      %p72 = scmp.eq.s32.totalorder %s13, 0
      %p73 = por %p71, %p72
      %p74 = scmp.ne.s32.totalorder %s63, %s66
      %p75 = scmp.eq.s32.totalorder %s18, 1
      %p76 = por %p74, %p75
      %p77 = scmp.ne.s32.totalorder %s66, %s67
      %p78 = scmp.eq.s32.totalorder %s18, 0
      %p79 = por %p77, %p78
      %p80 = scmp.ne.s32.totalorder %s66, %s67
      %p81 = scmp.eq.s32.totalorder %s19, 1
      %p82 = por %p80, %p81
      %p84 = scmp.ne.s32.totalorder %s67, %s83
      %p85 = scmp.eq.s32.totalorder %s19, 0
      %p86 = por %p84, %p85
      %p87 = scmp.le.s32.totalorder 1, %s13
      %p88 = scmp.lt.s32.totalorder %s13, 3
      %p89 = pnand %p87, %p88
      %p90 = pneg %p89
      // Predicated region
      $region9: #{vit_forward.13} parent=5 // pred_check
        _
      $region10: #{vit_forward.13} parent=5 // pred_check_branch
        %92 = sbr.rel (%p89) target = $region12
      $region11: #{vit_forward.13} parent=5 // pred_region
        %s93 = ssub.s32 %s13, 1
      $region12: #{vit_forward.13} parent=5 // pred_fallthru
        _
      %p94 = scmp.lt.s32.totalorder %s13, 2
      // Predicated region
      $region13: #{vit_forward.13} parent=5 // pred_check
        %p95 = pneg %p94
      $region14: #{vit_forward.13} parent=5 // pred_check_branch
        %97 = sbr.rel (%p95) target = $region16
      $region15: #{vit_forward.13} parent=5 // pred_region
        // Predicated region
        $region17: #{vit_forward.13} parent=15 // pred_check
          %p98 = pneg %p45
        $region18: #{vit_forward.13} parent=15 // pred_check_branch
          %100 = sbr.rel (%p98) target = $region20
        $region19: #{vit_forward.13} parent=15 // pred_region
          %s101 = sand.u32 %s35, 1
          %s102 = scalar_lea.sflag [#allocation3], %s101
          %s103 = sand.u32 %s35, 1
          %s104 = smul.addr %s103, 144
          %s105 = scalar_lea.vmem [#allocation2], %s104
          %s107 = ssub.s32 2304, 2304
          %108 = vsyncadd %s102, %s107
          %s109 = smul.addr %s20, 36
          %s110 = smul.addr %s109, 64
          %s111 = scalar_lea.hbm %s0, %s110
          %s112 = sshll.u32 %s105, 4
          %s113 = int_to_ptr.vmem [resolvable:$true] %s112
          %118 = dma.hbm_to_vmem [thread:$0]  %s111, 2304, %s113, %s102, 64, 64, 4
        $region20: #{vit_forward.13} parent=15 // pred_fallthru
          _
      $region16: #{vit_forward.13} parent=5 // pred_fallthru
        _
      %p119 = scmp.le.s32.totalorder 1, %s13
      %p120 = scmp.lt.s32.totalorder %s13, 3
      %p121 = pnand %p119, %p120
      %p122 = pneg %p121
      // Predicated region
      $region21: #{vit_forward.13} parent=5 // pred_check
        _
      $region22: #{vit_forward.13} parent=5 // pred_check_branch
        %124 = sbr.rel (%p121) target = $region24
      $region23: #{vit_forward.13} parent=5 // pred_region
        %s125 = ssub.s32 %s13, 1
        %s126 = sand.u32 %s38, 1
        %s127 = scalar_lea.sflag [#allocation3], %s126
        %s128 = sand.u32 %s38, 1
        %s129 = smul.addr %s128, 144
        %s130 = scalar_lea.vmem [#allocation2], %s129
        // Predicated region
        $region25: #{vit_forward.13} parent=23 // pred_check
          %p131 = pneg %p51
        $region26: #{vit_forward.13} parent=23 // pred_check_branch
          %133 = sbr.rel (%p131) target = $region28
        $region27: #{vit_forward.13} parent=23 // pred_region
          %134 = dma.done %s127, 2304
        $region28: #{vit_forward.13} parent=23 // pred_fallthru
          _
        %s135 = sand.u32 %s38, 1
        %s136 = scalar_lea.sflag [#allocation3], %s135
        %s137 = sand.u32 %s38, 1
        %s138 = smul.addr %s137, 144
        %s139 = scalar_lea.vmem [#allocation2], %s138
        %p140 = pneg %p51
        %p141 = pneg %p48
        %p142 = pneg %p79
        %p143 = pneg %p76
        %s144 = sand.u32 %s66, 1
        %s145 = scalar_lea.sflag [#allocation4], %s144
        %s146 = sand.u32 %s66, 1
        %s147 = smul.addr %s146, 12
        %s148 = scalar_lea.vmem [#allocation5], %s147
        %s149 = smul.u32 3, %s23
        %v151 = vld [vmem:[%s130] sm:$0xf]
        %v152 = vld [vmem:[%s130 + $0x4] sm:$0xf]
        %v153 = vld [vmem:[%s130 + $0x8] sm:$0xf]
        %v154 = vld [vmem:[%s130 + $0xc] sm:$0xf]
        %v155 = vld [vmem:[%s130 + $0x10] sm:$0xf]
        %v156 = vld [vmem:[%s130 + $0x14] sm:$0xf]
        %v157 = vld [vmem:[%s130 + $0x18] sm:$0xf]
        %v158 = vld [vmem:[%s130 + $0x1c] sm:$0xf]
        %v159 = vld [vmem:[%s130 + $0x20] sm:$0xf]
        %v160 = vld [vmem:[%s130 + $0x24] sm:$0xf]
        %v161 = vld [vmem:[%s130 + $0x28] sm:$0xf]
        %v162 = vld [vmem:[%s130 + $0x2c] sm:$0xf]
        %s163 = scalar_lea.vmem %s130, 48 [#allocation2]
        %v164 = vld [vmem:[%s163] sm:$0xf]
        %v165 = vld [vmem:[%s163 + $0x4] sm:$0xf]
        %v166 = vld [vmem:[%s163 + $0x8] sm:$0xf]
        %v167 = vld [vmem:[%s163 + $0xc] sm:$0xf]
        %v168 = vld [vmem:[%s163 + $0x10] sm:$0xf]
        %v169 = vld [vmem:[%s163 + $0x14] sm:$0xf]
        %v170 = vld [vmem:[%s163 + $0x18] sm:$0xf]
        %v171 = vld [vmem:[%s163 + $0x1c] sm:$0xf]
        %v172 = vld [vmem:[%s163 + $0x20] sm:$0xf]
        %v173 = vld [vmem:[%s163 + $0x24] sm:$0xf]
        %v174 = vld [vmem:[%s163 + $0x28] sm:$0xf]
        %v175 = vld [vmem:[%s163 + $0x2c] sm:$0xf]
        %s176 = scalar_lea.vmem %s130, 96 [#allocation2]
        %v177 = vld [vmem:[%s176] sm:$0xf]
        %v178 = vld [vmem:[%s176 + $0x4] sm:$0xf]
        %v179 = vld [vmem:[%s176 + $0x8] sm:$0xf]
        %v180 = vld [vmem:[%s176 + $0xc] sm:$0xf]
        %v181 = vld [vmem:[%s176 + $0x10] sm:$0xf]
        %v182 = vld [vmem:[%s176 + $0x14] sm:$0xf]
        %v183 = vld [vmem:[%s176 + $0x18] sm:$0xf]
        %v184 = vld [vmem:[%s176 + $0x1c] sm:$0xf]
        %v185 = vld [vmem:[%s176 + $0x20] sm:$0xf]
        %v186 = vld [vmem:[%s176 + $0x24] sm:$0xf]
        %v187 = vld [vmem:[%s176 + $0x28] sm:$0xf]
        %v188 = vld [vmem:[%s176 + $0x2c] sm:$0xf]
        %v192 = vunpack.c.l.b16 %v151
        %v193 = vunpack.c.l.b16 %v152
        %v194 = vunpack.c.l.b16 %v153
        %v195 = vpack.c.b16 %v193, %v192
        %v196 = vpack.c.b16 %v194, %v194
        %v200 = vunpack.c.l.b16 %v164
        %v201 = vunpack.c.l.b16 %v165
        %v202 = vunpack.c.l.b16 %v166
        %v203 = vpack.c.b16 %v201, %v200
        %v204 = vpack.c.b16 %v202, %v202
        %vm205 = vcmask 64512
        %v207 = vsel %vm205, %v195, 0
        %v210 = vsel %vm205, %v196, 0
        %v213 = vsel %vm205, %v203, 0
        %v216 = vsel %vm205, %v204, 0
        %218 = vmatprep.subr.bf16.mxu0 0
        %219 = vmatpush1.bf16.xpose.msra.mxu0 %v213
        %220 = vmatprep.subr.bf16.mxu0 0
        %221 = vmatpush1.bf16.xpose.msra.mxu0 %v216
        %222 = vmatprep.subr.bf16.mxu0 0
        %223 = vmatpush1.bf16.xpose.msra.mxu0 0
        %224 = vmatprep.subr.bf16.mxu0 0
        %225 = vmatpush1.bf16.xpose.msra.mxu0 0
        %226 = vmatprep.subr.bf16.mxu0 0
        %227 = vmatpush1.bf16.xpose.msra.mxu0 0
        %228 = vmatprep.subr.bf16.mxu0 0
        %229 = vmatpush1.bf16.xpose.msra.mxu0 0
        %230 = vmatprep.subr.bf16.mxu0 0
        %231 = vmatpush1.bf16.xpose.msra.mxu0 0
        %232 = vmatprep.subr.bf16.mxu0 0
        %233 = vmatpush1.bf16.xpose.msra.mxu0 0
        %234 = vmatprep.subr.bf16.mxu0 0
        %235 = vmatpush1.bf16.xpose.msra.mxu0 0
        %236 = vmatprep.subr.bf16.mxu0 0
        %237 = vmatpush1.bf16.xpose.msra.mxu0 0
        %238 = vmatprep.subr.bf16.mxu0 0
        %239 = vmatpush1.bf16.xpose.msra.mxu0 0
        %240 = vmatprep.subr.bf16.mxu0 0
        %241 = vmatpush1.bf16.xpose.msra.mxu0 0
        %242 = vmatprep.subr.bf16.mxu0 0
        %243 = vmatpush1.bf16.xpose.msra.mxu0 0
        %244 = vmatprep.subr.bf16.mxu0 0
        %245 = vmatpush1.bf16.xpose.msra.mxu0 0
        %246 = vmatprep.subr.bf16.mxu0 0
        %247 = vmatpush1.bf16.xpose.msra.mxu0 0
        %248 = vmatprep.subr.bf16.mxu0 0
        %249 = vmatpush1.bf16.xpose.msra.mxu0 0
        %250 = vmatprep.mubr.bf16.mxu0 0
        %251 = vmatmul.mubr.bf16.gmra.mrb[0].mxu0 %v207
        %v252 = vpop.f32.mrb[0].mxu0
        %v253 = vadd.f32 0.0, %v252
        %v254 = vpop.f32.mrb[0].mxu0
        %v255 = vpop.f32.mrb[0].mxu0
        %v256 = vadd.f32 0.0, %v255
        %v257 = vpop.f32.mrb[0].mxu0
        %258 = vmatprep.mubr.bf16.mxu0 0
        %259 = vmatmul.mubr.bf16.gmra.mrb[0].mxu0 %v210
        %v260 = vpop.f32.mrb[0].mxu0
        %v261 = vadd.f32 0.0, %v260
        %v262 = vpop.f32.mrb[0].mxu0
        %v263 = vpop.f32.mrb[0].mxu0
        %v264 = vpop.f32.mrb[0].mxu0
        %265 = vdwg.mxu0
        %v269 = vunpack.c.l.b16 %v154
        %v270 = vunpack.c.l.b16 %v155
        %v271 = vunpack.c.l.b16 %v156
        %v272 = vpack.c.b16 %v270, %v269
        %v273 = vpack.c.b16 %v271, %v271
        %v277 = vunpack.c.l.b16 %v167
        %v278 = vunpack.c.l.b16 %v168
        %v279 = vunpack.c.l.b16 %v169
        %v280 = vpack.c.b16 %v278, %v277
        %v281 = vpack.c.b16 %v279, %v279
        %v283 = vsel %vm205, %v272, 0
        %v286 = vsel %vm205, %v273, 0
        %v289 = vsel %vm205, %v280, 0
        %v292 = vsel %vm205, %v281, 0
        %294 = vmatprep.subr.bf16.mxu0 0
        %295 = vmatpush1.bf16.xpose.msra.mxu0 %v289
        %296 = vmatprep.subr.bf16.mxu0 0
        %297 = vmatpush1.bf16.xpose.msra.mxu0 %v292
        %298 = vmatprep.subr.bf16.mxu0 0
        %299 = vmatpush1.bf16.xpose.msra.mxu0 0
        %300 = vmatprep.subr.bf16.mxu0 0
        %301 = vmatpush1.bf16.xpose.msra.mxu0 0
        %302 = vmatprep.subr.bf16.mxu0 0
        %303 = vmatpush1.bf16.xpose.msra.mxu0 0
        %304 = vmatprep.subr.bf16.mxu0 0
        %305 = vmatpush1.bf16.xpose.msra.mxu0 0
        %306 = vmatprep.subr.bf16.mxu0 0
        %307 = vmatpush1.bf16.xpose.msra.mxu0 0
        %308 = vmatprep.subr.bf16.mxu0 0
        %309 = vmatpush1.bf16.xpose.msra.mxu0 0
        %310 = vmatprep.subr.bf16.mxu0 0
        %311 = vmatpush1.bf16.xpose.msra.mxu0 0
        %312 = vmatprep.subr.bf16.mxu0 0
        %313 = vmatpush1.bf16.xpose.msra.mxu0 0
        %314 = vmatprep.subr.bf16.mxu0 0
        %315 = vmatpush1.bf16.xpose.msra.mxu0 0
        %316 = vmatprep.subr.bf16.mxu0 0
        %317 = vmatpush1.bf16.xpose.msra.mxu0 0
        %318 = vmatprep.subr.bf16.mxu0 0
        %319 = vmatpush1.bf16.xpose.msra.mxu0 0
        %320 = vmatprep.subr.bf16.mxu0 0
        %321 = vmatpush1.bf16.xpose.msra.mxu0 0
        %322 = vmatprep.subr.bf16.mxu0 0
        %323 = vmatpush1.bf16.xpose.msra.mxu0 0
        %324 = vmatprep.subr.bf16.mxu0 0
        %325 = vmatpush1.bf16.xpose.msra.mxu0 0
        %326 = vmatprep.mubr.bf16.mxu0 0
        %327 = vmatmul.mubr.bf16.gmra.mrb[0].mxu0 %v283
        %v328 = vpop.f32.mrb[0].mxu0
        %v329 = vadd.f32 0.0, %v328
        %v330 = vpop.f32.mrb[0].mxu0
        %v331 = vpop.f32.mrb[0].mxu0
        %v332 = vadd.f32 0.0, %v331
        %v333 = vpop.f32.mrb[0].mxu0
        %334 = vmatprep.mubr.bf16.mxu0 0
        %335 = vmatmul.mubr.bf16.gmra.mrb[0].mxu0 %v286
        %v336 = vpop.f32.mrb[0].mxu0
        %v337 = vadd.f32 0.0, %v336
        %v338 = vpop.f32.mrb[0].mxu0
        %v339 = vpop.f32.mrb[0].mxu0
        %v340 = vpop.f32.mrb[0].mxu0
        %341 = vdwg.mxu0
        %v345 = vunpack.c.l.b16 %v157
        %v346 = vunpack.c.l.b16 %v158
        %v347 = vunpack.c.l.b16 %v159
        %v348 = vpack.c.b16 %v346, %v345
        %v349 = vpack.c.b16 %v347, %v347
        %v353 = vunpack.c.l.b16 %v170
        %v354 = vunpack.c.l.b16 %v171
        %v355 = vunpack.c.l.b16 %v172
        %v356 = vpack.c.b16 %v354, %v353
        %v357 = vpack.c.b16 %v355, %v355
        %v359 = vsel %vm205, %v348, 0
        %v362 = vsel %vm205, %v349, 0
        %v365 = vsel %vm205, %v356, 0
        %v368 = vsel %vm205, %v357, 0
        %370 = vmatprep.subr.bf16.mxu0 0
        %371 = vmatpush1.bf16.xpose.msra.mxu0 %v365
        %372 = vmatprep.subr.bf16.mxu0 0
        %373 = vmatpush1.bf16.xpose.msra.mxu0 %v368
        %374 = vmatprep.subr.bf16.mxu0 0
        %375 = vmatpush1.bf16.xpose.msra.mxu0 0
        %376 = vmatprep.subr.bf16.mxu0 0
        %377 = vmatpush1.bf16.xpose.msra.mxu0 0
        %378 = vmatprep.subr.bf16.mxu0 0
        %379 = vmatpush1.bf16.xpose.msra.mxu0 0
        %380 = vmatprep.subr.bf16.mxu0 0
        %381 = vmatpush1.bf16.xpose.msra.mxu0 0
        %382 = vmatprep.subr.bf16.mxu0 0
        %383 = vmatpush1.bf16.xpose.msra.mxu0 0
        %384 = vmatprep.subr.bf16.mxu0 0
        %385 = vmatpush1.bf16.xpose.msra.mxu0 0
        %386 = vmatprep.subr.bf16.mxu0 0
        %387 = vmatpush1.bf16.xpose.msra.mxu0 0
        %388 = vmatprep.subr.bf16.mxu0 0
        %389 = vmatpush1.bf16.xpose.msra.mxu0 0
        %390 = vmatprep.subr.bf16.mxu0 0
        %391 = vmatpush1.bf16.xpose.msra.mxu0 0
        %392 = vmatprep.subr.bf16.mxu0 0
        %393 = vmatpush1.bf16.xpose.msra.mxu0 0
        %394 = vmatprep.subr.bf16.mxu0 0
        %395 = vmatpush1.bf16.xpose.msra.mxu0 0
        %396 = vmatprep.subr.bf16.mxu0 0
        %397 = vmatpush1.bf16.xpose.msra.mxu0 0
        %398 = vmatprep.subr.bf16.mxu0 0
        %399 = vmatpush1.bf16.xpose.msra.mxu0 0
        %400 = vmatprep.subr.bf16.mxu0 0
        %401 = vmatpush1.bf16.xpose.msra.mxu0 0
        %402 = vmatprep.mubr.bf16.mxu0 0
        %403 = vmatmul.mubr.bf16.gmra.mrb[0].mxu0 %v359
        %v404 = vpop.f32.mrb[0].mxu0
        %v405 = vadd.f32 0.0, %v404
        %v406 = vpop.f32.mrb[0].mxu0
        %v407 = vpop.f32.mrb[0].mxu0
        %v408 = vadd.f32 0.0, %v407
        %v409 = vpop.f32.mrb[0].mxu0
        %410 = vmatprep.mubr.bf16.mxu0 0
        %411 = vmatmul.mubr.bf16.gmra.mrb[0].mxu0 %v362
        %v412 = vpop.f32.mrb[0].mxu0
        %v413 = vadd.f32 0.0, %v412
        %v414 = vpop.f32.mrb[0].mxu0
        %v415 = vpop.f32.mrb[0].mxu0
        %v416 = vpop.f32.mrb[0].mxu0
        %417 = vdwg.mxu0
        %v421 = vunpack.c.l.b16 %v160
        %v422 = vunpack.c.l.b16 %v161
        %v423 = vunpack.c.l.b16 %v162
        %v424 = vpack.c.b16 %v422, %v421
        %v425 = vpack.c.b16 %v423, %v423
        %v429 = vunpack.c.l.b16 %v173
        %v430 = vunpack.c.l.b16 %v174
        %v431 = vunpack.c.l.b16 %v175
        %v432 = vpack.c.b16 %v430, %v429
        %v433 = vpack.c.b16 %v431, %v431
        %v435 = vsel %vm205, %v424, 0
        %v438 = vsel %vm205, %v425, 0
        %v441 = vsel %vm205, %v432, 0
        %v444 = vsel %vm205, %v433, 0
        %446 = vmatprep.subr.bf16.mxu0 0
        %447 = vmatpush1.bf16.xpose.msra.mxu0 %v441
        %448 = vmatprep.subr.bf16.mxu0 0
        %449 = vmatpush1.bf16.xpose.msra.mxu0 %v444
        %450 = vmatprep.subr.bf16.mxu0 0
        %451 = vmatpush1.bf16.xpose.msra.mxu0 0
        %452 = vmatprep.subr.bf16.mxu0 0
        %453 = vmatpush1.bf16.xpose.msra.mxu0 0
        %454 = vmatprep.subr.bf16.mxu0 0
        %455 = vmatpush1.bf16.xpose.msra.mxu0 0
        %456 = vmatprep.subr.bf16.mxu0 0
        %457 = vmatpush1.bf16.xpose.msra.mxu0 0
        %458 = vmatprep.subr.bf16.mxu0 0
        %459 = vmatpush1.bf16.xpose.msra.mxu0 0
        %460 = vmatprep.subr.bf16.mxu0 0
        %461 = vmatpush1.bf16.xpose.msra.mxu0 0
        %462 = vmatprep.subr.bf16.mxu0 0
        %463 = vmatpush1.bf16.xpose.msra.mxu0 0
        %464 = vmatprep.subr.bf16.mxu0 0
        %465 = vmatpush1.bf16.xpose.msra.mxu0 0
        %466 = vmatprep.subr.bf16.mxu0 0
        %467 = vmatpush1.bf16.xpose.msra.mxu0 0
        %468 = vmatprep.subr.bf16.mxu0 0
        %469 = vmatpush1.bf16.xpose.msra.mxu0 0
        %470 = vmatprep.subr.bf16.mxu0 0
        %471 = vmatpush1.bf16.xpose.msra.mxu0 0
        %472 = vmatprep.subr.bf16.mxu0 0
        %473 = vmatpush1.bf16.xpose.msra.mxu0 0
        %474 = vmatprep.subr.bf16.mxu0 0
        %475 = vmatpush1.bf16.xpose.msra.mxu0 0
        %476 = vmatprep.subr.bf16.mxu0 0
        %477 = vmatpush1.bf16.xpose.msra.mxu0 0
        %478 = vmatprep.mubr.bf16.mxu0 0
        %479 = vmatmul.mubr.bf16.gmra.mrb[0].mxu0 %v435
        %v480 = vpop.f32.mrb[0].mxu0
        %v481 = vadd.f32 0.0, %v480
        %v482 = vpop.f32.mrb[0].mxu0
        %v483 = vpop.f32.mrb[0].mxu0
        %v484 = vadd.f32 0.0, %v483
        %v485 = vpop.f32.mrb[0].mxu0
        %486 = vmatprep.mubr.bf16.mxu0 0
        %487 = vmatmul.mubr.bf16.gmra.mrb[0].mxu0 %v438
        %v488 = vpop.f32.mrb[0].mxu0
        %v489 = vadd.f32 0.0, %v488
        %v490 = vpop.f32.mrb[0].mxu0
        %v491 = vpop.f32.mrb[0].mxu0
        %v492 = vpop.f32.mrb[0].mxu0
        %493 = vdwg.mxu0
        %v494 = vmul.f32 %v253, 2.828427
        %v495 = vmul.f32 %v256, 2.828427
        %v496 = vmul.f32 %v261, 2.828427
        %v497 = vmul.f32 %v329, 2.828427
        %v498 = vmul.f32 %v332, 2.828427
        %v499 = vmul.f32 %v337, 2.828427
        %v500 = vmul.f32 %v405, 2.828427
        %v501 = vmul.f32 %v408, 2.828427
        %v502 = vmul.f32 %v413, 2.828427
        %v503 = vmul.f32 %v481, 2.828427
        %v504 = vmul.f32 %v484, 2.828427
        %v505 = vmul.f32 %v489, 2.828427
        %v506 = vlaneseq
        %v507 = vand.u32 %v506, 127
        %vm508 = vcmp.lt.s32.totalorder %v507, 17
        %v509 = vsel %vm508, %v494, -1e+30
        %v510 = vsel %vm508, %v495, -1e+30
        %v511 = vsel %vm508, %v496, -1e+30
        %v512 = vsel %vm508, %v497, -1e+30
        %v513 = vsel %vm508, %v498, -1e+30
        %v514 = vsel %vm508, %v499, -1e+30
        %v515 = vsel %vm508, %v500, -1e+30
        %v516 = vsel %vm508, %v501, -1e+30
        %v517 = vsel %vm508, %v502, -1e+30
        %v518 = vsel %vm508, %v503, -1e+30
        %v519 = vsel %vm508, %v504, -1e+30
        %v520 = vsel %vm508, %v505, -1e+30
        %vm521 = vcmask 195584
        %v522 = vsel %vm521, %v509, -inf
        %523 = vmax.xlane.f32.xlu0 %v522
        %v524 = vpop.xlane.xlu0 %523
        %v525 = vsel %vm521, %v510, -inf
        %526 = vmax.xlane.f32.xlu0 %v525
        %v527 = vpop.xlane.xlu0 %526
        %v528 = vsel %vm521, %v511, -inf
        %529 = vmax.xlane.f32.xlu0 %v528
        %v530 = vpop.xlane.xlu0 %529
        %v531 = vsel %vm521, %v512, -inf
        %532 = vmax.xlane.f32.xlu0 %v531
        %v533 = vpop.xlane.xlu0 %532
        %v534 = vsel %vm521, %v513, -inf
        %535 = vmax.xlane.f32.xlu0 %v534
        %v536 = vpop.xlane.xlu0 %535
        %v537 = vsel %vm521, %v514, -inf
        %538 = vmax.xlane.f32.xlu0 %v537
        %v539 = vpop.xlane.xlu0 %538
        %v540 = vsel %vm521, %v515, -inf
        %541 = vmax.xlane.f32.xlu0 %v540
        %v542 = vpop.xlane.xlu0 %541
        %v543 = vsel %vm521, %v516, -inf
        %544 = vmax.xlane.f32.xlu0 %v543
        %v545 = vpop.xlane.xlu0 %544
        %v546 = vsel %vm521, %v517, -inf
        %547 = vmax.xlane.f32.xlu0 %v546
        %v548 = vpop.xlane.xlu0 %547
        %v549 = vsel %vm521, %v518, -inf
        %550 = vmax.xlane.f32.xlu0 %v549
        %v551 = vpop.xlane.xlu0 %550
        %v552 = vsel %vm521, %v519, -inf
        %553 = vmax.xlane.f32.xlu0 %v552
        %v554 = vpop.xlane.xlu0 %553
        %v555 = vsel %vm521, %v520, -inf
        %556 = vmax.xlane.f32.xlu0 %v555
        %v557 = vpop.xlane.xlu0 %556
        %v558 = vsub.f32 %v509, %v524
        %v559 = vsub.f32 %v510, %v527
        %v560 = vsub.f32 %v511, %v530
        %v561 = vsub.f32 %v512, %v533
        %v562 = vsub.f32 %v513, %v536
        %v563 = vsub.f32 %v514, %v539
        %v564 = vsub.f32 %v515, %v542
        %v565 = vsub.f32 %v516, %v545
        %v566 = vsub.f32 %v517, %v548
        %v567 = vsub.f32 %v518, %v551
        %v568 = vsub.f32 %v519, %v554
        %v569 = vsub.f32 %v520, %v557
        %v570 = vmul.f32 %v558, 1.442695
        %v571 = vpow.pop %v570
        %v572 = vmul.f32 %v559, 1.442695
        %v573 = vpow.pop %v572
        %v574 = vmul.f32 %v560, 1.442695
        %v575 = vpow.pop %v574
        %v576 = vmul.f32 %v561, 1.442695
        %v577 = vpow.pop %v576
        %v578 = vmul.f32 %v562, 1.442695
        %v579 = vpow.pop %v578
        %v580 = vmul.f32 %v563, 1.442695
        %v581 = vpow.pop %v580
        %v582 = vmul.f32 %v564, 1.442695
        %v583 = vpow.pop %v582
        %v584 = vmul.f32 %v565, 1.442695
        %v585 = vpow.pop %v584
        %v586 = vmul.f32 %v566, 1.442695
        %v587 = vpow.pop %v586
        %v588 = vmul.f32 %v567, 1.442695
        %v589 = vpow.pop %v588
        %v590 = vmul.f32 %v568, 1.442695
        %v591 = vpow.pop %v590
        %v592 = vmul.f32 %v569, 1.442695
        %v593 = vpow.pop %v592
        %v594 = vsel %vm521, %v571, 0.0
        %595 = vadd.xlane.f32.xlu0 %v594
        %v596 = vpop.xlane.xlu0 %595
        %v597 = vsel %vm521, %v573, 0.0
        %598 = vadd.xlane.f32.xlu0 %v597
        %v599 = vpop.xlane.xlu0 %598
        %v600 = vsel %vm521, %v575, 0.0
        %601 = vadd.xlane.f32.xlu0 %v600
        %v602 = vpop.xlane.xlu0 %601
        %v603 = vsel %vm521, %v577, 0.0
        %604 = vadd.xlane.f32.xlu0 %v603
        %v605 = vpop.xlane.xlu0 %604
        %v606 = vsel %vm521, %v579, 0.0
        %607 = vadd.xlane.f32.xlu0 %v606
        %v608 = vpop.xlane.xlu0 %607
        %v609 = vsel %vm521, %v581, 0.0
        %610 = vadd.xlane.f32.xlu0 %v609
        %v611 = vpop.xlane.xlu0 %610
        %v612 = vsel %vm521, %v583, 0.0
        %613 = vadd.xlane.f32.xlu0 %v612
        %v614 = vpop.xlane.xlu0 %613
        %v615 = vsel %vm521, %v585, 0.0
        %616 = vadd.xlane.f32.xlu0 %v615
        %v617 = vpop.xlane.xlu0 %616
        %v618 = vsel %vm521, %v587, 0.0
        %619 = vadd.xlane.f32.xlu0 %v618
        %v620 = vpop.xlane.xlu0 %619
        %v621 = vsel %vm521, %v589, 0.0
        %622 = vadd.xlane.f32.xlu0 %v621
        %v623 = vpop.xlane.xlu0 %622
        %v624 = vsel %vm521, %v591, 0.0
        %625 = vadd.xlane.f32.xlu0 %v624
        %v626 = vpop.xlane.xlu0 %625
        %v627 = vsel %vm521, %v593, 0.0
        %628 = vadd.xlane.f32.xlu0 %v627
        %v629 = vpop.xlane.xlu0 %628
        %v630 = vrcp.pop %v596
        %v631 = vmul.f32 %v571, %v630
        %v632 = vrcp.pop %v599
        %v633 = vmul.f32 %v573, %v632
        %v634 = vrcp.pop %v602
        %v635 = vmul.f32 %v575, %v634
        %v636 = vrcp.pop %v605
        %v637 = vmul.f32 %v577, %v636
        %v638 = vrcp.pop %v608
        %v639 = vmul.f32 %v579, %v638
        %v640 = vrcp.pop %v611
        %v641 = vmul.f32 %v581, %v640
        %v642 = vrcp.pop %v614
        %v643 = vmul.f32 %v583, %v642
        %v644 = vrcp.pop %v617
        %v645 = vmul.f32 %v585, %v644
        %v646 = vrcp.pop %v620
        %v647 = vmul.f32 %v587, %v646
        %v648 = vrcp.pop %v623
        %v649 = vmul.f32 %v589, %v648
        %v650 = vrcp.pop %v626
        %v651 = vmul.f32 %v591, %v650
        %v652 = vrcp.pop %v629
        %v653 = vmul.f32 %v593, %v652
        %v654 = vpack.c.bf16 %v633, %v631
        %v655 = vpack.c.bf16 %v635, %v635
        %v656 = vpack.c.bf16 %v639, %v637
        %v657 = vpack.c.bf16 %v641, %v641
        %v658 = vpack.c.bf16 %v645, %v643
        %v659 = vpack.c.bf16 %v647, %v647
        %v660 = vpack.c.bf16 %v651, %v649
        %v661 = vpack.c.bf16 %v653, %v653
        %v665 = vunpack.c.l.b16 %v177
        %v666 = vunpack.c.l.b16 %v178
        %v667 = vunpack.c.l.b16 %v179
        %v668 = vpack.c.b16 %v666, %v665
        %v669 = vpack.c.b16 %v667, %v667
        %v672 = vsel %vm521, %v654, 0
        %v675 = vsel %vm521, %v655, 0
        %vm677 = vcmask 1043456
        %v679 = vsel %vm677, %v669, 0
        %681 = vmatprep.subr.bf16.mxu0 0
        %682 = vmatpush1.bf16.msra.mxu0 %v668
        %683 = vmatprep.subr.bf16.mxu0 0
        %684 = vmatpush1.bf16.msra.mxu0 %v679
        %685 = vmatprep.subr.bf16.mxu0 0
        %686 = vmatpush1.bf16.msra.mxu0 0
        %687 = vmatprep.subr.bf16.mxu0 0
        %688 = vmatpush1.bf16.msra.mxu0 0
        %689 = vmatprep.subr.bf16.mxu0 0
        %690 = vmatpush1.bf16.msra.mxu0 0
        %691 = vmatprep.subr.bf16.mxu0 0
        %692 = vmatpush1.bf16.msra.mxu0 0
        %693 = vmatprep.subr.bf16.mxu0 0
        %694 = vmatpush1.bf16.msra.mxu0 0
        %695 = vmatprep.subr.bf16.mxu0 0
        %696 = vmatpush1.bf16.msra.mxu0 0
        %697 = vmatprep.subr.bf16.mxu0 0
        %698 = vmatpush1.bf16.msra.mxu0 0
        %699 = vmatprep.subr.bf16.mxu0 0
        %700 = vmatpush1.bf16.msra.mxu0 0
        %701 = vmatprep.subr.bf16.mxu0 0
        %702 = vmatpush1.bf16.msra.mxu0 0
        %703 = vmatprep.subr.bf16.mxu0 0
        %704 = vmatpush1.bf16.msra.mxu0 0
        %705 = vmatprep.subr.bf16.mxu0 0
        %706 = vmatpush1.bf16.msra.mxu0 0
        %707 = vmatprep.subr.bf16.mxu0 0
        %708 = vmatpush1.bf16.msra.mxu0 0
        %709 = vmatprep.subr.bf16.mxu0 0
        %710 = vmatpush1.bf16.msra.mxu0 0
        %711 = vmatprep.subr.bf16.mxu0 0
        %712 = vmatpush1.bf16.msra.mxu0 0
        %713 = vmatprep.mubr.bf16.mxu0 0
        %714 = vmatmul.mubr.bf16.gmra.mrb[0].mxu0 %v672
        %v715 = vpop.f32.mrb[0].mxu0
        %v716 = vadd.f32 0.0, %v715
        %v717 = vpop.f32.mrb[0].mxu0
        %v718 = vpop.f32.mrb[0].mxu0
        %v719 = vadd.f32 0.0, %v718
        %v720 = vpop.f32.mrb[0].mxu0
        %721 = vmatprep.mubr.bf16.mxu0 0
        %722 = vmatmul.mubr.bf16.gmra.mrb[0].mxu0 %v675
        %v723 = vpop.f32.mrb[0].mxu0
        %v724 = vadd.f32 0.0, %v723
        %v725 = vpop.f32.mrb[0].mxu0
        %v726 = vpop.f32.mrb[0].mxu0
        %v727 = vpop.f32.mrb[0].mxu0
        %728 = vdwg.mxu0
        %v732 = vunpack.c.l.b16 %v180
        %v733 = vunpack.c.l.b16 %v181
        %v734 = vunpack.c.l.b16 %v182
        %v735 = vpack.c.b16 %v733, %v732
        %v736 = vpack.c.b16 %v734, %v734
        %v739 = vsel %vm521, %v656, 0
        %v742 = vsel %vm521, %v657, 0
        %v745 = vsel %vm677, %v736, 0
        %747 = vmatprep.subr.bf16.mxu0 0
        %748 = vmatpush1.bf16.msra.mxu0 %v735
        %749 = vmatprep.subr.bf16.mxu0 0
        %750 = vmatpush1.bf16.msra.mxu0 %v745
        %751 = vmatprep.subr.bf16.mxu0 0
        %752 = vmatpush1.bf16.msra.mxu0 0
        %753 = vmatprep.subr.bf16.mxu0 0
        %754 = vmatpush1.bf16.msra.mxu0 0
        %755 = vmatprep.subr.bf16.mxu0 0
        %756 = vmatpush1.bf16.msra.mxu0 0
        %757 = vmatprep.subr.bf16.mxu0 0
        %758 = vmatpush1.bf16.msra.mxu0 0
        %759 = vmatprep.subr.bf16.mxu0 0
        %760 = vmatpush1.bf16.msra.mxu0 0
        %761 = vmatprep.subr.bf16.mxu0 0
        %762 = vmatpush1.bf16.msra.mxu0 0
        %763 = vmatprep.subr.bf16.mxu0 0
        %764 = vmatpush1.bf16.msra.mxu0 0
        %765 = vmatprep.subr.bf16.mxu0 0
        %766 = vmatpush1.bf16.msra.mxu0 0
        %767 = vmatprep.subr.bf16.mxu0 0
        %768 = vmatpush1.bf16.msra.mxu0 0
        %769 = vmatprep.subr.bf16.mxu0 0
        %770 = vmatpush1.bf16.msra.mxu0 0
        %771 = vmatprep.subr.bf16.mxu0 0
        %772 = vmatpush1.bf16.msra.mxu0 0
        %773 = vmatprep.subr.bf16.mxu0 0
        %774 = vmatpush1.bf16.msra.mxu0 0
        %775 = vmatprep.subr.bf16.mxu0 0
        %776 = vmatpush1.bf16.msra.mxu0 0
        %777 = vmatprep.subr.bf16.mxu0 0
        %778 = vmatpush1.bf16.msra.mxu0 0
        %779 = vmatprep.mubr.bf16.mxu0 0
        %780 = vmatmul.mubr.bf16.gmra.mrb[0].mxu0 %v739
        %v781 = vpop.f32.mrb[0].mxu0
        %v782 = vadd.f32 0.0, %v781
        %v783 = vpop.f32.mrb[0].mxu0
        %v784 = vpop.f32.mrb[0].mxu0
        %v785 = vadd.f32 0.0, %v784
        %v786 = vpop.f32.mrb[0].mxu0
        %787 = vmatprep.mubr.bf16.mxu0 0
        %788 = vmatmul.mubr.bf16.gmra.mrb[0].mxu0 %v742
        %v789 = vpop.f32.mrb[0].mxu0
        %v790 = vadd.f32 0.0, %v789
        %v791 = vpop.f32.mrb[0].mxu0
        %v792 = vpop.f32.mrb[0].mxu0
        %v793 = vpop.f32.mrb[0].mxu0
        %794 = vdwg.mxu0
        %v798 = vunpack.c.l.b16 %v183
        %v799 = vunpack.c.l.b16 %v184
        %v800 = vunpack.c.l.b16 %v185
        %v801 = vpack.c.b16 %v799, %v798
        %v802 = vpack.c.b16 %v800, %v800
        %v805 = vsel %vm521, %v658, 0
        %v808 = vsel %vm521, %v659, 0
        %v811 = vsel %vm677, %v802, 0
        %813 = vmatprep.subr.bf16.mxu0 0
        %814 = vmatpush1.bf16.msra.mxu0 %v801
        %815 = vmatprep.subr.bf16.mxu0 0
        %816 = vmatpush1.bf16.msra.mxu0 %v811
        %817 = vmatprep.subr.bf16.mxu0 0
        %818 = vmatpush1.bf16.msra.mxu0 0
        %819 = vmatprep.subr.bf16.mxu0 0
        %820 = vmatpush1.bf16.msra.mxu0 0
        %821 = vmatprep.subr.bf16.mxu0 0
        %822 = vmatpush1.bf16.msra.mxu0 0
        %823 = vmatprep.subr.bf16.mxu0 0
        %824 = vmatpush1.bf16.msra.mxu0 0
        %825 = vmatprep.subr.bf16.mxu0 0
        %826 = vmatpush1.bf16.msra.mxu0 0
        %827 = vmatprep.subr.bf16.mxu0 0
        %828 = vmatpush1.bf16.msra.mxu0 0
        %829 = vmatprep.subr.bf16.mxu0 0
        %830 = vmatpush1.bf16.msra.mxu0 0
        %831 = vmatprep.subr.bf16.mxu0 0
        %832 = vmatpush1.bf16.msra.mxu0 0
        %833 = vmatprep.subr.bf16.mxu0 0
        %834 = vmatpush1.bf16.msra.mxu0 0
        %835 = vmatprep.subr.bf16.mxu0 0
        %836 = vmatpush1.bf16.msra.mxu0 0
        %837 = vmatprep.subr.bf16.mxu0 0
        %838 = vmatpush1.bf16.msra.mxu0 0
        %839 = vmatprep.subr.bf16.mxu0 0
        %840 = vmatpush1.bf16.msra.mxu0 0
        %841 = vmatprep.subr.bf16.mxu0 0
        %842 = vmatpush1.bf16.msra.mxu0 0
        %843 = vmatprep.subr.bf16.mxu0 0
        %844 = vmatpush1.bf16.msra.mxu0 0
        %845 = vmatprep.mubr.bf16.mxu0 0
        %846 = vmatmul.mubr.bf16.gmra.mrb[0].mxu0 %v805
        %v847 = vpop.f32.mrb[0].mxu0
        %v848 = vadd.f32 0.0, %v847
        %v849 = vpop.f32.mrb[0].mxu0
        %v850 = vpop.f32.mrb[0].mxu0
        %v851 = vadd.f32 0.0, %v850
        %v852 = vpop.f32.mrb[0].mxu0
        %853 = vmatprep.mubr.bf16.mxu0 0
        %854 = vmatmul.mubr.bf16.gmra.mrb[0].mxu0 %v808
        %v855 = vpop.f32.mrb[0].mxu0
        %v856 = vadd.f32 0.0, %v855
        %v857 = vpop.f32.mrb[0].mxu0
        %v858 = vpop.f32.mrb[0].mxu0
        %v859 = vpop.f32.mrb[0].mxu0
        %860 = vdwg.mxu0
        %v864 = vunpack.c.l.b16 %v186
        %v865 = vunpack.c.l.b16 %v187
        %v866 = vunpack.c.l.b16 %v188
        %v867 = vpack.c.b16 %v865, %v864
        %v868 = vpack.c.b16 %v866, %v866
        %v871 = vsel %vm521, %v660, 0
        %v874 = vsel %vm521, %v661, 0
        %v877 = vsel %vm677, %v868, 0
        %879 = vmatprep.subr.bf16.mxu0 0
        %880 = vmatpush1.bf16.msra.mxu0 %v867
        %881 = vmatprep.subr.bf16.mxu0 0
        %882 = vmatpush1.bf16.msra.mxu0 %v877
        %883 = vmatprep.subr.bf16.mxu0 0
        %884 = vmatpush1.bf16.msra.mxu0 0
        %885 = vmatprep.subr.bf16.mxu0 0
        %886 = vmatpush1.bf16.msra.mxu0 0
        %887 = vmatprep.subr.bf16.mxu0 0
        %888 = vmatpush1.bf16.msra.mxu0 0
        %889 = vmatprep.subr.bf16.mxu0 0
        %890 = vmatpush1.bf16.msra.mxu0 0
        %891 = vmatprep.subr.bf16.mxu0 0
        %892 = vmatpush1.bf16.msra.mxu0 0
        %893 = vmatprep.subr.bf16.mxu0 0
        %894 = vmatpush1.bf16.msra.mxu0 0
        %895 = vmatprep.subr.bf16.mxu0 0
        %896 = vmatpush1.bf16.msra.mxu0 0
        %897 = vmatprep.subr.bf16.mxu0 0
        %898 = vmatpush1.bf16.msra.mxu0 0
        %899 = vmatprep.subr.bf16.mxu0 0
        %900 = vmatpush1.bf16.msra.mxu0 0
        %901 = vmatprep.subr.bf16.mxu0 0
        %902 = vmatpush1.bf16.msra.mxu0 0
        %903 = vmatprep.subr.bf16.mxu0 0
        %904 = vmatpush1.bf16.msra.mxu0 0
        %905 = vmatprep.subr.bf16.mxu0 0
        %906 = vmatpush1.bf16.msra.mxu0 0
        %907 = vmatprep.subr.bf16.mxu0 0
        %908 = vmatpush1.bf16.msra.mxu0 0
        %909 = vmatprep.subr.bf16.mxu0 0
        %910 = vmatpush1.bf16.msra.mxu0 0
        %911 = vmatprep.mubr.bf16.mxu0 0
        %912 = vmatmul.mubr.bf16.gmra.mrb[0].mxu0 %v871
        %v913 = vpop.f32.mrb[0].mxu0
        %v914 = vadd.f32 0.0, %v913
        %v915 = vpop.f32.mrb[0].mxu0
        %v916 = vpop.f32.mrb[0].mxu0
        %v917 = vadd.f32 0.0, %v916
        %v918 = vpop.f32.mrb[0].mxu0
        %919 = vmatprep.mubr.bf16.mxu0 0
        %920 = vmatmul.mubr.bf16.gmra.mrb[0].mxu0 %v874
        %v921 = vpop.f32.mrb[0].mxu0
        %v922 = vadd.f32 0.0, %v921
        %v923 = vpop.f32.mrb[0].mxu0
        %v924 = vpop.f32.mrb[0].mxu0
        %v925 = vpop.f32.mrb[0].mxu0
        %926 = vdwg.mxu0
        %v927 = vpack.c.bf16 %v719, %v716
        %v928 = vpack.c.bf16 %v724, %v724
        %v931 = vunpack.c.l.b16 %v927
        %v932 = vunpack.c.h.b16 %v927
        %v933 = vunpack.c.l.b16 %v928
        %v934 = vpack.c.b16 %v931, %v931
        %v935 = vpack.c.b16 %v932, %v932
        %v936 = vpack.c.b16 %v933, %v933
        %vm940 = vcmask 60416
        %941 = vst.msk [vmem:[%s148] sm:$0xf] %vm940, %v934
        %942 = vst.msk [vmem:[%s148 + $0x4] sm:$0xf] %vm940, %v935
        %943 = vst.msk [vmem:[%s148 + $0x8] sm:$0xf] %vm940, %v936
        %v944 = vpack.c.bf16 %v785, %v782
        %v945 = vpack.c.bf16 %v790, %v790
        %v948 = vunpack.c.l.b16 %v944
        %v949 = vunpack.c.h.b16 %v944
        %v950 = vunpack.c.l.b16 %v945
        %v951 = vpack.c.b16 %v948, %v948
        %v952 = vpack.c.b16 %v949, %v949
        %v953 = vpack.c.b16 %v950, %v950
        %954 = vrot.lane.b32.xlu0 %v951, 8
        %v955 = vpop.permute.xlu0 %954
        %956 = vrot.lane.b32.xlu0 %v952, 8
        %v957 = vpop.permute.xlu0 %956
        %958 = vrot.lane.b32.xlu0 %v953, 8
        %v959 = vpop.permute.xlu0 %958
        %vm963 = vcmask 126016
        %964 = vst.msk [vmem:[%s148] sm:$0xf] %vm963, %v955
        %965 = vst.msk [vmem:[%s148 + $0x4] sm:$0xf] %vm963, %v957
        %966 = vst.msk [vmem:[%s148 + $0x8] sm:$0xf] %vm963, %v959
        %v967 = vpack.c.bf16 %v851, %v848
        %v968 = vpack.c.bf16 %v856, %v856
        %v971 = vunpack.c.l.b16 %v967
        %v972 = vunpack.c.h.b16 %v967
        %v973 = vunpack.c.l.b16 %v968
        %v974 = vpack.c.b16 %v971, %v971
        %v975 = vpack.c.b16 %v972, %v972
        %v976 = vpack.c.b16 %v973, %v973
        %977 = vrot.lane.b32.xlu0 %v974, 16
        %v978 = vpop.permute.xlu0 %977
        %979 = vrot.lane.b32.xlu0 %v975, 16
        %v980 = vpop.permute.xlu0 %979
        %981 = vrot.lane.b32.xlu0 %v976, 16
        %v982 = vpop.permute.xlu0 %981
        %vm986 = vcmask 191616
        %987 = vst.msk [vmem:[%s148] sm:$0xf] %vm986, %v978
        %988 = vst.msk [vmem:[%s148 + $0x4] sm:$0xf] %vm986, %v980
        %989 = vst.msk [vmem:[%s148 + $0x8] sm:$0xf] %vm986, %v982
        %v990 = vpack.c.bf16 %v917, %v914
        %v991 = vpack.c.bf16 %v922, %v922
        %v994 = vunpack.c.l.b16 %v990
        %v995 = vunpack.c.h.b16 %v990
        %v996 = vunpack.c.l.b16 %v991
        %v997 = vpack.c.b16 %v994, %v994
        %v998 = vpack.c.b16 %v995, %v995
        %v999 = vpack.c.b16 %v996, %v996
        %1000 = vrot.lane.b32.xlu0 %v997, 24
        %v1001 = vpop.permute.xlu0 %1000
        %1002 = vrot.lane.b32.xlu0 %v998, 24
        %v1003 = vpop.permute.xlu0 %1002
        %1004 = vrot.lane.b32.xlu0 %v999, 24
        %v1005 = vpop.permute.xlu0 %1004
        %vm1009 = vcmask 257216
        %1010 = vst.msk [vmem:[%s148] sm:$0xf] %vm1009, %v1001
        %1011 = vst.msk [vmem:[%s148 + $0x4] sm:$0xf] %vm1009, %v1003
        %1012 = vst.msk [vmem:[%s148 + $0x8] sm:$0xf] %vm1009, %v1005
        %s1013 = sand.u32 %s66, 1
        %s1014 = scalar_lea.sflag [#allocation4], %s1013
        %s1015 = sand.u32 %s66, 1
        %s1016 = smul.addr %s1015, 12
        %s1017 = scalar_lea.vmem [#allocation5], %s1016
        // Predicated region
        $region29: #{vit_forward.13} parent=23 // pred_check
          %p1018 = pneg %p76
        $region30: #{vit_forward.13} parent=23 // pred_check_branch
          %1020 = sbr.rel (%p1018) target = $region32
        $region31: #{vit_forward.13} parent=23 // pred_region
          %s1021 = smul.u32 3, %s23
          %s1023 = ssub.s32 192, 192
          %1024 = vsyncadd %s1014, %s1023
          %s1025 = smul.addr %s22, 3
          %s1026 = sadd.s32 %s1021, %s1025
          %s1027 = smul.addr %s1026, 64
          %s1028 = scalar_lea.hbm %s1, %s1027
          %s1029 = sshll.u32 %s1017, 4
          %s1030 = int_to_ptr.vmem [resolvable:$true] %s1029
          %1035 = dma.vmem_to_hbm [thread:$0]  %s1030, 192, %s1028, %s1014, 64, 64, 4
        $region32: #{vit_forward.13} parent=23 // pred_fallthru
          _
      $region24: #{vit_forward.13} parent=5 // pred_fallthru
        _
      %p1036 = scmp.le.s32.totalorder 2, %s13
      // Predicated region
      $region33: #{vit_forward.13} parent=5 // pred_check
        %p1037 = pneg %p1036
      $region34: #{vit_forward.13} parent=5 // pred_check_branch
        %1039 = sbr.rel (%p1037) target = $region36
      $region35: #{vit_forward.13} parent=5 // pred_region
        %s1040 = ssub.s32 %s13, 2
        // Predicated region
        $region37: #{vit_forward.13} parent=35 // pred_check
          %p1041 = pneg %p82
        $region38: #{vit_forward.13} parent=35 // pred_check_branch
          %1043 = sbr.rel (%p1041) target = $region40
        $region39: #{vit_forward.13} parent=35 // pred_region
          %s1044 = sand.u32 %s67, 1
          %s1045 = scalar_lea.sflag [#allocation4], %s1044
          %s1046 = sand.u32 %s67, 1
          %s1047 = smul.addr %s1046, 12
          %s1048 = scalar_lea.vmem [#allocation5], %s1047
          %1049 = dma.done %s1045, 192
        $region40: #{vit_forward.13} parent=35 // pred_fallthru
          _
      $region36: #{vit_forward.13} parent=5 // pred_fallthru
        _
    $region6: #{vit_forward.13} parent=1 // loop_footer
      %s17 = sadd.s32 1, %s13
    $region7: #{vit_forward.13} parent=1 // loop_footer_branch
      %12 = sbr.rel target = $region3
    $region8: #{vit_forward.13} parent=1 // loop_exit
      _
    %1050 = vsyncpa [#allocation3], 1
    %s1051 = scalar_lea.sflag [#allocation3], 1
    %1052 = vsyncpa %s1051, 1
    %1053 = vsyncpa [#allocation4], 1
    %s1054 = scalar_lea.sflag [#allocation4], 1
    %1055 = vsyncpa %s1054, 1

// kernel: vit_forward.16
$region0: #{vit_forward.16}
  #allocation0 [shape = 'u32[]', space=smem, size = 0x4, offset = 0x4, fixed_abs, tag = 'smem constant byte address 0x4 - core index']
  #allocation1 [shape = 'u32[144,128]{1,0:T(1,128)}', space=vmem, size = 0x12000, scoped, tag = 'internal scratch']
  #allocation2 [shape = 'f32[48,32]{1,0:T(8,128)}', space=vmem, size = 0x6000, scoped, tag = 'scratch operand']
  %s0 = inlined_call_operand.hbm [shape: bf16[48,64], index: 0, kind: input, shape index: {}]
  %s1 = inlined_call_operand.hbm [shape: bf16[64,32], index: 1, kind: input, shape index: {}]
  %s2 = inlined_call_operand.hbm [shape: f32[1,32], index: 2, kind: input, shape index: {}]
  %s3 = inlined_call_operand.hbm [shape: bf16[48,32], index: 3, kind: input, shape index: {}]
  %s4 = inlined_call_operand.hbm [shape: f32[1,32], index: 4, kind: input, shape index: {}]
  %s5 = inlined_call_operand.hbm [shape: f32[1,32], index: 5, kind: input, shape index: {}]
  %s6 = inlined_call_operand.hbm [shape: bf16[48,32], index: 6, kind: output, shape index: {}]
  %s7 = sld [smem:[#allocation0]]
  $region66: #{vit_forward.16} parent=0
    _
  %s9 = ssub.s32 1, %s7
  %s10 = scalar_select 0, %s9, %s7
  $region1: #{vit_forward.16} parent=0
    #allocation3 [shape = 'u8[12288]{0}', space=vmem, size = 0x3000, scoped, tag = 'input window, operand 0, single buffered']
    #allocation4 [shape = 's32[1]{0}', space=sflag, size = 0x4, scoped, tag = 'scoped memory for vit_forward.16']
    #allocation5 [shape = 's32[1]{0}', space=sflag, size = 0x4, scoped, tag = 'scoped memory for vit_forward.16']
    #allocation6 [shape = 'u8[16384]{0}', space=vmem, size = 0x4000, scoped, tag = 'input window, operand 1, single buffered']
    #allocation7 [shape = 's32[1]{0}', space=sflag, size = 0x4, scoped, tag = 'scoped memory for vit_forward.16']
    #allocation8 [shape = 'u8[512]{0}', space=vmem, size = 0x400, scoped, tag = 'input window, operand 2, single buffered']
    #allocation9 [shape = 'u8[12288]{0}', space=vmem, size = 0x3000, scoped, tag = 'input window, operand 3, single buffered']
    #allocation10 [shape = 's32[1]{0}', space=sflag, size = 0x4, scoped, tag = 'scoped memory for vit_forward.16']
    #allocation11 [shape = 'u8[512]{0}', space=vmem, size = 0x400, scoped, tag = 'input window, operand 4, single buffered']
    #allocation12 [shape = 'u8[512]{0}', space=vmem, size = 0x400, scoped, tag = 'input window, operand 5, single buffered']
    #allocation13 [shape = 's32[1]{0}', space=sflag, size = 0x4, scoped, tag = 'scoped memory for vit_forward.16']
    #allocation14 [shape = 'u8[12288]{0}', space=vmem, size = 0x3000, scoped, tag = 'output window, operand 0, single buffered']
    %11 = vsyncpa [#allocation4], 0
    %12 = vsyncpa [#allocation7], 0
    %13 = vsyncpa [#allocation10], 0
    %14 = vsyncpa [#allocation13], 0
    %15 = vsyncpa [#allocation5], 0
    // Predicated region
    $region2: #{vit_forward.16} parent=1 // pred_check
      _
    $region3: #{vit_forward.16} parent=1 // pred_check_branch
      %17 = sbr.rel (0) target = $region5
    $region4: #{vit_forward.16} parent=1 // pred_region
      %s19 = ssub.s32 384, 384
      %20 = vsyncadd [#allocation4], %s19
      %s21 = sshll.u32 [#allocation3], 4
      %s22 = int_to_ptr.vmem [resolvable:$true] %s21
      %27 = dma.hbm_to_vmem [thread:$0]  %s0, 384, %s22, [#allocation4], 64, 64, 4
    $region5: #{vit_forward.16} parent=1 // pred_fallthru
      _
    // Predicated region
    $region6: #{vit_forward.16} parent=1 // pred_check
      _
    $region7: #{vit_forward.16} parent=1 // pred_check_branch
      %29 = sbr.rel (0) target = $region9
    $region8: #{vit_forward.16} parent=1 // pred_region
      %s31 = ssub.s32 512, 512
      %32 = vsyncadd [#allocation7], %s31
      %s33 = sshll.u32 [#allocation6], 4
      %s34 = int_to_ptr.vmem [resolvable:$true] %s33
      %39 = dma.hbm_to_vmem [thread:$0]  %s1, 512, %s34, [#allocation7], 64, 64, 4
    $region9: #{vit_forward.16} parent=1 // pred_fallthru
      _
    // Predicated region
    $region10: #{vit_forward.16} parent=1 // pred_check
      _
    $region11: #{vit_forward.16} parent=1 // pred_check_branch
      %41 = sbr.rel (0) target = $region13
    $region12: #{vit_forward.16} parent=1 // pred_region
      %s43 = ssub.s32 16, 16
      %44 = vsyncadd [#allocation7], %s43
      %s46 = sshll.u32 [#allocation8], 4
      %s47 = int_to_ptr.vmem [resolvable:$true] %s46
      %49 = dma.hbm_to_vmem [thread:$0]  %s2, 16, %s47, [#allocation7]
    $region13: #{vit_forward.16} parent=1 // pred_fallthru
      _
    // Predicated region
    $region14: #{vit_forward.16} parent=1 // pred_check
      _
    $region15: #{vit_forward.16} parent=1 // pred_check_branch
      %51 = sbr.rel (0) target = $region17
    $region16: #{vit_forward.16} parent=1 // pred_region
      %s53 = ssub.s32 384, 384
      %54 = vsyncadd [#allocation10], %s53
      %s55 = sshll.u32 [#allocation9], 4
      %s56 = int_to_ptr.vmem [resolvable:$true] %s55
      %61 = dma.hbm_to_vmem [thread:$0]  %s3, 384, %s56, [#allocation10], 64, 64, 4
    $region17: #{vit_forward.16} parent=1 // pred_fallthru
      _
    // Predicated region
    $region18: #{vit_forward.16} parent=1 // pred_check
      _
    $region19: #{vit_forward.16} parent=1 // pred_check_branch
      %63 = sbr.rel (0) target = $region21
    $region20: #{vit_forward.16} parent=1 // pred_region
      %s65 = ssub.s32 16, 16
      %66 = vsyncadd [#allocation10], %s65
      %s68 = sshll.u32 [#allocation11], 4
      %s69 = int_to_ptr.vmem [resolvable:$true] %s68
      %71 = dma.hbm_to_vmem [thread:$0]  %s4, 16, %s69, [#allocation10]
    $region21: #{vit_forward.16} parent=1 // pred_fallthru
      _
    // Predicated region
    $region22: #{vit_forward.16} parent=1 // pred_check
      _
    $region23: #{vit_forward.16} parent=1 // pred_check_branch
      %73 = sbr.rel (0) target = $region25
    $region24: #{vit_forward.16} parent=1 // pred_region
      %s75 = ssub.s32 16, 16
      %76 = vsyncadd [#allocation13], %s75
      %s78 = sshll.u32 [#allocation12], 4
      %s79 = int_to_ptr.vmem [resolvable:$true] %s78
      %81 = dma.hbm_to_vmem [thread:$0]  %s5, 16, %s79, [#allocation13]
    $region25: #{vit_forward.16} parent=1 // pred_fallthru
      _
    // Predicated region
    $region26: #{vit_forward.16} parent=1 // pred_check
      _
    $region27: #{vit_forward.16} parent=1 // pred_check_branch
      %83 = sbr.rel (0) target = $region29
    $region28: #{vit_forward.16} parent=1 // pred_region
      %84 = dma.done [#allocation4], 384
    $region29: #{vit_forward.16} parent=1 // pred_fallthru
      _
    // Predicated region
    $region30: #{vit_forward.16} parent=1 // pred_check
      _
    $region31: #{vit_forward.16} parent=1 // pred_check_branch
      %86 = sbr.rel (0) target = $region33
    $region32: #{vit_forward.16} parent=1 // pred_region
      %87 = dma.done [#allocation7], 512
    $region33: #{vit_forward.16} parent=1 // pred_fallthru
      _
    // Predicated region
    $region34: #{vit_forward.16} parent=1 // pred_check
      _
    $region35: #{vit_forward.16} parent=1 // pred_check_branch
      %89 = sbr.rel (0) target = $region37
    $region36: #{vit_forward.16} parent=1 // pred_region
      %90 = dma.done [#allocation7], 16
    $region37: #{vit_forward.16} parent=1 // pred_fallthru
      _
    // Predicated region
    $region38: #{vit_forward.16} parent=1 // pred_check
      _
    $region39: #{vit_forward.16} parent=1 // pred_check_branch
      %92 = sbr.rel (0) target = $region41
    $region40: #{vit_forward.16} parent=1 // pred_region
      %93 = dma.done [#allocation10], 384
    $region41: #{vit_forward.16} parent=1 // pred_fallthru
      _
    // Predicated region
    $region42: #{vit_forward.16} parent=1 // pred_check
      _
    $region43: #{vit_forward.16} parent=1 // pred_check_branch
      %95 = sbr.rel (0) target = $region45
    $region44: #{vit_forward.16} parent=1 // pred_region
      %96 = dma.done [#allocation10], 16
    $region45: #{vit_forward.16} parent=1 // pred_fallthru
      _
    // Predicated region
    $region46: #{vit_forward.16} parent=1 // pred_check
      _
    $region47: #{vit_forward.16} parent=1 // pred_check_branch
      %98 = sbr.rel (0) target = $region49
    $region48: #{vit_forward.16} parent=1 // pred_region
      %99 = dma.done [#allocation13], 16
    $region49: #{vit_forward.16} parent=1 // pred_fallthru
      _
    %p101 = scmp.eq.s32.totalorder 0, 0
    // Predicated region
    $region50: #{vit_forward.16} parent=1 // pred_check
      %p102 = pneg %p101
    $region51: #{vit_forward.16} parent=1 // pred_check_branch
      %104 = sbr.rel (%p102) target = $region53
    $region52: #{vit_forward.16} parent=1 // pred_region
      %vm105 = vcmask 261120
      %106 = vst.msk [vmem:[#allocation2] sm:$0xff] %vm105, 0.0
      %107 = vst.msk [vmem:[#allocation2 + $0x8] sm:$0xff] %vm105, 0.0
      %108 = vst.msk [vmem:[#allocation2 + $0x10] sm:$0xff] %vm105, 0.0
      %109 = vst.msk [vmem:[#allocation2 + $0x18] sm:$0xff] %vm105, 0.0
      %110 = vst.msk [vmem:[#allocation2 + $0x20] sm:$0xff] %vm105, 0.0
      %111 = vst.msk [vmem:[#allocation2 + $0x28] sm:$0xff] %vm105, 0.0
    $region53: #{vit_forward.16} parent=1 // pred_fallthru
      _
    %v112 = vld [vmem:[#allocation2] sm:$0xff]
    %v113 = vld [vmem:[#allocation2 + $0x8] sm:$0xff]
    %v114 = vld [vmem:[#allocation2 + $0x10] sm:$0xff]
    %v115 = vld [vmem:[#allocation2 + $0x18] sm:$0xff]
    %v116 = vld [vmem:[#allocation2 + $0x20] sm:$0xff]
    %v117 = vld [vmem:[#allocation2 + $0x28] sm:$0xff]
    %v118 = vld [vmem:[#allocation3] sm:$0xf]
    %v119 = vld [vmem:[#allocation3 + $0x4] sm:$0xf]
    %v120 = vld [vmem:[#allocation3 + $0x8] sm:$0xf]
    %v121 = vld [vmem:[#allocation3 + $0xc] sm:$0xf]
    %v122 = vld [vmem:[#allocation3 + $0x10] sm:$0xf]
    %v123 = vld [vmem:[#allocation3 + $0x14] sm:$0xf]
    %v124 = vld [vmem:[#allocation6] sm:$0xf]
    %v125 = vld [vmem:[#allocation6 + $0x4] sm:$0xf]
    %v126 = vld [vmem:[#allocation6 + $0x8] sm:$0xf]
    %v127 = vld [vmem:[#allocation6 + $0xc] sm:$0xf]
    %v128 = vld [vmem:[#allocation6 + $0x10] sm:$0xf]
    %v129 = vld [vmem:[#allocation6 + $0x14] sm:$0xf]
    %v130 = vld [vmem:[#allocation6 + $0x18] sm:$0xf]
    %v131 = vld [vmem:[#allocation6 + $0x1c] sm:$0xf]
    %v138 = vunpack.c.l.b16 %v118
    %v139 = vunpack.c.l.b16 %v119
    %v140 = vunpack.c.l.b16 %v120
    %v141 = vunpack.c.l.b16 %v121
    %v142 = vunpack.c.l.b16 %v122
    %v143 = vunpack.c.l.b16 %v123
    %v144 = vpack.c.b16 %v139, %v138
    %v145 = vpack.c.b16 %v141, %v140
    %v146 = vpack.c.b16 %v143, %v142
    %v155 = vunpack.c.l.b16 %v124
    %v156 = vunpack.c.l.b16 %v125
    %v157 = vunpack.c.l.b16 %v126
    %v158 = vunpack.c.l.b16 %v127
    %v159 = vunpack.c.l.b16 %v128
    %v160 = vunpack.c.l.b16 %v129
    %v161 = vunpack.c.l.b16 %v130
    %v162 = vunpack.c.l.b16 %v131
    %v163 = vpack.c.b16 %v156, %v155
    %v164 = vpack.c.b16 %v158, %v157
    %v165 = vpack.c.b16 %v160, %v159
    %v166 = vpack.c.b16 %v162, %v161
    %vm171 = vcmask 523264
    %v173 = vsel %vm171, %v144, 0
    %v176 = vsel %vm171, %v145, 0
    %v179 = vsel %vm171, %v146, 0
    %181 = vmatprep.subr.bf16.mxu0 0
    %182 = vmatpush1.bf16.msra.mxu0 %v163
    %183 = vmatprep.subr.bf16.mxu0 0
    %184 = vmatpush1.bf16.msra.mxu0 %v164
    %185 = vmatprep.subr.bf16.mxu0 0
    %186 = vmatpush1.bf16.msra.mxu0 %v165
    %187 = vmatprep.subr.bf16.mxu0 0
    %188 = vmatpush1.bf16.msra.mxu0 %v166
    %189 = vmatprep.subr.bf16.mxu0 0
    %190 = vmatpush1.bf16.msra.mxu0 0
    %191 = vmatprep.subr.bf16.mxu0 0
    %192 = vmatpush1.bf16.msra.mxu0 0
    %193 = vmatprep.subr.bf16.mxu0 0
    %194 = vmatpush1.bf16.msra.mxu0 0
    %195 = vmatprep.subr.bf16.mxu0 0
    %196 = vmatpush1.bf16.msra.mxu0 0
    %197 = vmatprep.subr.bf16.mxu0 0
    %198 = vmatpush1.bf16.msra.mxu0 0
    %199 = vmatprep.subr.bf16.mxu0 0
    %200 = vmatpush1.bf16.msra.mxu0 0
    %201 = vmatprep.subr.bf16.mxu0 0
    %202 = vmatpush1.bf16.msra.mxu0 0
    %203 = vmatprep.subr.bf16.mxu0 0
    %204 = vmatpush1.bf16.msra.mxu0 0
    %205 = vmatprep.subr.bf16.mxu0 0
    %206 = vmatpush1.bf16.msra.mxu0 0
    %207 = vmatprep.subr.bf16.mxu0 0
    %208 = vmatpush1.bf16.msra.mxu0 0
    %209 = vmatprep.subr.bf16.mxu0 0
    %210 = vmatpush1.bf16.msra.mxu0 0
    %211 = vmatprep.subr.bf16.mxu0 0
    %212 = vmatpush1.bf16.msra.mxu0 0
    %213 = vmatprep.mubr.bf16.mxu0 0
    %214 = vmatmul.mubr.bf16.gmra.mrb[0].mxu0 %v173
    %v215 = vpop.f32.mrb[0].mxu0
    %v216 = vadd.f32 0.0, %v215
    %v217 = vpop.f32.mrb[0].mxu0
    %v218 = vpop.f32.mrb[0].mxu0
    %v219 = vadd.f32 0.0, %v218
    %v220 = vpop.f32.mrb[0].mxu0
    %221 = vmatprep.mubr.bf16.mxu0 0
    %222 = vmatmul.mubr.bf16.gmra.mrb[0].mxu0 %v176
    %v223 = vpop.f32.mrb[0].mxu0
    %v224 = vadd.f32 0.0, %v223
    %v225 = vpop.f32.mrb[0].mxu0
    %v226 = vpop.f32.mrb[0].mxu0
    %v227 = vadd.f32 0.0, %v226
    %v228 = vpop.f32.mrb[0].mxu0
    %229 = vmatprep.mubr.bf16.mxu0 0
    %230 = vmatmul.mubr.bf16.gmra.mrb[0].mxu0 %v179
    %v231 = vpop.f32.mrb[0].mxu0
    %v232 = vadd.f32 0.0, %v231
    %v233 = vpop.f32.mrb[0].mxu0
    %v234 = vpop.f32.mrb[0].mxu0
    %v235 = vadd.f32 0.0, %v234
    %v236 = vpop.f32.mrb[0].mxu0
    %237 = vdwg.mxu0
    %v238 = vadd.f32 %v112, %v216
    %v239 = vadd.f32 %v113, %v219
    %v240 = vadd.f32 %v114, %v224
    %v241 = vadd.f32 %v115, %v227
    %v242 = vadd.f32 %v116, %v232
    %v243 = vadd.f32 %v117, %v235
    %vm244 = vcmask 261120
    %245 = vst.msk [vmem:[#allocation2] sm:$0xff] %vm244, %v238
    %246 = vst.msk [vmem:[#allocation2 + $0x8] sm:$0xff] %vm244, %v239
    %247 = vst.msk [vmem:[#allocation2 + $0x10] sm:$0xff] %vm244, %v240
    %248 = vst.msk [vmem:[#allocation2 + $0x18] sm:$0xff] %vm244, %v241
    %249 = vst.msk [vmem:[#allocation2 + $0x20] sm:$0xff] %vm244, %v242
    %250 = vst.msk [vmem:[#allocation2 + $0x28] sm:$0xff] %vm244, %v243
    // Predicated region
    $region54: #{vit_forward.16} parent=1 // pred_check
      %p251 = pneg %p101
    $region55: #{vit_forward.16} parent=1 // pred_check_branch
      %253 = sbr.rel (%p251) target = $region57
    $region56: #{vit_forward.16} parent=1 // pred_region
      %v254 = vld [vmem:[#allocation2] sm:$0xff]
      %v255 = vld [vmem:[#allocation2 + $0x8] sm:$0xff]
      %v256 = vld [vmem:[#allocation2 + $0x10] sm:$0xff]
      %v257 = vld [vmem:[#allocation2 + $0x18] sm:$0xff]
      %v258 = vld [vmem:[#allocation2 + $0x20] sm:$0xff]
      %v259 = vld [vmem:[#allocation2 + $0x28] sm:$0xff]
      %v260 = vld [vmem:[#allocation8] sm:$0x1]
      %v262 = vlaneseq
      %v263 = vshrl.u32 %v262, 7
      %v264 = vsub.s32 0, %v263
      %v265 = vrot.slane %v260, %v264
      %v267 = vadd.f32 %v254, %v265
      %v268 = vadd.f32 %v255, %v265
      %v269 = vadd.f32 %v256, %v265
      %v270 = vadd.f32 %v257, %v265
      %v271 = vadd.f32 %v258, %v265
      %v272 = vadd.f32 %v259, %v265
      %v273 = vld [vmem:[#allocation9] sm:$0xf]
      %v274 = vld [vmem:[#allocation9 + $0x4] sm:$0xf]
      %v275 = vld [vmem:[#allocation9 + $0x8] sm:$0xf]
      %v276 = vld [vmem:[#allocation9 + $0xc] sm:$0xf]
      %v277 = vld [vmem:[#allocation9 + $0x10] sm:$0xf]
      %v278 = vld [vmem:[#allocation9 + $0x14] sm:$0xf]
      %v279 = vunpack.c.l.bf16 %v273
      %v280 = vunpack.c.l.bf16 %v274
      %v281 = vunpack.c.l.bf16 %v275
      %v282 = vunpack.c.l.bf16 %v276
      %v283 = vunpack.c.l.bf16 %v277
      %v284 = vunpack.c.l.bf16 %v278
      %v285 = vadd.f32 %v267, %v279
      %v286 = vadd.f32 %v268, %v280
      %v287 = vadd.f32 %v269, %v281
      %v288 = vadd.f32 %v270, %v282
      %v289 = vadd.f32 %v271, %v283
      %v290 = vadd.f32 %v272, %v284
      %v291 = vsel %vm244, %v285, 0.0
      %292 = vadd.xlane.f32.xlu0 %v291
      %v293 = vpop.xlane.xlu0 %292
      %v294 = vsel %vm244, %v286, 0.0
      %295 = vadd.xlane.f32.xlu0 %v294
      %v296 = vpop.xlane.xlu0 %295
      %v297 = vsel %vm244, %v287, 0.0
      %298 = vadd.xlane.f32.xlu0 %v297
      %v299 = vpop.xlane.xlu0 %298
      %v300 = vsel %vm244, %v288, 0.0
      %301 = vadd.xlane.f32.xlu0 %v300
      %v302 = vpop.xlane.xlu0 %301
      %v303 = vsel %vm244, %v289, 0.0
      %304 = vadd.xlane.f32.xlu0 %v303
      %v305 = vpop.xlane.xlu0 %304
      %v306 = vsel %vm244, %v290, 0.0
      %307 = vadd.xlane.f32.xlu0 %v306
      %v308 = vpop.xlane.xlu0 %307
      %v309 = vrcp.pop 32.0
      %v310 = vmul.f32 %v293, %v309
      %v311 = vmul.f32 %v296, %v309
      %v312 = vmul.f32 %v299, %v309
      %v313 = vmul.f32 %v302, %v309
      %v314 = vmul.f32 %v305, %v309
      %v315 = vmul.f32 %v308, %v309
      %v316 = vsub.f32 %v285, %v310
      %v317 = vsub.f32 %v286, %v311
      %v318 = vsub.f32 %v287, %v312
      %v319 = vsub.f32 %v288, %v313
      %v320 = vsub.f32 %v289, %v314
      %v321 = vsub.f32 %v290, %v315
      %v322 = vmul.f32 %v316, %v316
      %v323 = vmul.f32 %v317, %v317
      %v324 = vmul.f32 %v318, %v318
      %v325 = vmul.f32 %v319, %v319
      %v326 = vmul.f32 %v320, %v320
      %v327 = vmul.f32 %v321, %v321
      %v328 = vsel %vm244, %v322, 0.0
      %329 = vadd.xlane.f32.xlu0 %v328
      %v330 = vpop.xlane.xlu0 %329
      %v331 = vsel %vm244, %v323, 0.0
      %332 = vadd.xlane.f32.xlu0 %v331
      %v333 = vpop.xlane.xlu0 %332
      %v334 = vsel %vm244, %v324, 0.0
      %335 = vadd.xlane.f32.xlu0 %v334
      %v336 = vpop.xlane.xlu0 %335
      %v337 = vsel %vm244, %v325, 0.0
      %338 = vadd.xlane.f32.xlu0 %v337
      %v339 = vpop.xlane.xlu0 %338
      %v340 = vsel %vm244, %v326, 0.0
      %341 = vadd.xlane.f32.xlu0 %v340
      %v342 = vpop.xlane.xlu0 %341
      %v343 = vsel %vm244, %v327, 0.0
      %344 = vadd.xlane.f32.xlu0 %v343
      %v345 = vpop.xlane.xlu0 %344
      %v346 = vmul.f32 %v330, %v309
      %v347 = vmul.f32 %v333, %v309
      %v348 = vmul.f32 %v336, %v309
      %v349 = vmul.f32 %v339, %v309
      %v350 = vmul.f32 %v342, %v309
      %v351 = vmul.f32 %v345, %v309
      %v352 = vadd.f32 %v346, 1e-05
      %v353 = vadd.f32 %v347, 1e-05
      %v354 = vadd.f32 %v348, 1e-05
      %v355 = vadd.f32 %v349, 1e-05
      %v356 = vadd.f32 %v350, 1e-05
      %v357 = vadd.f32 %v351, 1e-05
      %v358 = vrsqrt.pop %v352
      %v359 = vrsqrt.pop %v353
      %v360 = vrsqrt.pop %v354
      %v361 = vrsqrt.pop %v355
      %v362 = vrsqrt.pop %v356
      %v363 = vrsqrt.pop %v357
      %v364 = vmul.f32 %v316, %v358
      %v365 = vmul.f32 %v317, %v359
      %v366 = vmul.f32 %v318, %v360
      %v367 = vmul.f32 %v319, %v361
      %v368 = vmul.f32 %v320, %v362
      %v369 = vmul.f32 %v321, %v363
      %v370 = vld [vmem:[#allocation11] sm:$0x1]
      %v372 = vlaneseq
      %v373 = vshrl.u32 %v372, 7
      %v374 = vsub.s32 0, %v373
      %v375 = vrot.slane %v370, %v374
      %v377 = vmul.f32 %v364, %v375
      %v378 = vmul.f32 %v365, %v375
      %v379 = vmul.f32 %v366, %v375
      %v380 = vmul.f32 %v367, %v375
      %v381 = vmul.f32 %v368, %v375
      %v382 = vmul.f32 %v369, %v375
      %v383 = vld [vmem:[#allocation12] sm:$0x1]
      %v385 = vlaneseq
      %v386 = vshrl.u32 %v385, 7
      %v387 = vsub.s32 0, %v386
      %v388 = vrot.slane %v383, %v387
      %v390 = vadd.f32 %v377, %v388
      %v391 = vadd.f32 %v378, %v388
      %v392 = vadd.f32 %v379, %v388
      %v393 = vadd.f32 %v380, %v388
      %v394 = vadd.f32 %v381, %v388
      %v395 = vadd.f32 %v382, %v388
      %v396 = vpack.c.bf16 %v391, %v390
      %v397 = vpack.c.bf16 %v393, %v392
      %v398 = vpack.c.bf16 %v395, %v394
      %v402 = vunpack.c.l.b16 %v396
      %v403 = vunpack.c.h.b16 %v396
      %v404 = vunpack.c.l.b16 %v397
      %v405 = vunpack.c.h.b16 %v397
      %v406 = vunpack.c.l.b16 %v398
      %v407 = vunpack.c.h.b16 %v398
      %v408 = vpack.c.b16 %v402, %v402
      %v409 = vpack.c.b16 %v403, %v403
      %v410 = vpack.c.b16 %v404, %v404
      %v411 = vpack.c.b16 %v405, %v405
      %v412 = vpack.c.b16 %v406, %v406
      %v413 = vpack.c.b16 %v407, %v407
      %vm420 = vcmask 257024
      %421 = vst.msk [vmem:[#allocation14] sm:$0xf] %vm420, %v408
      %422 = vst.msk [vmem:[#allocation14 + $0x4] sm:$0xf] %vm420, %v409
      %423 = vst.msk [vmem:[#allocation14 + $0x8] sm:$0xf] %vm420, %v410
      %424 = vst.msk [vmem:[#allocation14 + $0xc] sm:$0xf] %vm420, %v411
      %425 = vst.msk [vmem:[#allocation14 + $0x10] sm:$0xf] %vm420, %v412
      %426 = vst.msk [vmem:[#allocation14 + $0x14] sm:$0xf] %vm420, %v413
    $region57: #{vit_forward.16} parent=1 // pred_fallthru
      _
    // Predicated region
    $region58: #{vit_forward.16} parent=1 // pred_check
      _
    $region59: #{vit_forward.16} parent=1 // pred_check_branch
      %428 = sbr.rel (0) target = $region61
    $region60: #{vit_forward.16} parent=1 // pred_region
      %s430 = ssub.s32 384, 384
      %431 = vsyncadd [#allocation5], %s430
      %s432 = sshll.u32 [#allocation14], 4
      %s433 = int_to_ptr.vmem [resolvable:$true] %s432
      %438 = dma.vmem_to_hbm [thread:$0]  %s433, 384, %s6, [#allocation5], 64, 64, 4
    $region61: #{vit_forward.16} parent=1 // pred_fallthru
      _
    // Predicated region
    $region62: #{vit_forward.16} parent=1 // pred_check
      _
    $region63: #{vit_forward.16} parent=1 // pred_check_branch
      %440 = sbr.rel (0) target = $region65
    $region64: #{vit_forward.16} parent=1 // pred_region
      %441 = dma.done [#allocation5], 384
    $region65: #{vit_forward.16} parent=1 // pred_fallthru
      _
    %442 = vsyncpa [#allocation4], 1
    %443 = vsyncpa [#allocation7], 1
    %444 = vsyncpa [#allocation10], 1
    %445 = vsyncpa [#allocation13], 1
    %446 = vsyncpa [#allocation5], 1

</llo_original>
